<compile_context>
chip_gen: v5e
topology: v5e:2x2
jax: 0.10.0
libtpu: 0.0.40
codegen_flags: <defaults>
</compile_context>

<pallas_src>
import jax
import jax.numpy as jnp
import numpy as np
from jax.experimental import pallas as pl
from jax.experimental.pallas import tpu as pltpu


# ------------------------- fused Pallas kernel --------------------------------

def make_lstm_kernel(num_layers, hidden_size, time_block):
    """Builds the fused kernel for a fixed layer count / time block size.

    Kernel ref order:
      x_ref,
      (wx_0, wh_0, b_0), ..., (wx_{L-1}, wh_{L-1}, b_{L-1}),
      w_ro, b_ro,
      out_ref,
      h_0, c_0, ..., h_{L-1}, c_{L-1}      (VMEM scratch, carried over grid)
    """
    H = hidden_size
    n_weight_refs = 3 * num_layers + 2

    def kernel(x_ref, *rest):
        w_refs = rest[:n_weight_refs]
        out_ref = rest[n_weight_refs]
        state = rest[n_weight_refs + 1:]          # 2 * num_layers scratch refs

        tb = pl.program_id(0)

        @pl.when(tb == 0)
        def _():
            # Initial hidden/cell state is zeros (self.hidden is None / init()).
            for s in state:
                s[...] = jnp.zeros_like(s)

        # Hoist weight loads out of the timestep loop.
        wxs = [w_refs[3 * l][...] for l in range(num_layers)]       # (D_l, 4H)
        whs = [w_refs[3 * l + 1][...] for l in range(num_layers)]   # (H, 4H)
        bs = [w_refs[3 * l + 2][...] for l in range(num_layers)]    # (1, 4H)
        w_ro = w_refs[3 * num_layers][...]                           # (H, O)
        b_ro = w_refs[3 * num_layers + 1][...]                       # (1, O)

        # Static unroll over the timesteps of this block (TB is small).
        for t in range(time_block):
            xt = x_ref[:, t, :]                   # (B, D_in) — static slice
            for l in range(num_layers):
                h = state[2 * l][...]             # (B, H)
                c = state[2 * l + 1][...]         # (B, H)
                gates = (jnp.dot(xt, wxs[l], preferred_element_type=jnp.float32)
                         + jnp.dot(h, whs[l], preferred_element_type=jnp.float32)
                         + bs[l])                 # (B, 4H), gate order i|f|g|o
                sig = jax.nn.sigmoid(gates)       # one lane-dense EUP pass
                i = sig[:, 0 * H:1 * H]
                f = sig[:, 1 * H:2 * H]
                o = sig[:, 3 * H:4 * H]
                g = jnp.tanh(gates[:, 2 * H:3 * H])
                c_new = f * c + i * g
                h_new = o * jnp.tanh(c_new)
                state[2 * l][...] = h_new
                state[2 * l + 1][...] = c_new
                xt = h_new
            # Fused readout epilogue: sigmoid(h_top @ W_ro + b_ro)
            y = jax.nn.sigmoid(
                jnp.dot(xt, w_ro, preferred_element_type=jnp.float32) + b_ro)
            out_ref[:, t, :] = y.astype(out_ref.dtype)

    return kernel


# ------------------------- wrapper --------------------------------------------

def _pick_time_block(T, max_tb=32):
    if T <= max_tb:
        return T
    for tb in range(max_tb, 0, -1):
        if T % tb == 0:
            return tb
    return T


def lstm_forward(x_btd, layer_params, w_ro, b_ro):
    """x_btd: (B, T, input_size), batch_first like the PyTorch module.

    layer_params: list of (Wx (D_in, 4H), Wh (H, 4H), b (1, 4H)) per layer.
    w_ro: (H, O); b_ro: (1, O).  Returns (B, T, O).
    """
    B, T, D = x_btd.shape
    num_layers = len(layer_params)
    H = layer_params[0][1].shape[0]
    O = w_ro.shape[1]

    TB = _pick_time_block(T)
    assert T % TB == 0, "time axis must be divisible by the time block"

    flat_weights = []
    in_specs = [pl.BlockSpec((B, TB, D), lambda tb: (0, tb, 0))]
    for (wx, wh, b) in layer_params:
        d_in = wx.shape[0]
        in_specs += [
            pl.BlockSpec((d_in, 4 * H), lambda tb: (0, 0)),
            pl.BlockSpec((H, 4 * H), lambda tb: (0, 0)),
            pl.BlockSpec((1, 4 * H), lambda tb: (0, 0)),
        ]
        flat_weights += [wx, wh, b]
    in_specs += [
        pl.BlockSpec((H, O), lambda tb: (0, 0)),
        pl.BlockSpec((1, O), lambda tb: (0, 0)),
    ]
    flat_weights += [w_ro, b_ro]

    grid_spec = pltpu.PrefetchScalarGridSpec(
        num_scalar_prefetch=0,
        grid=(T // TB,),
        in_specs=in_specs,
        out_specs=pl.BlockSpec((B, TB, O), lambda tb: (0, tb, 0)),
        scratch_shapes=[pltpu.VMEM((B, H), jnp.float32)
                        for _ in range(2 * num_layers)],
    )

    kernel = make_lstm_kernel(num_layers, H, TB)

    return pl.pallas_call(
        kernel,
        out_shape=jax.ShapeDtypeStruct((B, T, O), jnp.float32),
        grid_spec=grid_spec,
        compiler_params=pltpu.CompilerParams(
            dimension_semantics=("arbitrary",)),   # time recurrence is serial
    )(x_btd, *flat_weights)


# ------------------------- parameter setup ------------------------------------

def init_params(key, input_size, hidden_size, output_size, num_layers):
    """PyTorch-style uniform(-1/sqrt(H), 1/sqrt(H)) init, deterministic.

    Returns both the raw PyTorch-layout params (for the reference) and the
    kernel-friendly fused layout (transposed, gates concatenated, biases fused).
    """
    H = hidden_size
    bound = 1.0 / np.sqrt(H)
    raw_layers, fused_layers = [], []
    for l in range(num_layers):
        d_in = input_size if l == 0 else H
        key, k1, k2, k3, k4 = jax.random.split(key, 5)
        w_ih = jax.random.uniform(k1, (4 * H, d_in), jnp.float32, -bound, bound)
        w_hh = jax.random.uniform(k2, (4 * H, H), jnp.float32, -bound, bound)
        b_ih = jax.random.uniform(k3, (4 * H,), jnp.float32, -bound, bound)
        b_hh = jax.random.uniform(k4, (4 * H,), jnp.float32, -bound, bound)
        raw_layers.append((w_ih, w_hh, b_ih, b_hh))
        # Columns keep PyTorch gate order i|f|g|o; biases fused.
        fused_layers.append((w_ih.T,                       # (d_in, 4H)
                             w_hh.T,                       # (H, 4H)
                             (b_ih + b_hh).reshape(1, 4 * H)))
    key, kw, kb = jax.random.split(key, 3)
    w_ro = jax.random.uniform(kw, (output_size, H), jnp.float32, -bound, bound)
    b_ro = jax.random.uniform(kb, (output_size,), jnp.float32, -bound, bound)
    return raw_layers, fused_layers, w_ro, b_ro


# ------------------------- pure-JAX reference ----------------------------------

def lstm_reference(x_btd, raw_layers, w_ro_raw, b_ro_raw):
    B, T, _ = x_btd.shape
    x = x_btd
    for (w_ih, w_hh, b_ih, b_hh) in raw_layers:
        H = w_hh.shape[1]
        h = jnp.zeros((B, H), jnp.float32)
        c = jnp.zeros((B, H), jnp.float32)
        outs = []
        for t in range(T):
            gates = x[:, t] @ w_ih.T + b_ih + h @ w_hh.T + b_hh
            i, f, g, o = jnp.split(gates, 4, axis=-1)
            i = jax.nn.sigmoid(i)
            f = jax.nn.sigmoid(f)
            g = jnp.tanh(g)
            o = jax.nn.sigmoid(o)
            c = f * c + i * g
            h = o * jnp.tanh(c)
            outs.append(h)
        x = jnp.stack(outs, axis=1)
    return jax.nn.sigmoid(x @ w_ro_raw.T + b_ro_raw)


# ------------------------- main -------------------------------------------------

if __name__ == "__main__":
    batch = 2
    seq = 8
    input_size = 16
    hidden_size = 32
    output_size = 8
    num_layers = 2

    key = jax.random.PRNGKey(0)
    key, kx = jax.random.split(key)
    x = jax.random.normal(kx, (batch, seq, input_size), jnp.float32)  # batch_first

    raw_layers, fused_layers, w_ro_raw, b_ro_raw = init_params(
        key, input_size, hidden_size, output_size, num_layers)

    # Kernel-friendly readout layout: (H, O) for x @ W, bias as (1, O).
    w_ro = w_ro_raw.T
    b_ro = b_ro_raw.reshape(1, output_size)

    out = lstm_forward(x, fused_layers, w_ro, b_ro)
    out = jax.block_until_ready(out)

    ref = jax.block_until_ready(lstm_reference(x, raw_layers, w_ro_raw, b_ro_raw))

    assert out.shape == (batch, seq, output_size), out.shape
    np.testing.assert_allclose(np.asarray(out), np.asarray(ref), rtol=1e-5, atol=1e-5)

    print("KERNEL_OK")
</pallas_src>

<mosaic_0001>
module attributes {stable_mosaic.version = 11 : i64} {
  func.func @kernel(%arg0: i32, %arg1: memref<2x8x16xf32, #tpu.memory_space<vmem>>, %arg2: memref<16x128xf32, #tpu.memory_space<vmem>>, %arg3: memref<32x128xf32, #tpu.memory_space<vmem>>, %arg4: memref<1x128xf32, #tpu.memory_space<vmem>>, %arg5: memref<32x128xf32, #tpu.memory_space<vmem>>, %arg6: memref<32x128xf32, #tpu.memory_space<vmem>>, %arg7: memref<1x128xf32, #tpu.memory_space<vmem>>, %arg8: memref<32x8xf32, #tpu.memory_space<vmem>>, %arg9: memref<1x8xf32, #tpu.memory_space<vmem>>, %arg10: memref<2x8x8xf32, #tpu.memory_space<vmem>>, %arg11: memref<2x32xf32, #tpu.memory_space<vmem>>, %arg12: memref<2x32xf32, #tpu.memory_space<vmem>>, %arg13: memref<2x32xf32, #tpu.memory_space<vmem>>, %arg14: memref<2x32xf32, #tpu.memory_space<vmem>>) attributes {dimension_semantics = [#tpu.dimension_semantics<arbitrary>], iteration_bounds = array<i64: 1>, scalar_prefetch = 0 : i64, scratch_operands = 4 : i64, tpu.core_type = #tpu.core_type<tc>, window_params = [{transform_indices = @transform_0, window_bounds = array<i64: 2, 8, 16>}, {pipeline_mode = #tpu.pipeline_mode<synchronous>, transform_indices = @transform_1, window_bounds = array<i64: 16, 128>}, {pipeline_mode = #tpu.pipeline_mode<synchronous>, transform_indices = @transform_2, window_bounds = array<i64: 32, 128>}, {pipeline_mode = #tpu.pipeline_mode<synchronous>, transform_indices = @transform_3, window_bounds = array<i64: 1, 128>}, {pipeline_mode = #tpu.pipeline_mode<synchronous>, transform_indices = @transform_4, window_bounds = array<i64: 32, 128>}, {pipeline_mode = #tpu.pipeline_mode<synchronous>, transform_indices = @transform_5, window_bounds = array<i64: 32, 128>}, {pipeline_mode = #tpu.pipeline_mode<synchronous>, transform_indices = @transform_6, window_bounds = array<i64: 1, 128>}, {pipeline_mode = #tpu.pipeline_mode<synchronous>, transform_indices = @transform_7, window_bounds = array<i64: 32, 8>}, {pipeline_mode = #tpu.pipeline_mode<synchronous>, transform_indices = @transform_8, window_bounds = array<i64: 1, 8>}, {transform_indices = @transform_9, window_bounds = array<i64: 2, 8, 8>}]} {
    %c0_i32 = arith.constant 0 : i32
    %0 = arith.cmpi eq, %arg0, %c0_i32 : i32
    %1 = arith.extui %0 : i1 to i32
    %c0_i32_0 = arith.constant 0 : i32
    %2 = arith.cmpi ne, %1, %c0_i32_0 : i32
    scf.if %2 {
      %cst_248 = arith.constant 0.000000e+00 : f32
      %499 = vector.broadcast %cst_248 : f32 to vector<2x32xf32>
      %c0_249 = arith.constant 0 : index
      %c0_250 = arith.constant 0 : index
      %500 = vector.load %arg11[%c0_249, %c0_250] : memref<2x32xf32, #tpu.memory_space<vmem>>, vector<2x32xf32>
      tpu.vector_store %arg11[%c0_249, %c0_250], %499 {strides = array<i32>} : memref<2x32xf32, #tpu.memory_space<vmem>>, vector<2x32xf32>,
      %cst_251 = arith.constant 0.000000e+00 : f32
      %501 = vector.broadcast %cst_251 : f32 to vector<2x32xf32>
      %c0_252 = arith.constant 0 : index
      %c0_253 = arith.constant 0 : index
      %502 = vector.load %arg12[%c0_252, %c0_253] : memref<2x32xf32, #tpu.memory_space<vmem>>, vector<2x32xf32>
      tpu.vector_store %arg12[%c0_252, %c0_253], %501 {strides = array<i32>} : memref<2x32xf32, #tpu.memory_space<vmem>>, vector<2x32xf32>,
      %cst_254 = arith.constant 0.000000e+00 : f32
      %503 = vector.broadcast %cst_254 : f32 to vector<2x32xf32>
      %c0_255 = arith.constant 0 : index
      %c0_256 = arith.constant 0 : index
      %504 = vector.load %arg13[%c0_255, %c0_256] : memref<2x32xf32, #tpu.memory_space<vmem>>, vector<2x32xf32>
      tpu.vector_store %arg13[%c0_255, %c0_256], %503 {strides = array<i32>} : memref<2x32xf32, #tpu.memory_space<vmem>>, vector<2x32xf32>,
      %cst_257 = arith.constant 0.000000e+00 : f32
      %505 = vector.broadcast %cst_257 : f32 to vector<2x32xf32>
      %c0_258 = arith.constant 0 : index
      %c0_259 = arith.constant 0 : index
      %506 = vector.load %arg14[%c0_258, %c0_259] : memref<2x32xf32, #tpu.memory_space<vmem>>, vector<2x32xf32>
      tpu.vector_store %arg14[%c0_258, %c0_259], %505 {strides = array<i32>} : memref<2x32xf32, #tpu.memory_space<vmem>>, vector<2x32xf32>,
    } else {
    }
    %c0 = arith.constant 0 : index
    %c0_1 = arith.constant 0 : index
    %3 = vector.load %arg2[%c0, %c0_1] : memref<16x128xf32, #tpu.memory_space<vmem>>, vector<16x128xf32>
    %c0_2 = arith.constant 0 : index
    %c0_3 = arith.constant 0 : index
    %4 = vector.load %arg5[%c0_2, %c0_3] : memref<32x128xf32, #tpu.memory_space<vmem>>, vector<32x128xf32>
    %c0_4 = arith.constant 0 : index
    %c0_5 = arith.constant 0 : index
    %5 = vector.load %arg3[%c0_4, %c0_5] : memref<32x128xf32, #tpu.memory_space<vmem>>, vector<32x128xf32>
    %c0_6 = arith.constant 0 : index
    %c0_7 = arith.constant 0 : index
    %6 = vector.load %arg6[%c0_6, %c0_7] : memref<32x128xf32, #tpu.memory_space<vmem>>, vector<32x128xf32>
    %c0_8 = arith.constant 0 : index
    %c0_9 = arith.constant 0 : index
    %7 = vector.load %arg4[%c0_8, %c0_9] : memref<1x128xf32, #tpu.memory_space<vmem>>, vector<1x128xf32>
    %c0_10 = arith.constant 0 : index
    %c0_11 = arith.constant 0 : index
    %8 = vector.load %arg7[%c0_10, %c0_11] : memref<1x128xf32, #tpu.memory_space<vmem>>, vector<1x128xf32>
    %c0_12 = arith.constant 0 : index
    %c0_13 = arith.constant 0 : index
    %9 = vector.load %arg8[%c0_12, %c0_13] : memref<32x8xf32, #tpu.memory_space<vmem>>, vector<32x8xf32>
    %c0_14 = arith.constant 0 : index
    %c0_15 = arith.constant 0 : index
    %10 = vector.load %arg9[%c0_14, %c0_15] : memref<1x8xf32, #tpu.memory_space<vmem>>, vector<1x8xf32>
    %c0_16 = arith.constant 0 : index
    %c0_17 = arith.constant 0 : index
    %c0_18 = arith.constant 0 : index
    %11 = vector.load %arg1[%c0_16, %c0_17, %c0_18] : memref<2x8x16xf32, #tpu.memory_space<vmem>>, vector<2x1x16xf32>
    %12 = vector.shape_cast %11 : vector<2x1x16xf32> to vector<2x16xf32>
    %c0_19 = arith.constant 0 : index
    %c0_20 = arith.constant 0 : index
    %13 = vector.load %arg11[%c0_19, %c0_20] : memref<2x32xf32, #tpu.memory_space<vmem>>, vector<2x32xf32>
    %c0_21 = arith.constant 0 : index
    %c0_22 = arith.constant 0 : index
    %14 = vector.load %arg12[%c0_21, %c0_22] : memref<2x32xf32, #tpu.memory_space<vmem>>, vector<2x32xf32>
    %cst = arith.constant dense<0.000000e+00> : vector<2x128xf32>
    %15 = tpu.matmul %12, %3, %cst {dimension_numbers = #tpu.dot_dimension_numbers<[1], [0], [0], [1], [0, 0, 1, 1], [], []>} : vector<2x16xf32>, vector<16x128xf32>, vector<2x128xf32> -> vector<2x128xf32>
    %cst_23 = arith.constant dense<0.000000e+00> : vector<2x128xf32>
    %16 = tpu.matmul %13, %5, %cst_23 {dimension_numbers = #tpu.dot_dimension_numbers<[1], [0], [0], [1], [0, 0, 1, 1], [], []>} : vector<2x32xf32>, vector<32x128xf32>, vector<2x128xf32> -> vector<2x128xf32>
    %17 = arith.addf %15, %16 : vector<2x128xf32>
    %18 = vector.broadcast %7 : vector<1x128xf32> to vector<2x128xf32>
    %19 = arith.addf %17, %18 : vector<2x128xf32>
    %20 = arith.negf %19 : vector<2x128xf32>
    %21 = math.exp %20 : vector<2x128xf32>
    %cst_24 = arith.constant 1.000000e+00 : f32
    %22 = vector.broadcast %cst_24 : f32 to vector<2x128xf32>
    %23 = arith.addf %22, %21 : vector<2x128xf32>
    %24 = arith.divf %22, %23 : vector<2x128xf32>
    %25 = vector.extract_strided_slice %24 {offsets = [0, 0], sizes = [2, 32], strides = [1, 1]} : vector<2x128xf32> to vector<2x32xf32>
    %26 = vector.extract_strided_slice %24 {offsets = [0, 32], sizes = [2, 32], strides = [1, 1]} : vector<2x128xf32> to vector<2x32xf32>
    %27 = vector.extract_strided_slice %24 {offsets = [0, 96], sizes = [2, 32], strides = [1, 1]} : vector<2x128xf32> to vector<2x32xf32>
    %28 = vector.extract_strided_slice %19 {offsets = [0, 64], sizes = [2, 32], strides = [1, 1]} : vector<2x128xf32> to vector<2x32xf32>
    %29 = math.tanh %28 : vector<2x32xf32>
    %30 = arith.mulf %26, %14 : vector<2x32xf32>
    %31 = arith.mulf %25, %29 : vector<2x32xf32>
    %32 = arith.addf %30, %31 : vector<2x32xf32>
    %33 = math.tanh %32 : vector<2x32xf32>
    %34 = arith.mulf %27, %33 : vector<2x32xf32>
    %c0_25 = arith.constant 0 : index
    %c0_26 = arith.constant 0 : index
    %35 = vector.load %arg11[%c0_25, %c0_26] : memref<2x32xf32, #tpu.memory_space<vmem>>, vector<2x32xf32>
    tpu.vector_store %arg11[%c0_25, %c0_26], %34 {strides = array<i32>} : memref<2x32xf32, #tpu.memory_space<vmem>>, vector<2x32xf32>,
    %c0_27 = arith.constant 0 : index
    %c0_28 = arith.constant 0 : index
    %36 = vector.load %arg12[%c0_27, %c0_28] : memref<2x32xf32, #tpu.memory_space<vmem>>, vector<2x32xf32>
    tpu.vector_store %arg12[%c0_27, %c0_28], %32 {strides = array<i32>} : memref<2x32xf32, #tpu.memory_space<vmem>>, vector<2x32xf32>,
    %c0_29 = arith.constant 0 : index
    %c0_30 = arith.constant 0 : index
    %37 = vector.load %arg13[%c0_29, %c0_30] : memref<2x32xf32, #tpu.memory_space<vmem>>, vector<2x32xf32>
    %c0_31 = arith.constant 0 : index
    %c0_32 = arith.constant 0 : index
    %38 = vector.load %arg14[%c0_31, %c0_32] : memref<2x32xf32, #tpu.memory_space<vmem>>, vector<2x32xf32>
    %cst_33 = arith.constant dense<0.000000e+00> : vector<2x128xf32>
    %39 = tpu.matmul %34, %4, %cst_33 {dimension_numbers = #tpu.dot_dimension_numbers<[1], [0], [0], [1], [0, 0, 1, 1], [], []>} : vector<2x32xf32>, vector<32x128xf32>, vector<2x128xf32> -> vector<2x128xf32>
    %cst_34 = arith.constant dense<0.000000e+00> : vector<2x128xf32>
    %40 = tpu.matmul %37, %6, %cst_34 {dimension_numbers = #tpu.dot_dimension_numbers<[1], [0], [0], [1], [0, 0, 1, 1], [], []>} : vector<2x32xf32>, vector<32x128xf32>, vector<2x128xf32> -> vector<2x128xf32>
    %41 = arith.addf %39, %40 : vector<2x128xf32>
    %42 = vector.broadcast %8 : vector<1x128xf32> to vector<2x128xf32>
    %43 = arith.addf %41, %42 : vector<2x128xf32>
    %44 = arith.negf %43 : vector<2x128xf32>
    %45 = math.exp %44 : vector<2x128xf32>
    %cst_35 = arith.constant 1.000000e+00 : f32
    %46 = vector.broadcast %cst_35 : f32 to vector<2x128xf32>
    %47 = arith.addf %46, %45 : vector<2x128xf32>
    %48 = arith.divf %46, %47 : vector<2x128xf32>
    %49 = vector.extract_strided_slice %48 {offsets = [0, 0], sizes = [2, 32], strides = [1, 1]} : vector<2x128xf32> to vector<2x32xf32>
    %50 = vector.extract_strided_slice %48 {offsets = [0, 32], sizes = [2, 32], strides = [1, 1]} : vector<2x128xf32> to vector<2x32xf32>
    %51 = vector.extract_strided_slice %48 {offsets = [0, 96], sizes = [2, 32], strides = [1, 1]} : vector<2x128xf32> to vector<2x32xf32>
    %52 = vector.extract_strided_slice %43 {offsets = [0, 64], sizes = [2, 32], strides = [1, 1]} : vector<2x128xf32> to vector<2x32xf32>
    %53 = math.tanh %52 : vector<2x32xf32>
    %54 = arith.mulf %50, %38 : vector<2x32xf32>
    %55 = arith.mulf %49, %53 : vector<2x32xf32>
    %56 = arith.addf %54, %55 : vector<2x32xf32>
    %57 = math.tanh %56 : vector<2x32xf32>
    %58 = arith.mulf %51, %57 : vector<2x32xf32>
    %c0_36 = arith.constant 0 : index
    %c0_37 = arith.constant 0 : index
    %59 = vector.load %arg13[%c0_36, %c0_37] : memref<2x32xf32, #tpu.memory_space<vmem>>, vector<2x32xf32>
    tpu.vector_store %arg13[%c0_36, %c0_37], %58 {strides = array<i32>} : memref<2x32xf32, #tpu.memory_space<vmem>>, vector<2x32xf32>,
    %c0_38 = arith.constant 0 : index
    %c0_39 = arith.constant 0 : index
    %60 = vector.load %arg14[%c0_38, %c0_39] : memref<2x32xf32, #tpu.memory_space<vmem>>, vector<2x32xf32>
    tpu.vector_store %arg14[%c0_38, %c0_39], %56 {strides = array<i32>} : memref<2x32xf32, #tpu.memory_space<vmem>>, vector<2x32xf32>,
    %cst_40 = arith.constant dense<0.000000e+00> : vector<2x8xf32>
    %61 = tpu.matmul %58, %9, %cst_40 {dimension_numbers = #tpu.dot_dimension_numbers<[1], [0], [0], [1], [0, 0, 1, 1], [], []>} : vector<2x32xf32>, vector<32x8xf32>, vector<2x8xf32> -> vector<2x8xf32>
    %62 = vector.broadcast %10 : vector<1x8xf32> to vector<2x8xf32>
    %63 = arith.addf %61, %62 : vector<2x8xf32>
    %64 = arith.negf %63 : vector<2x8xf32>
    %65 = math.exp %64 : vector<2x8xf32>
    %cst_41 = arith.constant 1.000000e+00 : f32
    %66 = vector.broadcast %cst_41 : f32 to vector<2x8xf32>
    %67 = arith.addf %66, %65 : vector<2x8xf32>
    %68 = arith.divf %66, %67 : vector<2x8xf32>
    %c0_42 = arith.constant 0 : index
    %c0_43 = arith.constant 0 : index
    %c0_44 = arith.constant 0 : index
    %69 = vector.load %arg10[%c0_42, %c0_43, %c0_44] : memref<2x8x8xf32, #tpu.memory_space<vmem>>, vector<2x1x8xf32>
    %70 = vector.shape_cast %69 : vector<2x1x8xf32> to vector<2x8xf32>
    %71 = vector.shape_cast %68 : vector<2x8xf32> to vector<2x1x8xf32>
    tpu.vector_store %arg10[%c0_42, %c0_43, %c0_44], %71 {strides = array<i32>} : memref<2x8x8xf32, #tpu.memory_space<vmem>>, vector<2x1x8xf32>,
    %c0_45 = arith.constant 0 : index
    %c1 = arith.constant 1 : index
    %c0_46 = arith.constant 0 : index
    %72 = vector.load %arg1[%c0_45, %c1, %c0_46] : memref<2x8x16xf32, #tpu.memory_space<vmem>>, vector<2x1x16xf32>
    %73 = vector.shape_cast %72 : vector<2x1x16xf32> to vector<2x16xf32>
    %c0_47 = arith.constant 0 : index
    %c0_48 = arith.constant 0 : index
    %74 = vector.load %arg11[%c0_47, %c0_48] : memref<2x32xf32, #tpu.memory_space<vmem>>, vector<2x32xf32>
    %c0_49 = arith.constant 0 : index
    %c0_50 = arith.constant 0 : index
    %75 = vector.load %arg12[%c0_49, %c0_50] : memref<2x32xf32, #tpu.memory_space<vmem>>, vector<2x32xf32>
    %cst_51 = arith.constant dense<0.000000e+00> : vector<2x128xf32>
    %76 = tpu.matmul %73, %3, %cst_51 {dimension_numbers = #tpu.dot_dimension_numbers<[1], [0], [0], [1], [0, 0, 1, 1], [], []>} : vector<2x16xf32>, vector<16x128xf32>, vector<2x128xf32> -> vector<2x128xf32>
    %cst_52 = arith.constant dense<0.000000e+00> : vector<2x128xf32>
    %77 = tpu.matmul %74, %5, %cst_52 {dimension_numbers = #tpu.dot_dimension_numbers<[1], [0], [0], [1], [0, 0, 1, 1], [], []>} : vector<2x32xf32>, vector<32x128xf32>, vector<2x128xf32> -> vector<2x128xf32>
    %78 = arith.addf %76, %77 : vector<2x128xf32>
    %79 = vector.broadcast %7 : vector<1x128xf32> to vector<2x128xf32>
    %80 = arith.addf %78, %79 : vector<2x128xf32>
    %81 = arith.negf %80 : vector<2x128xf32>
    %82 = math.exp %81 : vector<2x128xf32>
    %cst_53 = arith.constant 1.000000e+00 : f32
    %83 = vector.broadcast %cst_53 : f32 to vector<2x128xf32>
    %84 = arith.addf %83, %82 : vector<2x128xf32>
    %85 = arith.divf %83, %84 : vector<2x128xf32>
    %86 = vector.extract_strided_slice %85 {offsets = [0, 0], sizes = [2, 32], strides = [1, 1]} : vector<2x128xf32> to vector<2x32xf32>
    %87 = vector.extract_strided_slice %85 {offsets = [0, 32], sizes = [2, 32], strides = [1, 1]} : vector<2x128xf32> to vector<2x32xf32>
    %88 = vector.extract_strided_slice %85 {offsets = [0, 96], sizes = [2, 32], strides = [1, 1]} : vector<2x128xf32> to vector<2x32xf32>
    %89 = vector.extract_strided_slice %80 {offsets = [0, 64], sizes = [2, 32], strides = [1, 1]} : vector<2x128xf32> to vector<2x32xf32>
    %90 = math.tanh %89 : vector<2x32xf32>
    %91 = arith.mulf %87, %75 : vector<2x32xf32>
    %92 = arith.mulf %86, %90 : vector<2x32xf32>
    %93 = arith.addf %91, %92 : vector<2x32xf32>
    %94 = math.tanh %93 : vector<2x32xf32>
    %95 = arith.mulf %88, %94 : vector<2x32xf32>
    %c0_54 = arith.constant 0 : index
    %c0_55 = arith.constant 0 : index
    %96 = vector.load %arg11[%c0_54, %c0_55] : memref<2x32xf32, #tpu.memory_space<vmem>>, vector<2x32xf32>
    tpu.vector_store %arg11[%c0_54, %c0_55], %95 {strides = array<i32>} : memref<2x32xf32, #tpu.memory_space<vmem>>, vector<2x32xf32>,
    %c0_56 = arith.constant 0 : index
    %c0_57 = arith.constant 0 : index
    %97 = vector.load %arg12[%c0_56, %c0_57] : memref<2x32xf32, #tpu.memory_space<vmem>>, vector<2x32xf32>
    tpu.vector_store %arg12[%c0_56, %c0_57], %93 {strides = array<i32>} : memref<2x32xf32, #tpu.memory_space<vmem>>, vector<2x32xf32>,
    %c0_58 = arith.constant 0 : index
    %c0_59 = arith.constant 0 : index
    %98 = vector.load %arg13[%c0_58, %c0_59] : memref<2x32xf32, #tpu.memory_space<vmem>>, vector<2x32xf32>
    %c0_60 = arith.constant 0 : index
    %c0_61 = arith.constant 0 : index
    %99 = vector.load %arg14[%c0_60, %c0_61] : memref<2x32xf32, #tpu.memory_space<vmem>>, vector<2x32xf32>
    %cst_62 = arith.constant dense<0.000000e+00> : vector<2x128xf32>
    %100 = tpu.matmul %95, %4, %cst_62 {dimension_numbers = #tpu.dot_dimension_numbers<[1], [0], [0], [1], [0, 0, 1, 1], [], []>} : vector<2x32xf32>, vector<32x128xf32>, vector<2x128xf32> -> vector<2x128xf32>
    %cst_63 = arith.constant dense<0.000000e+00> : vector<2x128xf32>
    %101 = tpu.matmul %98, %6, %cst_63 {dimension_numbers = #tpu.dot_dimension_numbers<[1], [0], [0], [1], [0, 0, 1, 1], [], []>} : vector<2x32xf32>, vector<32x128xf32>, vector<2x128xf32> -> vector<2x128xf32>
    %102 = arith.addf %100, %101 : vector<2x128xf32>
    %103 = vector.broadcast %8 : vector<1x128xf32> to vector<2x128xf32>
    %104 = arith.addf %102, %103 : vector<2x128xf32>
    %105 = arith.negf %104 : vector<2x128xf32>
    %106 = math.exp %105 : vector<2x128xf32>
    %cst_64 = arith.constant 1.000000e+00 : f32
    %107 = vector.broadcast %cst_64 : f32 to vector<2x128xf32>
    %108 = arith.addf %107, %106 : vector<2x128xf32>
    %109 = arith.divf %107, %108 : vector<2x128xf32>
    %110 = vector.extract_strided_slice %109 {offsets = [0, 0], sizes = [2, 32], strides = [1, 1]} : vector<2x128xf32> to vector<2x32xf32>
    %111 = vector.extract_strided_slice %109 {offsets = [0, 32], sizes = [2, 32], strides = [1, 1]} : vector<2x128xf32> to vector<2x32xf32>
    %112 = vector.extract_strided_slice %109 {offsets = [0, 96], sizes = [2, 32], strides = [1, 1]} : vector<2x128xf32> to vector<2x32xf32>
    %113 = vector.extract_strided_slice %104 {offsets = [0, 64], sizes = [2, 32], strides = [1, 1]} : vector<2x128xf32> to vector<2x32xf32>
    %114 = math.tanh %113 : vector<2x32xf32>
    %115 = arith.mulf %111, %99 : vector<2x32xf32>
    %116 = arith.mulf %110, %114 : vector<2x32xf32>
    %117 = arith.addf %115, %116 : vector<2x32xf32>
    %118 = math.tanh %117 : vector<2x32xf32>
    %119 = arith.mulf %112, %118 : vector<2x32xf32>
    %c0_65 = arith.constant 0 : index
    %c0_66 = arith.constant 0 : index
    %120 = vector.load %arg13[%c0_65, %c0_66] : memref<2x32xf32, #tpu.memory_space<vmem>>, vector<2x32xf32>
    tpu.vector_store %arg13[%c0_65, %c0_66], %119 {strides = array<i32>} : memref<2x32xf32, #tpu.memory_space<vmem>>, vector<2x32xf32>,
    %c0_67 = arith.constant 0 : index
    %c0_68 = arith.constant 0 : index
    %121 = vector.load %arg14[%c0_67, %c0_68] : memref<2x32xf32, #tpu.memory_space<vmem>>, vector<2x32xf32>
    tpu.vector_store %arg14[%c0_67, %c0_68], %117 {strides = array<i32>} : memref<2x32xf32, #tpu.memory_space<vmem>>, vector<2x32xf32>,
    %cst_69 = arith.constant dense<0.000000e+00> : vector<2x8xf32>
    %122 = tpu.matmul %119, %9, %cst_69 {dimension_numbers = #tpu.dot_dimension_numbers<[1], [0], [0], [1], [0, 0, 1, 1], [], []>} : vector<2x32xf32>, vector<32x8xf32>, vector<2x8xf32> -> vector<2x8xf32>
    %123 = vector.broadcast %10 : vector<1x8xf32> to vector<2x8xf32>
    %124 = arith.addf %122, %123 : vector<2x8xf32>
    %125 = arith.negf %124 : vector<2x8xf32>
    %126 = math.exp %125 : vector<2x8xf32>
    %cst_70 = arith.constant 1.000000e+00 : f32
    %127 = vector.broadcast %cst_70 : f32 to vector<2x8xf32>
    %128 = arith.addf %127, %126 : vector<2x8xf32>
    %129 = arith.divf %127, %128 : vector<2x8xf32>
    %c0_71 = arith.constant 0 : index
    %c1_72 = arith.constant 1 : index
    %c0_73 = arith.constant 0 : index
    %130 = vector.load %arg10[%c0_71, %c1_72, %c0_73] : memref<2x8x8xf32, #tpu.memory_space<vmem>>, vector<2x1x8xf32>
    %131 = vector.shape_cast %130 : vector<2x1x8xf32> to vector<2x8xf32>
    %132 = vector.shape_cast %129 : vector<2x8xf32> to vector<2x1x8xf32>
    tpu.vector_store %arg10[%c0_71, %c1_72, %c0_73], %132 {strides = array<i32>} : memref<2x8x8xf32, #tpu.memory_space<vmem>>, vector<2x1x8xf32>,
    %c0_74 = arith.constant 0 : index
    %c2 = arith.constant 2 : index
    %c0_75 = arith.constant 0 : index
    %133 = vector.load %arg1[%c0_74, %c2, %c0_75] : memref<2x8x16xf32, #tpu.memory_space<vmem>>, vector<2x1x16xf32>
    %134 = vector.shape_cast %133 : vector<2x1x16xf32> to vector<2x16xf32>
    %c0_76 = arith.constant 0 : index
    %c0_77 = arith.constant 0 : index
    %135 = vector.load %arg11[%c0_76, %c0_77] : memref<2x32xf32, #tpu.memory_space<vmem>>, vector<2x32xf32>
    %c0_78 = arith.constant 0 : index
    %c0_79 = arith.constant 0 : index
    %136 = vector.load %arg12[%c0_78, %c0_79] : memref<2x32xf32, #tpu.memory_space<vmem>>, vector<2x32xf32>
    %cst_80 = arith.constant dense<0.000000e+00> : vector<2x128xf32>
    %137 = tpu.matmul %134, %3, %cst_80 {dimension_numbers = #tpu.dot_dimension_numbers<[1], [0], [0], [1], [0, 0, 1, 1], [], []>} : vector<2x16xf32>, vector<16x128xf32>, vector<2x128xf32> -> vector<2x128xf32>
    %cst_81 = arith.constant dense<0.000000e+00> : vector<2x128xf32>
    %138 = tpu.matmul %135, %5, %cst_81 {dimension_numbers = #tpu.dot_dimension_numbers<[1], [0], [0], [1], [0, 0, 1, 1], [], []>} : vector<2x32xf32>, vector<32x128xf32>, vector<2x128xf32> -> vector<2x128xf32>
    %139 = arith.addf %137, %138 : vector<2x128xf32>
    %140 = vector.broadcast %7 : vector<1x128xf32> to vector<2x128xf32>
    %141 = arith.addf %139, %140 : vector<2x128xf32>
    %142 = arith.negf %141 : vector<2x128xf32>
    %143 = math.exp %142 : vector<2x128xf32>
    %cst_82 = arith.constant 1.000000e+00 : f32
    %144 = vector.broadcast %cst_82 : f32 to vector<2x128xf32>
    %145 = arith.addf %144, %143 : vector<2x128xf32>
    %146 = arith.divf %144, %145 : vector<2x128xf32>
    %147 = vector.extract_strided_slice %146 {offsets = [0, 0], sizes = [2, 32], strides = [1, 1]} : vector<2x128xf32> to vector<2x32xf32>
    %148 = vector.extract_strided_slice %146 {offsets = [0, 32], sizes = [2, 32], strides = [1, 1]} : vector<2x128xf32> to vector<2x32xf32>
    %149 = vector.extract_strided_slice %146 {offsets = [0, 96], sizes = [2, 32], strides = [1, 1]} : vector<2x128xf32> to vector<2x32xf32>
    %150 = vector.extract_strided_slice %141 {offsets = [0, 64], sizes = [2, 32], strides = [1, 1]} : vector<2x128xf32> to vector<2x32xf32>
    %151 = math.tanh %150 : vector<2x32xf32>
    %152 = arith.mulf %148, %136 : vector<2x32xf32>
    %153 = arith.mulf %147, %151 : vector<2x32xf32>
    %154 = arith.addf %152, %153 : vector<2x32xf32>
    %155 = math.tanh %154 : vector<2x32xf32>
    %156 = arith.mulf %149, %155 : vector<2x32xf32>
    %c0_83 = arith.constant 0 : index
    %c0_84 = arith.constant 0 : index
    %157 = vector.load %arg11[%c0_83, %c0_84] : memref<2x32xf32, #tpu.memory_space<vmem>>, vector<2x32xf32>
    tpu.vector_store %arg11[%c0_83, %c0_84], %156 {strides = array<i32>} : memref<2x32xf32, #tpu.memory_space<vmem>>, vector<2x32xf32>,
    %c0_85 = arith.constant 0 : index
    %c0_86 = arith.constant 0 : index
    %158 = vector.load %arg12[%c0_85, %c0_86] : memref<2x32xf32, #tpu.memory_space<vmem>>, vector<2x32xf32>
    tpu.vector_store %arg12[%c0_85, %c0_86], %154 {strides = array<i32>} : memref<2x32xf32, #tpu.memory_space<vmem>>, vector<2x32xf32>,
    %c0_87 = arith.constant 0 : index
    %c0_88 = arith.constant 0 : index
    %159 = vector.load %arg13[%c0_87, %c0_88] : memref<2x32xf32, #tpu.memory_space<vmem>>, vector<2x32xf32>
    %c0_89 = arith.constant 0 : index
    %c0_90 = arith.constant 0 : index
    %160 = vector.load %arg14[%c0_89, %c0_90] : memref<2x32xf32, #tpu.memory_space<vmem>>, vector<2x32xf32>
    %cst_91 = arith.constant dense<0.000000e+00> : vector<2x128xf32>
    %161 = tpu.matmul %156, %4, %cst_91 {dimension_numbers = #tpu.dot_dimension_numbers<[1], [0], [0], [1], [0, 0, 1, 1], [], []>} : vector<2x32xf32>, vector<32x128xf32>, vector<2x128xf32> -> vector<2x128xf32>
    %cst_92 = arith.constant dense<0.000000e+00> : vector<2x128xf32>
    %162 = tpu.matmul %159, %6, %cst_92 {dimension_numbers = #tpu.dot_dimension_numbers<[1], [0], [0], [1], [0, 0, 1, 1], [], []>} : vector<2x32xf32>, vector<32x128xf32>, vector<2x128xf32> -> vector<2x128xf32>
    %163 = arith.addf %161, %162 : vector<2x128xf32>
    %164 = vector.broadcast %8 : vector<1x128xf32> to vector<2x128xf32>
    %165 = arith.addf %163, %164 : vector<2x128xf32>
    %166 = arith.negf %165 : vector<2x128xf32>
    %167 = math.exp %166 : vector<2x128xf32>
    %cst_93 = arith.constant 1.000000e+00 : f32
    %168 = vector.broadcast %cst_93 : f32 to vector<2x128xf32>
    %169 = arith.addf %168, %167 : vector<2x128xf32>
    %170 = arith.divf %168, %169 : vector<2x128xf32>
    %171 = vector.extract_strided_slice %170 {offsets = [0, 0], sizes = [2, 32], strides = [1, 1]} : vector<2x128xf32> to vector<2x32xf32>
    %172 = vector.extract_strided_slice %170 {offsets = [0, 32], sizes = [2, 32], strides = [1, 1]} : vector<2x128xf32> to vector<2x32xf32>
    %173 = vector.extract_strided_slice %170 {offsets = [0, 96], sizes = [2, 32], strides = [1, 1]} : vector<2x128xf32> to vector<2x32xf32>
    %174 = vector.extract_strided_slice %165 {offsets = [0, 64], sizes = [2, 32], strides = [1, 1]} : vector<2x128xf32> to vector<2x32xf32>
    %175 = math.tanh %174 : vector<2x32xf32>
    %176 = arith.mulf %172, %160 : vector<2x32xf32>
    %177 = arith.mulf %171, %175 : vector<2x32xf32>
    %178 = arith.addf %176, %177 : vector<2x32xf32>
    %179 = math.tanh %178 : vector<2x32xf32>
    %180 = arith.mulf %173, %179 : vector<2x32xf32>
    %c0_94 = arith.constant 0 : index
    %c0_95 = arith.constant 0 : index
    %181 = vector.load %arg13[%c0_94, %c0_95] : memref<2x32xf32, #tpu.memory_space<vmem>>, vector<2x32xf32>
    tpu.vector_store %arg13[%c0_94, %c0_95], %180 {strides = array<i32>} : memref<2x32xf32, #tpu.memory_space<vmem>>, vector<2x32xf32>,
    %c0_96 = arith.constant 0 : index
    %c0_97 = arith.constant 0 : index
    %182 = vector.load %arg14[%c0_96, %c0_97] : memref<2x32xf32, #tpu.memory_space<vmem>>, vector<2x32xf32>
    tpu.vector_store %arg14[%c0_96, %c0_97], %178 {strides = array<i32>} : memref<2x32xf32, #tpu.memory_space<vmem>>, vector<2x32xf32>,
    %cst_98 = arith.constant dense<0.000000e+00> : vector<2x8xf32>
    %183 = tpu.matmul %180, %9, %cst_98 {dimension_numbers = #tpu.dot_dimension_numbers<[1], [0], [0], [1], [0, 0, 1, 1], [], []>} : vector<2x32xf32>, vector<32x8xf32>, vector<2x8xf32> -> vector<2x8xf32>
    %184 = vector.broadcast %10 : vector<1x8xf32> to vector<2x8xf32>
    %185 = arith.addf %183, %184 : vector<2x8xf32>
    %186 = arith.negf %185 : vector<2x8xf32>
    %187 = math.exp %186 : vector<2x8xf32>
    %cst_99 = arith.constant 1.000000e+00 : f32
    %188 = vector.broadcast %cst_99 : f32 to vector<2x8xf32>
    %189 = arith.addf %188, %187 : vector<2x8xf32>
    %190 = arith.divf %188, %189 : vector<2x8xf32>
    %c0_100 = arith.constant 0 : index
    %c2_101 = arith.constant 2 : index
    %c0_102 = arith.constant 0 : index
    %191 = vector.load %arg10[%c0_100, %c2_101, %c0_102] : memref<2x8x8xf32, #tpu.memory_space<vmem>>, vector<2x1x8xf32>
    %192 = vector.shape_cast %191 : vector<2x1x8xf32> to vector<2x8xf32>
    %193 = vector.shape_cast %190 : vector<2x8xf32> to vector<2x1x8xf32>
    tpu.vector_store %arg10[%c0_100, %c2_101, %c0_102], %193 {strides = array<i32>} : memref<2x8x8xf32, #tpu.memory_space<vmem>>, vector<2x1x8xf32>,
    %c0_103 = arith.constant 0 : index
    %c3 = arith.constant 3 : index
    %c0_104 = arith.constant 0 : index
    %194 = vector.load %arg1[%c0_103, %c3, %c0_104] : memref<2x8x16xf32, #tpu.memory_space<vmem>>, vector<2x1x16xf32>
    %195 = vector.shape_cast %194 : vector<2x1x16xf32> to vector<2x16xf32>
    %c0_105 = arith.constant 0 : index
    %c0_106 = arith.constant 0 : index
    %196 = vector.load %arg11[%c0_105, %c0_106] : memref<2x32xf32, #tpu.memory_space<vmem>>, vector<2x32xf32>
    %c0_107 = arith.constant 0 : index
    %c0_108 = arith.constant 0 : index
    %197 = vector.load %arg12[%c0_107, %c0_108] : memref<2x32xf32, #tpu.memory_space<vmem>>, vector<2x32xf32>
    %cst_109 = arith.constant dense<0.000000e+00> : vector<2x128xf32>
    %198 = tpu.matmul %195, %3, %cst_109 {dimension_numbers = #tpu.dot_dimension_numbers<[1], [0], [0], [1], [0, 0, 1, 1], [], []>} : vector<2x16xf32>, vector<16x128xf32>, vector<2x128xf32> -> vector<2x128xf32>
    %cst_110 = arith.constant dense<0.000000e+00> : vector<2x128xf32>
    %199 = tpu.matmul %196, %5, %cst_110 {dimension_numbers = #tpu.dot_dimension_numbers<[1], [0], [0], [1], [0, 0, 1, 1], [], []>} : vector<2x32xf32>, vector<32x128xf32>, vector<2x128xf32> -> vector<2x128xf32>
    %200 = arith.addf %198, %199 : vector<2x128xf32>
    %201 = vector.broadcast %7 : vector<1x128xf32> to vector<2x128xf32>
    %202 = arith.addf %200, %201 : vector<2x128xf32>
    %203 = arith.negf %202 : vector<2x128xf32>
    %204 = math.exp %203 : vector<2x128xf32>
    %cst_111 = arith.constant 1.000000e+00 : f32
    %205 = vector.broadcast %cst_111 : f32 to vector<2x128xf32>
    %206 = arith.addf %205, %204 : vector<2x128xf32>
    %207 = arith.divf %205, %206 : vector<2x128xf32>
    %208 = vector.extract_strided_slice %207 {offsets = [0, 0], sizes = [2, 32], strides = [1, 1]} : vector<2x128xf32> to vector<2x32xf32>
    %209 = vector.extract_strided_slice %207 {offsets = [0, 32], sizes = [2, 32], strides = [1, 1]} : vector<2x128xf32> to vector<2x32xf32>
    %210 = vector.extract_strided_slice %207 {offsets = [0, 96], sizes = [2, 32], strides = [1, 1]} : vector<2x128xf32> to vector<2x32xf32>
    %211 = vector.extract_strided_slice %202 {offsets = [0, 64], sizes = [2, 32], strides = [1, 1]} : vector<2x128xf32> to vector<2x32xf32>
    %212 = math.tanh %211 : vector<2x32xf32>
    %213 = arith.mulf %209, %197 : vector<2x32xf32>
    %214 = arith.mulf %208, %212 : vector<2x32xf32>
    %215 = arith.addf %213, %214 : vector<2x32xf32>
    %216 = math.tanh %215 : vector<2x32xf32>
    %217 = arith.mulf %210, %216 : vector<2x32xf32>
    %c0_112 = arith.constant 0 : index
    %c0_113 = arith.constant 0 : index
    %218 = vector.load %arg11[%c0_112, %c0_113] : memref<2x32xf32, #tpu.memory_space<vmem>>, vector<2x32xf32>
    tpu.vector_store %arg11[%c0_112, %c0_113], %217 {strides = array<i32>} : memref<2x32xf32, #tpu.memory_space<vmem>>, vector<2x32xf32>,
    %c0_114 = arith.constant 0 : index
    %c0_115 = arith.constant 0 : index
    %219 = vector.load %arg12[%c0_114, %c0_115] : memref<2x32xf32, #tpu.memory_space<vmem>>, vector<2x32xf32>
    tpu.vector_store %arg12[%c0_114, %c0_115], %215 {strides = array<i32>} : memref<2x32xf32, #tpu.memory_space<vmem>>, vector<2x32xf32>,
    %c0_116 = arith.constant 0 : index
    %c0_117 = arith.constant 0 : index
    %220 = vector.load %arg13[%c0_116, %c0_117] : memref<2x32xf32, #tpu.memory_space<vmem>>, vector<2x32xf32>
    %c0_118 = arith.constant 0 : index
    %c0_119 = arith.constant 0 : index
    %221 = vector.load %arg14[%c0_118, %c0_119] : memref<2x32xf32, #tpu.memory_space<vmem>>, vector<2x32xf32>
    %cst_120 = arith.constant dense<0.000000e+00> : vector<2x128xf32>
    %222 = tpu.matmul %217, %4, %cst_120 {dimension_numbers = #tpu.dot_dimension_numbers<[1], [0], [0], [1], [0, 0, 1, 1], [], []>} : vector<2x32xf32>, vector<32x128xf32>, vector<2x128xf32> -> vector<2x128xf32>
    %cst_121 = arith.constant dense<0.000000e+00> : vector<2x128xf32>
    %223 = tpu.matmul %220, %6, %cst_121 {dimension_numbers = #tpu.dot_dimension_numbers<[1], [0], [0], [1], [0, 0, 1, 1], [], []>} : vector<2x32xf32>, vector<32x128xf32>, vector<2x128xf32> -> vector<2x128xf32>
    %224 = arith.addf %222, %223 : vector<2x128xf32>
    %225 = vector.broadcast %8 : vector<1x128xf32> to vector<2x128xf32>
    %226 = arith.addf %224, %225 : vector<2x128xf32>
    %227 = arith.negf %226 : vector<2x128xf32>
    %228 = math.exp %227 : vector<2x128xf32>
    %cst_122 = arith.constant 1.000000e+00 : f32
    %229 = vector.broadcast %cst_122 : f32 to vector<2x128xf32>
    %230 = arith.addf %229, %228 : vector<2x128xf32>
    %231 = arith.divf %229, %230 : vector<2x128xf32>
    %232 = vector.extract_strided_slice %231 {offsets = [0, 0], sizes = [2, 32], strides = [1, 1]} : vector<2x128xf32> to vector<2x32xf32>
    %233 = vector.extract_strided_slice %231 {offsets = [0, 32], sizes = [2, 32], strides = [1, 1]} : vector<2x128xf32> to vector<2x32xf32>
    %234 = vector.extract_strided_slice %231 {offsets = [0, 96], sizes = [2, 32], strides = [1, 1]} : vector<2x128xf32> to vector<2x32xf32>
    %235 = vector.extract_strided_slice %226 {offsets = [0, 64], sizes = [2, 32], strides = [1, 1]} : vector<2x128xf32> to vector<2x32xf32>
    %236 = math.tanh %235 : vector<2x32xf32>
    %237 = arith.mulf %233, %221 : vector<2x32xf32>
    %238 = arith.mulf %232, %236 : vector<2x32xf32>
    %239 = arith.addf %237, %238 : vector<2x32xf32>
    %240 = math.tanh %239 : vector<2x32xf32>
    %241 = arith.mulf %234, %240 : vector<2x32xf32>
    %c0_123 = arith.constant 0 : index
    %c0_124 = arith.constant 0 : index
    %242 = vector.load %arg13[%c0_123, %c0_124] : memref<2x32xf32, #tpu.memory_space<vmem>>, vector<2x32xf32>
    tpu.vector_store %arg13[%c0_123, %c0_124], %241 {strides = array<i32>} : memref<2x32xf32, #tpu.memory_space<vmem>>, vector<2x32xf32>,
    %c0_125 = arith.constant 0 : index
    %c0_126 = arith.constant 0 : index
    %243 = vector.load %arg14[%c0_125, %c0_126] : memref<2x32xf32, #tpu.memory_space<vmem>>, vector<2x32xf32>
    tpu.vector_store %arg14[%c0_125, %c0_126], %239 {strides = array<i32>} : memref<2x32xf32, #tpu.memory_space<vmem>>, vector<2x32xf32>,
    %cst_127 = arith.constant dense<0.000000e+00> : vector<2x8xf32>
    %244 = tpu.matmul %241, %9, %cst_127 {dimension_numbers = #tpu.dot_dimension_numbers<[1], [0], [0], [1], [0, 0, 1, 1], [], []>} : vector<2x32xf32>, vector<32x8xf32>, vector<2x8xf32> -> vector<2x8xf32>
    %245 = vector.broadcast %10 : vector<1x8xf32> to vector<2x8xf32>
    %246 = arith.addf %244, %245 : vector<2x8xf32>
    %247 = arith.negf %246 : vector<2x8xf32>
    %248 = math.exp %247 : vector<2x8xf32>
    %cst_128 = arith.constant 1.000000e+00 : f32
    %249 = vector.broadcast %cst_128 : f32 to vector<2x8xf32>
    %250 = arith.addf %249, %248 : vector<2x8xf32>
    %251 = arith.divf %249, %250 : vector<2x8xf32>
    %c0_129 = arith.constant 0 : index
    %c3_130 = arith.constant 3 : index
    %c0_131 = arith.constant 0 : index
    %252 = vector.load %arg10[%c0_129, %c3_130, %c0_131] : memref<2x8x8xf32, #tpu.memory_space<vmem>>, vector<2x1x8xf32>
    %253 = vector.shape_cast %252 : vector<2x1x8xf32> to vector<2x8xf32>
    %254 = vector.shape_cast %251 : vector<2x8xf32> to vector<2x1x8xf32>
    tpu.vector_store %arg10[%c0_129, %c3_130, %c0_131], %254 {strides = array<i32>} : memref<2x8x8xf32, #tpu.memory_space<vmem>>, vector<2x1x8xf32>,
    %c0_132 = arith.constant 0 : index
    %c4 = arith.constant 4 : index
    %c0_133 = arith.constant 0 : index
    %255 = vector.load %arg1[%c0_132, %c4, %c0_133] : memref<2x8x16xf32, #tpu.memory_space<vmem>>, vector<2x1x16xf32>
    %256 = vector.shape_cast %255 : vector<2x1x16xf32> to vector<2x16xf32>
    %c0_134 = arith.constant 0 : index
    %c0_135 = arith.constant 0 : index
    %257 = vector.load %arg11[%c0_134, %c0_135] : memref<2x32xf32, #tpu.memory_space<vmem>>, vector<2x32xf32>
    %c0_136 = arith.constant 0 : index
    %c0_137 = arith.constant 0 : index
    %258 = vector.load %arg12[%c0_136, %c0_137] : memref<2x32xf32, #tpu.memory_space<vmem>>, vector<2x32xf32>
    %cst_138 = arith.constant dense<0.000000e+00> : vector<2x128xf32>
    %259 = tpu.matmul %256, %3, %cst_138 {dimension_numbers = #tpu.dot_dimension_numbers<[1], [0], [0], [1], [0, 0, 1, 1], [], []>} : vector<2x16xf32>, vector<16x128xf32>, vector<2x128xf32> -> vector<2x128xf32>
    %cst_139 = arith.constant dense<0.000000e+00> : vector<2x128xf32>
    %260 = tpu.matmul %257, %5, %cst_139 {dimension_numbers = #tpu.dot_dimension_numbers<[1], [0], [0], [1], [0, 0, 1, 1], [], []>} : vector<2x32xf32>, vector<32x128xf32>, vector<2x128xf32> -> vector<2x128xf32>
    %261 = arith.addf %259, %260 : vector<2x128xf32>
    %262 = vector.broadcast %7 : vector<1x128xf32> to vector<2x128xf32>
    %263 = arith.addf %261, %262 : vector<2x128xf32>
    %264 = arith.negf %263 : vector<2x128xf32>
    %265 = math.exp %264 : vector<2x128xf32>
    %cst_140 = arith.constant 1.000000e+00 : f32
    %266 = vector.broadcast %cst_140 : f32 to vector<2x128xf32>
    %267 = arith.addf %266, %265 : vector<2x128xf32>
    %268 = arith.divf %266, %267 : vector<2x128xf32>
    %269 = vector.extract_strided_slice %268 {offsets = [0, 0], sizes = [2, 32], strides = [1, 1]} : vector<2x128xf32> to vector<2x32xf32>
    %270 = vector.extract_strided_slice %268 {offsets = [0, 32], sizes = [2, 32], strides = [1, 1]} : vector<2x128xf32> to vector<2x32xf32>
    %271 = vector.extract_strided_slice %268 {offsets = [0, 96], sizes = [2, 32], strides = [1, 1]} : vector<2x128xf32> to vector<2x32xf32>
    %272 = vector.extract_strided_slice %263 {offsets = [0, 64], sizes = [2, 32], strides = [1, 1]} : vector<2x128xf32> to vector<2x32xf32>
    %273 = math.tanh %272 : vector<2x32xf32>
    %274 = arith.mulf %270, %258 : vector<2x32xf32>
    %275 = arith.mulf %269, %273 : vector<2x32xf32>
    %276 = arith.addf %274, %275 : vector<2x32xf32>
    %277 = math.tanh %276 : vector<2x32xf32>
    %278 = arith.mulf %271, %277 : vector<2x32xf32>
    %c0_141 = arith.constant 0 : index
    %c0_142 = arith.constant 0 : index
    %279 = vector.load %arg11[%c0_141, %c0_142] : memref<2x32xf32, #tpu.memory_space<vmem>>, vector<2x32xf32>
    tpu.vector_store %arg11[%c0_141, %c0_142], %278 {strides = array<i32>} : memref<2x32xf32, #tpu.memory_space<vmem>>, vector<2x32xf32>,
    %c0_143 = arith.constant 0 : index
    %c0_144 = arith.constant 0 : index
    %280 = vector.load %arg12[%c0_143, %c0_144] : memref<2x32xf32, #tpu.memory_space<vmem>>, vector<2x32xf32>
    tpu.vector_store %arg12[%c0_143, %c0_144], %276 {strides = array<i32>} : memref<2x32xf32, #tpu.memory_space<vmem>>, vector<2x32xf32>,
    %c0_145 = arith.constant 0 : index
    %c0_146 = arith.constant 0 : index
    %281 = vector.load %arg13[%c0_145, %c0_146] : memref<2x32xf32, #tpu.memory_space<vmem>>, vector<2x32xf32>
    %c0_147 = arith.constant 0 : index
    %c0_148 = arith.constant 0 : index
    %282 = vector.load %arg14[%c0_147, %c0_148] : memref<2x32xf32, #tpu.memory_space<vmem>>, vector<2x32xf32>
    %cst_149 = arith.constant dense<0.000000e+00> : vector<2x128xf32>
    %283 = tpu.matmul %278, %4, %cst_149 {dimension_numbers = #tpu.dot_dimension_numbers<[1], [0], [0], [1], [0, 0, 1, 1], [], []>} : vector<2x32xf32>, vector<32x128xf32>, vector<2x128xf32> -> vector<2x128xf32>
    %cst_150 = arith.constant dense<0.000000e+00> : vector<2x128xf32>
    %284 = tpu.matmul %281, %6, %cst_150 {dimension_numbers = #tpu.dot_dimension_numbers<[1], [0], [0], [1], [0, 0, 1, 1], [], []>} : vector<2x32xf32>, vector<32x128xf32>, vector<2x128xf32> -> vector<2x128xf32>
    %285 = arith.addf %283, %284 : vector<2x128xf32>
    %286 = vector.broadcast %8 : vector<1x128xf32> to vector<2x128xf32>
    %287 = arith.addf %285, %286 : vector<2x128xf32>
    %288 = arith.negf %287 : vector<2x128xf32>
    %289 = math.exp %288 : vector<2x128xf32>
    %cst_151 = arith.constant 1.000000e+00 : f32
    %290 = vector.broadcast %cst_151 : f32 to vector<2x128xf32>
    %291 = arith.addf %290, %289 : vector<2x128xf32>
    %292 = arith.divf %290, %291 : vector<2x128xf32>
    %293 = vector.extract_strided_slice %292 {offsets = [0, 0], sizes = [2, 32], strides = [1, 1]} : vector<2x128xf32> to vector<2x32xf32>
    %294 = vector.extract_strided_slice %292 {offsets = [0, 32], sizes = [2, 32], strides = [1, 1]} : vector<2x128xf32> to vector<2x32xf32>
    %295 = vector.extract_strided_slice %292 {offsets = [0, 96], sizes = [2, 32], strides = [1, 1]} : vector<2x128xf32> to vector<2x32xf32>
    %296 = vector.extract_strided_slice %287 {offsets = [0, 64], sizes = [2, 32], strides = [1, 1]} : vector<2x128xf32> to vector<2x32xf32>
    %297 = math.tanh %296 : vector<2x32xf32>
    %298 = arith.mulf %294, %282 : vector<2x32xf32>
    %299 = arith.mulf %293, %297 : vector<2x32xf32>
    %300 = arith.addf %298, %299 : vector<2x32xf32>
    %301 = math.tanh %300 : vector<2x32xf32>
    %302 = arith.mulf %295, %301 : vector<2x32xf32>
    %c0_152 = arith.constant 0 : index
    %c0_153 = arith.constant 0 : index
    %303 = vector.load %arg13[%c0_152, %c0_153] : memref<2x32xf32, #tpu.memory_space<vmem>>, vector<2x32xf32>
    tpu.vector_store %arg13[%c0_152, %c0_153], %302 {strides = array<i32>} : memref<2x32xf32, #tpu.memory_space<vmem>>, vector<2x32xf32>,
    %c0_154 = arith.constant 0 : index
    %c0_155 = arith.constant 0 : index
    %304 = vector.load %arg14[%c0_154, %c0_155] : memref<2x32xf32, #tpu.memory_space<vmem>>, vector<2x32xf32>
    tpu.vector_store %arg14[%c0_154, %c0_155], %300 {strides = array<i32>} : memref<2x32xf32, #tpu.memory_space<vmem>>, vector<2x32xf32>,
    %cst_156 = arith.constant dense<0.000000e+00> : vector<2x8xf32>
    %305 = tpu.matmul %302, %9, %cst_156 {dimension_numbers = #tpu.dot_dimension_numbers<[1], [0], [0], [1], [0, 0, 1, 1], [], []>} : vector<2x32xf32>, vector<32x8xf32>, vector<2x8xf32> -> vector<2x8xf32>
    %306 = vector.broadcast %10 : vector<1x8xf32> to vector<2x8xf32>
    %307 = arith.addf %305, %306 : vector<2x8xf32>
    %308 = arith.negf %307 : vector<2x8xf32>
    %309 = math.exp %308 : vector<2x8xf32>
    %cst_157 = arith.constant 1.000000e+00 : f32
    %310 = vector.broadcast %cst_157 : f32 to vector<2x8xf32>
    %311 = arith.addf %310, %309 : vector<2x8xf32>
    %312 = arith.divf %310, %311 : vector<2x8xf32>
    %c0_158 = arith.constant 0 : index
    %c4_159 = arith.constant 4 : index
    %c0_160 = arith.constant 0 : index
    %313 = vector.load %arg10[%c0_158, %c4_159, %c0_160] : memref<2x8x8xf32, #tpu.memory_space<vmem>>, vector<2x1x8xf32>
    %314 = vector.shape_cast %313 : vector<2x1x8xf32> to vector<2x8xf32>
    %315 = vector.shape_cast %312 : vector<2x8xf32> to vector<2x1x8xf32>
    tpu.vector_store %arg10[%c0_158, %c4_159, %c0_160], %315 {strides = array<i32>} : memref<2x8x8xf32, #tpu.memory_space<vmem>>, vector<2x1x8xf32>,
    %c0_161 = arith.constant 0 : index
    %c5 = arith.constant 5 : index
    %c0_162 = arith.constant 0 : index
    %316 = vector.load %arg1[%c0_161, %c5, %c0_162] : memref<2x8x16xf32, #tpu.memory_space<vmem>>, vector<2x1x16xf32>
    %317 = vector.shape_cast %316 : vector<2x1x16xf32> to vector<2x16xf32>
    %c0_163 = arith.constant 0 : index
    %c0_164 = arith.constant 0 : index
    %318 = vector.load %arg11[%c0_163, %c0_164] : memref<2x32xf32, #tpu.memory_space<vmem>>, vector<2x32xf32>
    %c0_165 = arith.constant 0 : index
    %c0_166 = arith.constant 0 : index
    %319 = vector.load %arg12[%c0_165, %c0_166] : memref<2x32xf32, #tpu.memory_space<vmem>>, vector<2x32xf32>
    %cst_167 = arith.constant dense<0.000000e+00> : vector<2x128xf32>
    %320 = tpu.matmul %317, %3, %cst_167 {dimension_numbers = #tpu.dot_dimension_numbers<[1], [0], [0], [1], [0, 0, 1, 1], [], []>} : vector<2x16xf32>, vector<16x128xf32>, vector<2x128xf32> -> vector<2x128xf32>
    %cst_168 = arith.constant dense<0.000000e+00> : vector<2x128xf32>
    %321 = tpu.matmul %318, %5, %cst_168 {dimension_numbers = #tpu.dot_dimension_numbers<[1], [0], [0], [1], [0, 0, 1, 1], [], []>} : vector<2x32xf32>, vector<32x128xf32>, vector<2x128xf32> -> vector<2x128xf32>
    %322 = arith.addf %320, %321 : vector<2x128xf32>
    %323 = vector.broadcast %7 : vector<1x128xf32> to vector<2x128xf32>
    %324 = arith.addf %322, %323 : vector<2x128xf32>
    %325 = arith.negf %324 : vector<2x128xf32>
    %326 = math.exp %325 : vector<2x128xf32>
    %cst_169 = arith.constant 1.000000e+00 : f32
    %327 = vector.broadcast %cst_169 : f32 to vector<2x128xf32>
    %328 = arith.addf %327, %326 : vector<2x128xf32>
    %329 = arith.divf %327, %328 : vector<2x128xf32>
    %330 = vector.extract_strided_slice %329 {offsets = [0, 0], sizes = [2, 32], strides = [1, 1]} : vector<2x128xf32> to vector<2x32xf32>
    %331 = vector.extract_strided_slice %329 {offsets = [0, 32], sizes = [2, 32], strides = [1, 1]} : vector<2x128xf32> to vector<2x32xf32>
    %332 = vector.extract_strided_slice %329 {offsets = [0, 96], sizes = [2, 32], strides = [1, 1]} : vector<2x128xf32> to vector<2x32xf32>
    %333 = vector.extract_strided_slice %324 {offsets = [0, 64], sizes = [2, 32], strides = [1, 1]} : vector<2x128xf32> to vector<2x32xf32>
    %334 = math.tanh %333 : vector<2x32xf32>
    %335 = arith.mulf %331, %319 : vector<2x32xf32>
    %336 = arith.mulf %330, %334 : vector<2x32xf32>
    %337 = arith.addf %335, %336 : vector<2x32xf32>
    %338 = math.tanh %337 : vector<2x32xf32>
    %339 = arith.mulf %332, %338 : vector<2x32xf32>
    %c0_170 = arith.constant 0 : index
    %c0_171 = arith.constant 0 : index
    %340 = vector.load %arg11[%c0_170, %c0_171] : memref<2x32xf32, #tpu.memory_space<vmem>>, vector<2x32xf32>
    tpu.vector_store %arg11[%c0_170, %c0_171], %339 {strides = array<i32>} : memref<2x32xf32, #tpu.memory_space<vmem>>, vector<2x32xf32>,
    %c0_172 = arith.constant 0 : index
    %c0_173 = arith.constant 0 : index
    %341 = vector.load %arg12[%c0_172, %c0_173] : memref<2x32xf32, #tpu.memory_space<vmem>>, vector<2x32xf32>
    tpu.vector_store %arg12[%c0_172, %c0_173], %337 {strides = array<i32>} : memref<2x32xf32, #tpu.memory_space<vmem>>, vector<2x32xf32>,
    %c0_174 = arith.constant 0 : index
    %c0_175 = arith.constant 0 : index
    %342 = vector.load %arg13[%c0_174, %c0_175] : memref<2x32xf32, #tpu.memory_space<vmem>>, vector<2x32xf32>
    %c0_176 = arith.constant 0 : index
    %c0_177 = arith.constant 0 : index
    %343 = vector.load %arg14[%c0_176, %c0_177] : memref<2x32xf32, #tpu.memory_space<vmem>>, vector<2x32xf32>
    %cst_178 = arith.constant dense<0.000000e+00> : vector<2x128xf32>
    %344 = tpu.matmul %339, %4, %cst_178 {dimension_numbers = #tpu.dot_dimension_numbers<[1], [0], [0], [1], [0, 0, 1, 1], [], []>} : vector<2x32xf32>, vector<32x128xf32>, vector<2x128xf32> -> vector<2x128xf32>
    %cst_179 = arith.constant dense<0.000000e+00> : vector<2x128xf32>
    %345 = tpu.matmul %342, %6, %cst_179 {dimension_numbers = #tpu.dot_dimension_numbers<[1], [0], [0], [1], [0, 0, 1, 1], [], []>} : vector<2x32xf32>, vector<32x128xf32>, vector<2x128xf32> -> vector<2x128xf32>
    %346 = arith.addf %344, %345 : vector<2x128xf32>
    %347 = vector.broadcast %8 : vector<1x128xf32> to vector<2x128xf32>
    %348 = arith.addf %346, %347 : vector<2x128xf32>
    %349 = arith.negf %348 : vector<2x128xf32>
    %350 = math.exp %349 : vector<2x128xf32>
    %cst_180 = arith.constant 1.000000e+00 : f32
    %351 = vector.broadcast %cst_180 : f32 to vector<2x128xf32>
    %352 = arith.addf %351, %350 : vector<2x128xf32>
    %353 = arith.divf %351, %352 : vector<2x128xf32>
    %354 = vector.extract_strided_slice %353 {offsets = [0, 0], sizes = [2, 32], strides = [1, 1]} : vector<2x128xf32> to vector<2x32xf32>
    %355 = vector.extract_strided_slice %353 {offsets = [0, 32], sizes = [2, 32], strides = [1, 1]} : vector<2x128xf32> to vector<2x32xf32>
    %356 = vector.extract_strided_slice %353 {offsets = [0, 96], sizes = [2, 32], strides = [1, 1]} : vector<2x128xf32> to vector<2x32xf32>
    %357 = vector.extract_strided_slice %348 {offsets = [0, 64], sizes = [2, 32], strides = [1, 1]} : vector<2x128xf32> to vector<2x32xf32>
    %358 = math.tanh %357 : vector<2x32xf32>
    %359 = arith.mulf %355, %343 : vector<2x32xf32>
    %360 = arith.mulf %354, %358 : vector<2x32xf32>
    %361 = arith.addf %359, %360 : vector<2x32xf32>
    %362 = math.tanh %361 : vector<2x32xf32>
    %363 = arith.mulf %356, %362 : vector<2x32xf32>
    %c0_181 = arith.constant 0 : index
    %c0_182 = arith.constant 0 : index
    %364 = vector.load %arg13[%c0_181, %c0_182] : memref<2x32xf32, #tpu.memory_space<vmem>>, vector<2x32xf32>
    tpu.vector_store %arg13[%c0_181, %c0_182], %363 {strides = array<i32>} : memref<2x32xf32, #tpu.memory_space<vmem>>, vector<2x32xf32>,
    %c0_183 = arith.constant 0 : index
    %c0_184 = arith.constant 0 : index
    %365 = vector.load %arg14[%c0_183, %c0_184] : memref<2x32xf32, #tpu.memory_space<vmem>>, vector<2x32xf32>
    tpu.vector_store %arg14[%c0_183, %c0_184], %361 {strides = array<i32>} : memref<2x32xf32, #tpu.memory_space<vmem>>, vector<2x32xf32>,
    %cst_185 = arith.constant dense<0.000000e+00> : vector<2x8xf32>
    %366 = tpu.matmul %363, %9, %cst_185 {dimension_numbers = #tpu.dot_dimension_numbers<[1], [0], [0], [1], [0, 0, 1, 1], [], []>} : vector<2x32xf32>, vector<32x8xf32>, vector<2x8xf32> -> vector<2x8xf32>
    %367 = vector.broadcast %10 : vector<1x8xf32> to vector<2x8xf32>
    %368 = arith.addf %366, %367 : vector<2x8xf32>
    %369 = arith.negf %368 : vector<2x8xf32>
    %370 = math.exp %369 : vector<2x8xf32>
    %cst_186 = arith.constant 1.000000e+00 : f32
    %371 = vector.broadcast %cst_186 : f32 to vector<2x8xf32>
    %372 = arith.addf %371, %370 : vector<2x8xf32>
    %373 = arith.divf %371, %372 : vector<2x8xf32>
    %c0_187 = arith.constant 0 : index
    %c5_188 = arith.constant 5 : index
    %c0_189 = arith.constant 0 : index
    %374 = vector.load %arg10[%c0_187, %c5_188, %c0_189] : memref<2x8x8xf32, #tpu.memory_space<vmem>>, vector<2x1x8xf32>
    %375 = vector.shape_cast %374 : vector<2x1x8xf32> to vector<2x8xf32>
    %376 = vector.shape_cast %373 : vector<2x8xf32> to vector<2x1x8xf32>
    tpu.vector_store %arg10[%c0_187, %c5_188, %c0_189], %376 {strides = array<i32>} : memref<2x8x8xf32, #tpu.memory_space<vmem>>, vector<2x1x8xf32>,
    %c0_190 = arith.constant 0 : index
    %c6 = arith.constant 6 : index
    %c0_191 = arith.constant 0 : index
    %377 = vector.load %arg1[%c0_190, %c6, %c0_191] : memref<2x8x16xf32, #tpu.memory_space<vmem>>, vector<2x1x16xf32>
    %378 = vector.shape_cast %377 : vector<2x1x16xf32> to vector<2x16xf32>
    %c0_192 = arith.constant 0 : index
    %c0_193 = arith.constant 0 : index
    %379 = vector.load %arg11[%c0_192, %c0_193] : memref<2x32xf32, #tpu.memory_space<vmem>>, vector<2x32xf32>
    %c0_194 = arith.constant 0 : index
    %c0_195 = arith.constant 0 : index
    %380 = vector.load %arg12[%c0_194, %c0_195] : memref<2x32xf32, #tpu.memory_space<vmem>>, vector<2x32xf32>
    %cst_196 = arith.constant dense<0.000000e+00> : vector<2x128xf32>
    %381 = tpu.matmul %378, %3, %cst_196 {dimension_numbers = #tpu.dot_dimension_numbers<[1], [0], [0], [1], [0, 0, 1, 1], [], []>} : vector<2x16xf32>, vector<16x128xf32>, vector<2x128xf32> -> vector<2x128xf32>
    %cst_197 = arith.constant dense<0.000000e+00> : vector<2x128xf32>
    %382 = tpu.matmul %379, %5, %cst_197 {dimension_numbers = #tpu.dot_dimension_numbers<[1], [0], [0], [1], [0, 0, 1, 1], [], []>} : vector<2x32xf32>, vector<32x128xf32>, vector<2x128xf32> -> vector<2x128xf32>
    %383 = arith.addf %381, %382 : vector<2x128xf32>
    %384 = vector.broadcast %7 : vector<1x128xf32> to vector<2x128xf32>
    %385 = arith.addf %383, %384 : vector<2x128xf32>
    %386 = arith.negf %385 : vector<2x128xf32>
    %387 = math.exp %386 : vector<2x128xf32>
    %cst_198 = arith.constant 1.000000e+00 : f32
    %388 = vector.broadcast %cst_198 : f32 to vector<2x128xf32>
    %389 = arith.addf %388, %387 : vector<2x128xf32>
    %390 = arith.divf %388, %389 : vector<2x128xf32>
    %391 = vector.extract_strided_slice %390 {offsets = [0, 0], sizes = [2, 32], strides = [1, 1]} : vector<2x128xf32> to vector<2x32xf32>
    %392 = vector.extract_strided_slice %390 {offsets = [0, 32], sizes = [2, 32], strides = [1, 1]} : vector<2x128xf32> to vector<2x32xf32>
    %393 = vector.extract_strided_slice %390 {offsets = [0, 96], sizes = [2, 32], strides = [1, 1]} : vector<2x128xf32> to vector<2x32xf32>
    %394 = vector.extract_strided_slice %385 {offsets = [0, 64], sizes = [2, 32], strides = [1, 1]} : vector<2x128xf32> to vector<2x32xf32>
    %395 = math.tanh %394 : vector<2x32xf32>
    %396 = arith.mulf %392, %380 : vector<2x32xf32>
    %397 = arith.mulf %391, %395 : vector<2x32xf32>
    %398 = arith.addf %396, %397 : vector<2x32xf32>
    %399 = math.tanh %398 : vector<2x32xf32>
    %400 = arith.mulf %393, %399 : vector<2x32xf32>
    %c0_199 = arith.constant 0 : index
    %c0_200 = arith.constant 0 : index
    %401 = vector.load %arg11[%c0_199, %c0_200] : memref<2x32xf32, #tpu.memory_space<vmem>>, vector<2x32xf32>
    tpu.vector_store %arg11[%c0_199, %c0_200], %400 {strides = array<i32>} : memref<2x32xf32, #tpu.memory_space<vmem>>, vector<2x32xf32>,
    %c0_201 = arith.constant 0 : index
    %c0_202 = arith.constant 0 : index
    %402 = vector.load %arg12[%c0_201, %c0_202] : memref<2x32xf32, #tpu.memory_space<vmem>>, vector<2x32xf32>
    tpu.vector_store %arg12[%c0_201, %c0_202], %398 {strides = array<i32>} : memref<2x32xf32, #tpu.memory_space<vmem>>, vector<2x32xf32>,
    %c0_203 = arith.constant 0 : index
    %c0_204 = arith.constant 0 : index
    %403 = vector.load %arg13[%c0_203, %c0_204] : memref<2x32xf32, #tpu.memory_space<vmem>>, vector<2x32xf32>
    %c0_205 = arith.constant 0 : index
    %c0_206 = arith.constant 0 : index
    %404 = vector.load %arg14[%c0_205, %c0_206] : memref<2x32xf32, #tpu.memory_space<vmem>>, vector<2x32xf32>
    %cst_207 = arith.constant dense<0.000000e+00> : vector<2x128xf32>
    %405 = tpu.matmul %400, %4, %cst_207 {dimension_numbers = #tpu.dot_dimension_numbers<[1], [0], [0], [1], [0, 0, 1, 1], [], []>} : vector<2x32xf32>, vector<32x128xf32>, vector<2x128xf32> -> vector<2x128xf32>
    %cst_208 = arith.constant dense<0.000000e+00> : vector<2x128xf32>
    %406 = tpu.matmul %403, %6, %cst_208 {dimension_numbers = #tpu.dot_dimension_numbers<[1], [0], [0], [1], [0, 0, 1, 1], [], []>} : vector<2x32xf32>, vector<32x128xf32>, vector<2x128xf32> -> vector<2x128xf32>
    %407 = arith.addf %405, %406 : vector<2x128xf32>
    %408 = vector.broadcast %8 : vector<1x128xf32> to vector<2x128xf32>
    %409 = arith.addf %407, %408 : vector<2x128xf32>
    %410 = arith.negf %409 : vector<2x128xf32>
    %411 = math.exp %410 : vector<2x128xf32>
    %cst_209 = arith.constant 1.000000e+00 : f32
    %412 = vector.broadcast %cst_209 : f32 to vector<2x128xf32>
    %413 = arith.addf %412, %411 : vector<2x128xf32>
    %414 = arith.divf %412, %413 : vector<2x128xf32>
    %415 = vector.extract_strided_slice %414 {offsets = [0, 0], sizes = [2, 32], strides = [1, 1]} : vector<2x128xf32> to vector<2x32xf32>
    %416 = vector.extract_strided_slice %414 {offsets = [0, 32], sizes = [2, 32], strides = [1, 1]} : vector<2x128xf32> to vector<2x32xf32>
    %417 = vector.extract_strided_slice %414 {offsets = [0, 96], sizes = [2, 32], strides = [1, 1]} : vector<2x128xf32> to vector<2x32xf32>
    %418 = vector.extract_strided_slice %409 {offsets = [0, 64], sizes = [2, 32], strides = [1, 1]} : vector<2x128xf32> to vector<2x32xf32>
    %419 = math.tanh %418 : vector<2x32xf32>
    %420 = arith.mulf %416, %404 : vector<2x32xf32>
    %421 = arith.mulf %415, %419 : vector<2x32xf32>
    %422 = arith.addf %420, %421 : vector<2x32xf32>
    %423 = math.tanh %422 : vector<2x32xf32>
    %424 = arith.mulf %417, %423 : vector<2x32xf32>
    %c0_210 = arith.constant 0 : index
    %c0_211 = arith.constant 0 : index
    %425 = vector.load %arg13[%c0_210, %c0_211] : memref<2x32xf32, #tpu.memory_space<vmem>>, vector<2x32xf32>
    tpu.vector_store %arg13[%c0_210, %c0_211], %424 {strides = array<i32>} : memref<2x32xf32, #tpu.memory_space<vmem>>, vector<2x32xf32>,
    %c0_212 = arith.constant 0 : index
    %c0_213 = arith.constant 0 : index
    %426 = vector.load %arg14[%c0_212, %c0_213] : memref<2x32xf32, #tpu.memory_space<vmem>>, vector<2x32xf32>
    tpu.vector_store %arg14[%c0_212, %c0_213], %422 {strides = array<i32>} : memref<2x32xf32, #tpu.memory_space<vmem>>, vector<2x32xf32>,
    %cst_214 = arith.constant dense<0.000000e+00> : vector<2x8xf32>
    %427 = tpu.matmul %424, %9, %cst_214 {dimension_numbers = #tpu.dot_dimension_numbers<[1], [0], [0], [1], [0, 0, 1, 1], [], []>} : vector<2x32xf32>, vector<32x8xf32>, vector<2x8xf32> -> vector<2x8xf32>
    %428 = vector.broadcast %10 : vector<1x8xf32> to vector<2x8xf32>
    %429 = arith.addf %427, %428 : vector<2x8xf32>
    %430 = arith.negf %429 : vector<2x8xf32>
    %431 = math.exp %430 : vector<2x8xf32>
    %cst_215 = arith.constant 1.000000e+00 : f32
    %432 = vector.broadcast %cst_215 : f32 to vector<2x8xf32>
    %433 = arith.addf %432, %431 : vector<2x8xf32>
    %434 = arith.divf %432, %433 : vector<2x8xf32>
    %c0_216 = arith.constant 0 : index
    %c6_217 = arith.constant 6 : index
    %c0_218 = arith.constant 0 : index
    %435 = vector.load %arg10[%c0_216, %c6_217, %c0_218] : memref<2x8x8xf32, #tpu.memory_space<vmem>>, vector<2x1x8xf32>
    %436 = vector.shape_cast %435 : vector<2x1x8xf32> to vector<2x8xf32>
    %437 = vector.shape_cast %434 : vector<2x8xf32> to vector<2x1x8xf32>
    tpu.vector_store %arg10[%c0_216, %c6_217, %c0_218], %437 {strides = array<i32>} : memref<2x8x8xf32, #tpu.memory_space<vmem>>, vector<2x1x8xf32>,
    %c0_219 = arith.constant 0 : index
    %c7 = arith.constant 7 : index
    %c0_220 = arith.constant 0 : index
    %438 = vector.load %arg1[%c0_219, %c7, %c0_220] : memref<2x8x16xf32, #tpu.memory_space<vmem>>, vector<2x1x16xf32>
    %439 = vector.shape_cast %438 : vector<2x1x16xf32> to vector<2x16xf32>
    %c0_221 = arith.constant 0 : index
    %c0_222 = arith.constant 0 : index
    %440 = vector.load %arg11[%c0_221, %c0_222] : memref<2x32xf32, #tpu.memory_space<vmem>>, vector<2x32xf32>
    %c0_223 = arith.constant 0 : index
    %c0_224 = arith.constant 0 : index
    %441 = vector.load %arg12[%c0_223, %c0_224] : memref<2x32xf32, #tpu.memory_space<vmem>>, vector<2x32xf32>
    %cst_225 = arith.constant dense<0.000000e+00> : vector<2x128xf32>
    %442 = tpu.matmul %439, %3, %cst_225 {dimension_numbers = #tpu.dot_dimension_numbers<[1], [0], [0], [1], [0, 0, 1, 1], [], []>} : vector<2x16xf32>, vector<16x128xf32>, vector<2x128xf32> -> vector<2x128xf32>
    %cst_226 = arith.constant dense<0.000000e+00> : vector<2x128xf32>
    %443 = tpu.matmul %440, %5, %cst_226 {dimension_numbers = #tpu.dot_dimension_numbers<[1], [0], [0], [1], [0, 0, 1, 1], [], []>} : vector<2x32xf32>, vector<32x128xf32>, vector<2x128xf32> -> vector<2x128xf32>
    %444 = arith.addf %442, %443 : vector<2x128xf32>
    %445 = vector.broadcast %7 : vector<1x128xf32> to vector<2x128xf32>
    %446 = arith.addf %444, %445 : vector<2x128xf32>
    %447 = arith.negf %446 : vector<2x128xf32>
    %448 = math.exp %447 : vector<2x128xf32>
    %cst_227 = arith.constant 1.000000e+00 : f32
    %449 = vector.broadcast %cst_227 : f32 to vector<2x128xf32>
    %450 = arith.addf %449, %448 : vector<2x128xf32>
    %451 = arith.divf %449, %450 : vector<2x128xf32>
    %452 = vector.extract_strided_slice %451 {offsets = [0, 0], sizes = [2, 32], strides = [1, 1]} : vector<2x128xf32> to vector<2x32xf32>
    %453 = vector.extract_strided_slice %451 {offsets = [0, 32], sizes = [2, 32], strides = [1, 1]} : vector<2x128xf32> to vector<2x32xf32>
    %454 = vector.extract_strided_slice %451 {offsets = [0, 96], sizes = [2, 32], strides = [1, 1]} : vector<2x128xf32> to vector<2x32xf32>
    %455 = vector.extract_strided_slice %446 {offsets = [0, 64], sizes = [2, 32], strides = [1, 1]} : vector<2x128xf32> to vector<2x32xf32>
    %456 = math.tanh %455 : vector<2x32xf32>
    %457 = arith.mulf %453, %441 : vector<2x32xf32>
    %458 = arith.mulf %452, %456 : vector<2x32xf32>
    %459 = arith.addf %457, %458 : vector<2x32xf32>
    %460 = math.tanh %459 : vector<2x32xf32>
    %461 = arith.mulf %454, %460 : vector<2x32xf32>
    %c0_228 = arith.constant 0 : index
    %c0_229 = arith.constant 0 : index
    %462 = vector.load %arg11[%c0_228, %c0_229] : memref<2x32xf32, #tpu.memory_space<vmem>>, vector<2x32xf32>
    tpu.vector_store %arg11[%c0_228, %c0_229], %461 {strides = array<i32>} : memref<2x32xf32, #tpu.memory_space<vmem>>, vector<2x32xf32>,
    %c0_230 = arith.constant 0 : index
    %c0_231 = arith.constant 0 : index
    %463 = vector.load %arg12[%c0_230, %c0_231] : memref<2x32xf32, #tpu.memory_space<vmem>>, vector<2x32xf32>
    tpu.vector_store %arg12[%c0_230, %c0_231], %459 {strides = array<i32>} : memref<2x32xf32, #tpu.memory_space<vmem>>, vector<2x32xf32>,
    %c0_232 = arith.constant 0 : index
    %c0_233 = arith.constant 0 : index
    %464 = vector.load %arg13[%c0_232, %c0_233] : memref<2x32xf32, #tpu.memory_space<vmem>>, vector<2x32xf32>
    %c0_234 = arith.constant 0 : index
    %c0_235 = arith.constant 0 : index
    %465 = vector.load %arg14[%c0_234, %c0_235] : memref<2x32xf32, #tpu.memory_space<vmem>>, vector<2x32xf32>
    %cst_236 = arith.constant dense<0.000000e+00> : vector<2x128xf32>
    %466 = tpu.matmul %461, %4, %cst_236 {dimension_numbers = #tpu.dot_dimension_numbers<[1], [0], [0], [1], [0, 0, 1, 1], [], []>} : vector<2x32xf32>, vector<32x128xf32>, vector<2x128xf32> -> vector<2x128xf32>
    %cst_237 = arith.constant dense<0.000000e+00> : vector<2x128xf32>
    %467 = tpu.matmul %464, %6, %cst_237 {dimension_numbers = #tpu.dot_dimension_numbers<[1], [0], [0], [1], [0, 0, 1, 1], [], []>} : vector<2x32xf32>, vector<32x128xf32>, vector<2x128xf32> -> vector<2x128xf32>
    %468 = arith.addf %466, %467 : vector<2x128xf32>
    %469 = vector.broadcast %8 : vector<1x128xf32> to vector<2x128xf32>
    %470 = arith.addf %468, %469 : vector<2x128xf32>
    %471 = arith.negf %470 : vector<2x128xf32>
    %472 = math.exp %471 : vector<2x128xf32>
    %cst_238 = arith.constant 1.000000e+00 : f32
    %473 = vector.broadcast %cst_238 : f32 to vector<2x128xf32>
    %474 = arith.addf %473, %472 : vector<2x128xf32>
    %475 = arith.divf %473, %474 : vector<2x128xf32>
    %476 = vector.extract_strided_slice %475 {offsets = [0, 0], sizes = [2, 32], strides = [1, 1]} : vector<2x128xf32> to vector<2x32xf32>
    %477 = vector.extract_strided_slice %475 {offsets = [0, 32], sizes = [2, 32], strides = [1, 1]} : vector<2x128xf32> to vector<2x32xf32>
    %478 = vector.extract_strided_slice %475 {offsets = [0, 96], sizes = [2, 32], strides = [1, 1]} : vector<2x128xf32> to vector<2x32xf32>
    %479 = vector.extract_strided_slice %470 {offsets = [0, 64], sizes = [2, 32], strides = [1, 1]} : vector<2x128xf32> to vector<2x32xf32>
    %480 = math.tanh %479 : vector<2x32xf32>
    %481 = arith.mulf %477, %465 : vector<2x32xf32>
    %482 = arith.mulf %476, %480 : vector<2x32xf32>
    %483 = arith.addf %481, %482 : vector<2x32xf32>
    %484 = math.tanh %483 : vector<2x32xf32>
    %485 = arith.mulf %478, %484 : vector<2x32xf32>
    %c0_239 = arith.constant 0 : index
    %c0_240 = arith.constant 0 : index
    %486 = vector.load %arg13[%c0_239, %c0_240] : memref<2x32xf32, #tpu.memory_space<vmem>>, vector<2x32xf32>
    tpu.vector_store %arg13[%c0_239, %c0_240], %485 {strides = array<i32>} : memref<2x32xf32, #tpu.memory_space<vmem>>, vector<2x32xf32>,
    %c0_241 = arith.constant 0 : index
    %c0_242 = arith.constant 0 : index
    %487 = vector.load %arg14[%c0_241, %c0_242] : memref<2x32xf32, #tpu.memory_space<vmem>>, vector<2x32xf32>
    tpu.vector_store %arg14[%c0_241, %c0_242], %483 {strides = array<i32>} : memref<2x32xf32, #tpu.memory_space<vmem>>, vector<2x32xf32>,
    %cst_243 = arith.constant dense<0.000000e+00> : vector<2x8xf32>
    %488 = tpu.matmul %485, %9, %cst_243 {dimension_numbers = #tpu.dot_dimension_numbers<[1], [0], [0], [1], [0, 0, 1, 1], [], []>} : vector<2x32xf32>, vector<32x8xf32>, vector<2x8xf32> -> vector<2x8xf32>
    %489 = vector.broadcast %10 : vector<1x8xf32> to vector<2x8xf32>
    %490 = arith.addf %488, %489 : vector<2x8xf32>
    %491 = arith.negf %490 : vector<2x8xf32>
    %492 = math.exp %491 : vector<2x8xf32>
    %cst_244 = arith.constant 1.000000e+00 : f32
    %493 = vector.broadcast %cst_244 : f32 to vector<2x8xf32>
    %494 = arith.addf %493, %492 : vector<2x8xf32>
    %495 = arith.divf %493, %494 : vector<2x8xf32>
    %c0_245 = arith.constant 0 : index
    %c7_246 = arith.constant 7 : index
    %c0_247 = arith.constant 0 : index
    %496 = vector.load %arg10[%c0_245, %c7_246, %c0_247] : memref<2x8x8xf32, #tpu.memory_space<vmem>>, vector<2x1x8xf32>
    %497 = vector.shape_cast %496 : vector<2x1x8xf32> to vector<2x8xf32>
    %498 = vector.shape_cast %495 : vector<2x8xf32> to vector<2x1x8xf32>
    tpu.vector_store %arg10[%c0_245, %c7_246, %c0_247], %498 {strides = array<i32>} : memref<2x8x8xf32, #tpu.memory_space<vmem>>, vector<2x1x8xf32>,
    return
  }
  func.func @transform_0(%arg0: i32) -> (i32, i32, i32) {
    %c0_i32 = arith.constant 0 : i32
    %c0_i32_0 = arith.constant 0 : i32
    %c0_i32_1 = arith.constant 0 : i32
    return %c0_i32, %arg0, %c0_i32_0 : i32, i32, i32
  }
  func.func @transform_1(%arg0: i32) -> (i32, i32) {
    %c0_i32 = arith.constant 0 : i32
    %c0_i32_0 = arith.constant 0 : i32
    %c0_i32_1 = arith.constant 0 : i32
    return %c0_i32, %c0_i32_0 : i32, i32
  }
  func.func @transform_2(%arg0: i32) -> (i32, i32) {
    %c0_i32 = arith.constant 0 : i32
    %c0_i32_0 = arith.constant 0 : i32
    %c0_i32_1 = arith.constant 0 : i32
    return %c0_i32, %c0_i32_0 : i32, i32
  }
  func.func @transform_3(%arg0: i32) -> (i32, i32) {
    %c0_i32 = arith.constant 0 : i32
    %c0_i32_0 = arith.constant 0 : i32
    %c0_i32_1 = arith.constant 0 : i32
    return %c0_i32, %c0_i32_0 : i32, i32
  }
  func.func @transform_4(%arg0: i32) -> (i32, i32) {
    %c0_i32 = arith.constant 0 : i32
    %c0_i32_0 = arith.constant 0 : i32
    %c0_i32_1 = arith.constant 0 : i32
    return %c0_i32, %c0_i32_0 : i32, i32
  }
  func.func @transform_5(%arg0: i32) -> (i32, i32) {
    %c0_i32 = arith.constant 0 : i32
    %c0_i32_0 = arith.constant 0 : i32
    %c0_i32_1 = arith.constant 0 : i32
    return %c0_i32, %c0_i32_0 : i32, i32
  }
  func.func @transform_6(%arg0: i32) -> (i32, i32) {
    %c0_i32 = arith.constant 0 : i32
    %c0_i32_0 = arith.constant 0 : i32
    %c0_i32_1 = arith.constant 0 : i32
    return %c0_i32, %c0_i32_0 : i32, i32
  }
  func.func @transform_7(%arg0: i32) -> (i32, i32) {
    %c0_i32 = arith.constant 0 : i32
    %c0_i32_0 = arith.constant 0 : i32
    %c0_i32_1 = arith.constant 0 : i32
    return %c0_i32, %c0_i32_0 : i32, i32
  }
  func.func @transform_8(%arg0: i32) -> (i32, i32) {
    %c0_i32 = arith.constant 0 : i32
    %c0_i32_0 = arith.constant 0 : i32
    %c0_i32_1 = arith.constant 0 : i32
    return %c0_i32, %c0_i32_0 : i32, i32
  }
  func.func @transform_9(%arg0: i32) -> (i32, i32, i32) {
    %c0_i32 = arith.constant 0 : i32
    %c0_i32_0 = arith.constant 0 : i32
    %c0_i32_1 = arith.constant 0 : i32
    return %c0_i32, %arg0, %c0_i32_0 : i32, i32, i32
  }
}

</mosaic_0001>

<llo_original>
// kernel: tpu_custom_call.1
$region0: #{tpu_custom_call.1}
  #allocation0 [shape = 'u32[]', space=smem, size = 0x4, offset = 0x4, fixed_abs, tag = 'smem constant byte address 0x4 - core index']
  #allocation1 [shape = 'u32[72,128]{1,0:T(1,128)}', space=vmem, size = 0x9000, scoped, tag = 'internal scratch']
  #allocation2 [shape = 'f32[2,32]{1,0:T(2,128)}', space=vmem, size = 0x400, scoped, tag = 'scratch operand']
  #allocation3 [shape = 'f32[2,32]{1,0:T(2,128)}', space=vmem, size = 0x400, scoped, tag = 'scratch operand']
  #allocation4 [shape = 'f32[2,32]{1,0:T(2,128)}', space=vmem, size = 0x400, scoped, tag = 'scratch operand']
  #allocation5 [shape = 'f32[2,32]{1,0:T(2,128)}', space=vmem, size = 0x400, scoped, tag = 'scratch operand']
  %s0 = inlined_call_operand.hbm [shape: f32[2,8,16], index: 0, kind: input, shape index: {}]
  %s1 = inlined_call_operand.hbm [shape: f32[16,128], index: 1, kind: input, shape index: {}]
  %s2 = inlined_call_operand.vmem [shape: f32[32,128], index: 2, kind: input, shape index: {}]
  %s3 = inlined_call_operand.vmem [shape: f32[1,128], index: 3, kind: input, shape index: {}]
  %s4 = inlined_call_operand.hbm [shape: f32[32,128], index: 4, kind: input, shape index: {}]
  %s5 = inlined_call_operand.hbm [shape: f32[32,128], index: 5, kind: input, shape index: {}]
  %s6 = inlined_call_operand.vmem [shape: f32[1,128], index: 6, kind: input, shape index: {}]
  %s7 = inlined_call_operand.vmem [shape: f32[32,8], index: 7, kind: input, shape index: {}]
  %s8 = inlined_call_operand.vmem [shape: f32[1,8], index: 8, kind: input, shape index: {}]
  %s9 = inlined_call_operand.hbm [shape: f32[2,8,8], index: 9, kind: output, shape index: {}]
  %s10 = sld [smem:[#allocation0]]
  $region66: #{tpu_custom_call.1} parent=0
    _
  %s12 = ssub.s32 1, %s10
  %s13 = scalar_select 0, %s12, %s10
  $region1: #{tpu_custom_call.1} parent=0
    #allocation6 [shape = 'u8[8192]{0}', space=vmem, size = 0x2000, scoped, tag = 'input window, operand 0, single buffered']
    #allocation7 [shape = 's32[1]{0}', space=sflag, size = 0x4, scoped, tag = 'scoped memory for tpu_custom_call.1']
    #allocation8 [shape = 's32[1]{0}', space=sflag, size = 0x4, scoped, tag = 'scoped memory for tpu_custom_call.1']
    #allocation9 [shape = 'u8[8192]{0}', space=vmem, size = 0x2000, scoped, tag = 'input window, operand 1, single buffered']
    #allocation10 [shape = 's32[1]{0}', space=sflag, size = 0x4, scoped, tag = 'scoped memory for tpu_custom_call.1']
    #allocation11 [shape = 'u8[16384]{0}', space=vmem, size = 0x4000, scoped, tag = 'input window, operand 4, single buffered']
    #allocation12 [shape = 'u8[16384]{0}', space=vmem, size = 0x4000, scoped, tag = 'input window, operand 5, single buffered']
    #allocation13 [shape = 's32[1]{0}', space=sflag, size = 0x4, scoped, tag = 'scoped memory for tpu_custom_call.1']
    #allocation14 [shape = 'u8[8192]{0}', space=vmem, size = 0x2000, scoped, tag = 'output window, operand 0, single buffered']
    %14 = vsyncpa [#allocation7], 0
    %15 = vsyncpa [#allocation10], 0
    %16 = vsyncpa [#allocation13], 0
    %17 = vsyncpa [#allocation8], 0
    // Predicated region
    $region2: #{tpu_custom_call.1} parent=1 // pred_check
      _
    $region3: #{tpu_custom_call.1} parent=1 // pred_check_branch
      %19 = sbr.rel (0) target = $region5
    $region4: #{tpu_custom_call.1} parent=1 // pred_region
      %21 = vsyncadd [#allocation7], 0
      %s22 = sshll.u32 %s0, 4
      %s23 = int_to_ptr.hbm [resolvable:$true] %s22
      %s24 = sshll.u32 [#allocation6], 4
      %s25 = int_to_ptr.vmem [resolvable:$true] %s24
      %30 = dma.hbm_to_vmem [thread:$0]  %s23, 256, %s25, [#allocation7], 128, 128, 8
    $region5: #{tpu_custom_call.1} parent=1 // pred_fallthru
      _
    // Predicated region
    $region6: #{tpu_custom_call.1} parent=1 // pred_check
      _
    $region7: #{tpu_custom_call.1} parent=1 // pred_check_branch
      %32 = sbr.rel (0) target = $region9
    $region8: #{tpu_custom_call.1} parent=1 // pred_region
      %34 = vsyncadd [#allocation10], 0
      %s35 = sshll.u32 %s1, 4
      %s36 = int_to_ptr.hbm [resolvable:$true] %s35
      %s37 = sshll.u32 [#allocation9], 4
      %s38 = int_to_ptr.vmem [resolvable:$true] %s37
      %43 = dma.hbm_to_vmem [thread:$0]  %s36, 256, %s38, [#allocation10], 128, 128, 8
    $region9: #{tpu_custom_call.1} parent=1 // pred_fallthru
      _
    // Predicated region
    $region10: #{tpu_custom_call.1} parent=1 // pred_check
      _
    $region11: #{tpu_custom_call.1} parent=1 // pred_check_branch
      %45 = sbr.rel (0) target = $region13
    $region12: #{tpu_custom_call.1} parent=1 // pred_region
      _
    $region13: #{tpu_custom_call.1} parent=1 // pred_fallthru
      _
    // Predicated region
    $region14: #{tpu_custom_call.1} parent=1 // pred_check
      _
    $region15: #{tpu_custom_call.1} parent=1 // pred_check_branch
      %47 = sbr.rel (0) target = $region17
    $region16: #{tpu_custom_call.1} parent=1 // pred_region
      _
    $region17: #{tpu_custom_call.1} parent=1 // pred_fallthru
      _
    // Predicated region
    $region18: #{tpu_custom_call.1} parent=1 // pred_check
      _
    $region19: #{tpu_custom_call.1} parent=1 // pred_check_branch
      %49 = sbr.rel (0) target = $region21
    $region20: #{tpu_custom_call.1} parent=1 // pred_region
      %51 = vsyncadd [#allocation10], 0
      %s52 = sshll.u32 %s4, 4
      %s53 = int_to_ptr.hbm [resolvable:$true] %s52
      %s54 = sshll.u32 [#allocation11], 4
      %s55 = int_to_ptr.vmem [resolvable:$true] %s54
      %60 = dma.hbm_to_vmem [thread:$0]  %s53, 512, %s55, [#allocation10], 128, 128, 8
    $region21: #{tpu_custom_call.1} parent=1 // pred_fallthru
      _
    // Predicated region
    $region22: #{tpu_custom_call.1} parent=1 // pred_check
      _
    $region23: #{tpu_custom_call.1} parent=1 // pred_check_branch
      %62 = sbr.rel (0) target = $region25
    $region24: #{tpu_custom_call.1} parent=1 // pred_region
      %64 = vsyncadd [#allocation13], 0
      %s65 = sshll.u32 %s5, 4
      %s66 = int_to_ptr.hbm [resolvable:$true] %s65
      %s67 = sshll.u32 [#allocation12], 4
      %s68 = int_to_ptr.vmem [resolvable:$true] %s67
      %73 = dma.hbm_to_vmem [thread:$0]  %s66, 512, %s68, [#allocation13], 128, 128, 8
    $region25: #{tpu_custom_call.1} parent=1 // pred_fallthru
      _
    // Predicated region
    $region26: #{tpu_custom_call.1} parent=1 // pred_check
      _
    $region27: #{tpu_custom_call.1} parent=1 // pred_check_branch
      %75 = sbr.rel (0) target = $region29
    $region28: #{tpu_custom_call.1} parent=1 // pred_region
      _
    $region29: #{tpu_custom_call.1} parent=1 // pred_fallthru
      _
    // Predicated region
    $region30: #{tpu_custom_call.1} parent=1 // pred_check
      _
    $region31: #{tpu_custom_call.1} parent=1 // pred_check_branch
      %77 = sbr.rel (0) target = $region33
    $region32: #{tpu_custom_call.1} parent=1 // pred_region
      _
    $region33: #{tpu_custom_call.1} parent=1 // pred_fallthru
      _
    // Predicated region
    $region34: #{tpu_custom_call.1} parent=1 // pred_check
      _
    $region35: #{tpu_custom_call.1} parent=1 // pred_check_branch
      %79 = sbr.rel (0) target = $region37
    $region36: #{tpu_custom_call.1} parent=1 // pred_region
      _
    $region37: #{tpu_custom_call.1} parent=1 // pred_fallthru
      _
    // Predicated region
    $region38: #{tpu_custom_call.1} parent=1 // pred_check
      _
    $region39: #{tpu_custom_call.1} parent=1 // pred_check_branch
      %81 = sbr.rel (0) target = $region41
    $region40: #{tpu_custom_call.1} parent=1 // pred_region
      %83 = dma.done [#allocation7], 256
    $region41: #{tpu_custom_call.1} parent=1 // pred_fallthru
      _
    // Predicated region
    $region42: #{tpu_custom_call.1} parent=1 // pred_check
      _
    $region43: #{tpu_custom_call.1} parent=1 // pred_check_branch
      %85 = sbr.rel (0) target = $region45
    $region44: #{tpu_custom_call.1} parent=1 // pred_region
      %87 = dma.done [#allocation10], 256
    $region45: #{tpu_custom_call.1} parent=1 // pred_fallthru
      _
    // Predicated region
    $region46: #{tpu_custom_call.1} parent=1 // pred_check
      _
    $region47: #{tpu_custom_call.1} parent=1 // pred_check_branch
      %89 = sbr.rel (0) target = $region49
    $region48: #{tpu_custom_call.1} parent=1 // pred_region
      %91 = dma.done [#allocation10], 512
    $region49: #{tpu_custom_call.1} parent=1 // pred_fallthru
      _
    // Predicated region
    $region50: #{tpu_custom_call.1} parent=1 // pred_check
      _
    $region51: #{tpu_custom_call.1} parent=1 // pred_check_branch
      %93 = sbr.rel (0) target = $region53
    $region52: #{tpu_custom_call.1} parent=1 // pred_region
      %95 = dma.done [#allocation13], 512
    $region53: #{tpu_custom_call.1} parent=1 // pred_fallthru
      _
    %p96 = scmp.eq.s32.totalorder 0, 0
    // Predicated region
    $region54: #{tpu_custom_call.1} parent=1 // pred_check
      %p97 = pneg %p96
    $region55: #{tpu_custom_call.1} parent=1 // pred_check_branch
      %99 = sbr.rel (%p97) target = $region57
    $region56: #{tpu_custom_call.1} parent=1 // pred_region
      %vm100 = vcmask 254976
      %101 = vst.msk [vmem:[#allocation2] sm:$0x3] %vm100, 0.0
      %102 = vst.msk [vmem:[#allocation3] sm:$0x3] %vm100, 0.0
      %103 = vst.msk [vmem:[#allocation4] sm:$0x3] %vm100, 0.0
      %104 = vst.msk [vmem:[#allocation5] sm:$0x3] %vm100, 0.0
    $region57: #{tpu_custom_call.1} parent=1 // pred_fallthru
      _
    %v105 = vld [vmem:[#allocation9] sm:$0xff]
    %v106 = vld [vmem:[#allocation9 + $0x8] sm:$0xff]
    %v107 = vld [vmem:[#allocation11] sm:$0xff]
    %v108 = vld [vmem:[#allocation11 + $0x8] sm:$0xff]
    %v109 = vld [vmem:[#allocation11 + $0x10] sm:$0xff]
    %v110 = vld [vmem:[#allocation11 + $0x18] sm:$0xff]
    %v111 = vld [vmem:[%s2] sm:$0xff]
    %v112 = vld [vmem:[%s2 + $0x8] sm:$0xff]
    %v113 = vld [vmem:[%s2 + $0x10] sm:$0xff]
    %v114 = vld [vmem:[%s2 + $0x18] sm:$0xff]
    %v115 = vld [vmem:[#allocation12] sm:$0xff]
    %v116 = vld [vmem:[#allocation12 + $0x8] sm:$0xff]
    %v117 = vld [vmem:[#allocation12 + $0x10] sm:$0xff]
    %v118 = vld [vmem:[#allocation12 + $0x18] sm:$0xff]
    %v119 = vld [vmem:[%s3] sm:$0x1]
    %v120 = vld [vmem:[%s6] sm:$0x1]
    %v121 = vld [vmem:[%s7] sm:$0xff]
    %v122 = vld [vmem:[%s7 + $0x8] sm:$0xff]
    %v123 = vld [vmem:[%s7 + $0x10] sm:$0xff]
    %v124 = vld [vmem:[%s7 + $0x18] sm:$0xff]
    %v125 = vld [vmem:[%s8] sm:$0x1]
    %v126 = vld [vmem:[#allocation6] sm:$0x1]
    %v127 = vld [vmem:[#allocation6 + $0x8] sm:$0x1]
    %v128 = vld [vmem:[#allocation2] sm:$0x3]
    %v129 = vld [vmem:[#allocation3] sm:$0x3]
    %vm130 = vcmask 261120
    %v132 = vsel %vm130, %v128, 0
    %134 = vmatpush.msra.mxu0 0.0
    %135 = vmatpush.msra.mxu0 0.0
    %136 = vmatpush.msra.mxu0 0.0
    %137 = vmatpush.msra.mxu0 0.0
    %138 = vmatpush.msra.mxu0 0.0
    %139 = vmatpush.msra.mxu0 0.0
    %140 = vmatpush.msra.mxu0 0.0
    %141 = vmatpush.msra.mxu0 0.0
    %142 = vmatpush.msra.mxu0 0.0
    %143 = vmatpush.msra.mxu0 0.0
    %144 = vmatpush.msra.mxu0 0.0
    %145 = vmatpush.msra.mxu0 0.0
    %146 = vmatpush.msra.mxu0 %v114
    %147 = vmatpush.msra.mxu0 %v113
    %148 = vmatpush.msra.mxu0 %v112
    %149 = vmatpush.msra.mxu0 %v111
    %150 = vmatmul.f32.gmra.mxu0 %v132
    %v151 = vpop.f32.mrf.mxu0
    %v152 = vadd.f32 0.0, %v151
    %153 = vdwg.mxu0
    %v156 = vrot.slane %v127, 7
    %vm157 = vcmask 1041409
    %v158 = vsel %vm157, %v156, %v126
    %vm159 = vcmask 130048
    %v160 = vsel %vm159, %v158, 0
    %162 = vmatpush.msra.mxu0 0.0
    %163 = vmatpush.msra.mxu0 0.0
    %164 = vmatpush.msra.mxu0 0.0
    %165 = vmatpush.msra.mxu0 0.0
    %166 = vmatpush.msra.mxu0 0.0
    %167 = vmatpush.msra.mxu0 0.0
    %168 = vmatpush.msra.mxu0 0.0
    %169 = vmatpush.msra.mxu0 0.0
    %170 = vmatpush.msra.mxu0 0.0
    %171 = vmatpush.msra.mxu0 0.0
    %172 = vmatpush.msra.mxu0 0.0
    %173 = vmatpush.msra.mxu0 0.0
    %174 = vmatpush.msra.mxu0 0.0
    %175 = vmatpush.msra.mxu0 0.0
    %176 = vmatpush.msra.mxu0 %v106
    %177 = vmatpush.msra.mxu0 %v105
    %178 = vmatmul.f32.gmra.mxu0 %v160
    %v179 = vpop.f32.mrf.mxu0
    %v180 = vadd.f32 %v152, %v179
    %181 = vdwg.mxu0
    %v183 = vperm.slane %v119, 0
    %v185 = vadd.f32 %v180, %v183
    %v186 = vxor.u32 %v185, 2147483648
    %v187 = vmul.f32 %v186, 1.442695
    %v188 = vpow.pop %v187
    %v189 = vadd.f32 %v188, 1.0
    %v190 = vrcp.pop %v189
    %v191 = vmul.f32 %v189, %v190
    %v192 = vsub.f32 1.0, %v191
    %v193 = vmul.f32 %v190, %v192
    %v194 = vadd.f32 %v190, %v193
    %vm195 = vweird.f32 %v189
    %vm196 = vweird.f32 %v190
    %vm197 = vmor %vm195, %vm196
    %v198 = vsel %vm197, %v190, %v194
    %v199 = vand.u32 2147483647, %v189
    %vm200 = vcmp.eq.f32.partialorder %v199, 8.507059e+37
    %v201 = vand.u32 %v189, 2147483648
    %v202 = vor.u32 1.1754944e-38, %v201
    %v203 = vsel %vm200, %v202, %v198
    %v204 = vmul.f32 1.0, %v203
    %v205 = vtanh.pop %v185
    %207 = vrot.lane.b32.xlu0 %v129, 32
    %v208 = vpop.permute.xlu0 %207
    %v210 = vmul.f32 %v204, %v208
    %212 = vrot.lane.b32.xlu0 %v205, 64
    %v213 = vpop.permute.xlu0 %212
    %v215 = vmul.f32 %v204, %v213
    %217 = vrot.lane.b32.xlu0 %v215, 32
    %v218 = vpop.permute.xlu0 %217
    %v220 = vadd.f32 %v210, %v218
    %v221 = vtanh.pop %v220
    %223 = vrot.lane.b32.xlu0 %v221, 64
    %v224 = vpop.permute.xlu0 %223
    %v226 = vmul.f32 %v204, %v224
    %228 = vrot.lane.b32.xlu0 %v226, 32
    %v229 = vpop.permute.xlu0 %228
    %vm231 = vcmask 254976
    %232 = vst.msk [vmem:[#allocation2] sm:$0x3] %vm231, %v229
    %234 = vrot.lane.b32.xlu0 %v220, 96
    %v235 = vpop.permute.xlu0 %234
    %237 = vst.msk [vmem:[#allocation3] sm:$0x3] %vm231, %v235
    %v238 = vld [vmem:[#allocation4] sm:$0x3]
    %v239 = vld [vmem:[#allocation5] sm:$0x3]
    %v241 = vsel %vm130, %v238, 0
    %243 = vmatpush.msra.mxu0 0.0
    %244 = vmatpush.msra.mxu0 0.0
    %245 = vmatpush.msra.mxu0 0.0
    %246 = vmatpush.msra.mxu0 0.0
    %247 = vmatpush.msra.mxu0 0.0
    %248 = vmatpush.msra.mxu0 0.0
    %249 = vmatpush.msra.mxu0 0.0
    %250 = vmatpush.msra.mxu0 0.0
    %251 = vmatpush.msra.mxu0 0.0
    %252 = vmatpush.msra.mxu0 0.0
    %253 = vmatpush.msra.mxu0 0.0
    %254 = vmatpush.msra.mxu0 0.0
    %255 = vmatpush.msra.mxu0 %v118
    %256 = vmatpush.msra.mxu0 %v117
    %257 = vmatpush.msra.mxu0 %v116
    %258 = vmatpush.msra.mxu0 %v115
    %259 = vmatmul.f32.gmra.mxu0 %v241
    %v260 = vpop.f32.mrf.mxu0
    %v261 = vadd.f32 0.0, %v260
    %262 = vdwg.mxu0
    %v263 = vsel %vm130, %v229, 0
    %265 = vmatpush.msra.mxu0 0.0
    %266 = vmatpush.msra.mxu0 0.0
    %267 = vmatpush.msra.mxu0 0.0
    %268 = vmatpush.msra.mxu0 0.0
    %269 = vmatpush.msra.mxu0 0.0
    %270 = vmatpush.msra.mxu0 0.0
    %271 = vmatpush.msra.mxu0 0.0
    %272 = vmatpush.msra.mxu0 0.0
    %273 = vmatpush.msra.mxu0 0.0
    %274 = vmatpush.msra.mxu0 0.0
    %275 = vmatpush.msra.mxu0 0.0
    %276 = vmatpush.msra.mxu0 0.0
    %277 = vmatpush.msra.mxu0 %v110
    %278 = vmatpush.msra.mxu0 %v109
    %279 = vmatpush.msra.mxu0 %v108
    %280 = vmatpush.msra.mxu0 %v107
    %281 = vmatmul.f32.gmra.mxu0 %v263
    %v282 = vpop.f32.mrf.mxu0
    %v283 = vadd.f32 %v261, %v282
    %284 = vdwg.mxu0
    %v286 = vperm.slane %v120, 0
    %v288 = vadd.f32 %v283, %v286
    %v289 = vxor.u32 %v288, 2147483648
    %v290 = vmul.f32 %v289, 1.442695
    %v291 = vpow.pop %v290
    %v292 = vadd.f32 %v291, 1.0
    %v293 = vrcp.pop %v292
    %v294 = vmul.f32 %v292, %v293
    %v295 = vsub.f32 1.0, %v294
    %v296 = vmul.f32 %v293, %v295
    %v297 = vadd.f32 %v293, %v296
    %vm298 = vweird.f32 %v292
    %vm299 = vweird.f32 %v293
    %vm300 = vmor %vm298, %vm299
    %v301 = vsel %vm300, %v293, %v297
    %v302 = vand.u32 2147483647, %v292
    %vm303 = vcmp.eq.f32.partialorder %v302, 8.507059e+37
    %v304 = vand.u32 %v292, 2147483648
    %v305 = vor.u32 1.1754944e-38, %v304
    %v306 = vsel %vm303, %v305, %v301
    %v307 = vmul.f32 1.0, %v306
    %v308 = vtanh.pop %v288
    %310 = vrot.lane.b32.xlu0 %v239, 32
    %v311 = vpop.permute.xlu0 %310
    %v313 = vmul.f32 %v307, %v311
    %315 = vrot.lane.b32.xlu0 %v308, 64
    %v316 = vpop.permute.xlu0 %315
    %v318 = vmul.f32 %v307, %v316
    %320 = vrot.lane.b32.xlu0 %v318, 32
    %v321 = vpop.permute.xlu0 %320
    %v323 = vadd.f32 %v313, %v321
    %v324 = vtanh.pop %v323
    %326 = vrot.lane.b32.xlu0 %v324, 64
    %v327 = vpop.permute.xlu0 %326
    %v329 = vmul.f32 %v307, %v327
    %331 = vrot.lane.b32.xlu0 %v329, 32
    %v332 = vpop.permute.xlu0 %331
    %334 = vst.msk [vmem:[#allocation4] sm:$0x3] %vm231, %v332
    %336 = vrot.lane.b32.xlu0 %v323, 96
    %v337 = vpop.permute.xlu0 %336
    %339 = vst.msk [vmem:[#allocation5] sm:$0x3] %vm231, %v337
    %v341 = vperm.slane %v125, 0
    %v343 = vsel %vm130, %v332, 0
    %345 = vmatpush.msra.mxu0 0.0
    %346 = vmatpush.msra.mxu0 0.0
    %347 = vmatpush.msra.mxu0 0.0
    %348 = vmatpush.msra.mxu0 0.0
    %349 = vmatpush.msra.mxu0 0.0
    %350 = vmatpush.msra.mxu0 0.0
    %351 = vmatpush.msra.mxu0 0.0
    %352 = vmatpush.msra.mxu0 0.0
    %353 = vmatpush.msra.mxu0 0.0
    %354 = vmatpush.msra.mxu0 0.0
    %355 = vmatpush.msra.mxu0 0.0
    %356 = vmatpush.msra.mxu0 0.0
    %357 = vmatpush.msra.mxu0 %v124
    %358 = vmatpush.msra.mxu0 %v123
    %359 = vmatpush.msra.mxu0 %v122
    %360 = vmatpush.msra.mxu0 %v121
    %361 = vmatmul.f32.gmra.mxu0 %v343
    %v362 = vpop.f32.mrf.mxu0
    %v363 = vadd.f32 %v341, %v362
    %364 = vdwg.mxu0
    %v365 = vxor.u32 %v363, 2147483648
    %v366 = vmul.f32 %v365, 1.442695
    %v367 = vpow.pop %v366
    %v368 = vadd.f32 %v367, 1.0
    %v369 = vrcp.pop %v368
    %v370 = vmul.f32 %v368, %v369
    %v371 = vsub.f32 1.0, %v370
    %v372 = vmul.f32 %v369, %v371
    %v373 = vadd.f32 %v369, %v372
    %vm374 = vweird.f32 %v368
    %vm375 = vweird.f32 %v369
    %vm376 = vmor %vm374, %vm375
    %v377 = vsel %vm376, %v369, %v373
    %v378 = vand.u32 2147483647, %v368
    %vm379 = vcmp.eq.f32.partialorder %v378, 8.507059e+37
    %v380 = vand.u32 %v368, 2147483648
    %v381 = vor.u32 1.1754944e-38, %v380
    %v382 = vsel %vm379, %v381, %v377
    %v383 = vmul.f32 1.0, %v382
    %v385 = vrot.slane %v383, 1
    %vm387 = vcmask 57344
    %388 = vst.msk [vmem:[#allocation14] sm:$0x1] %vm387, %v383
    %389 = vst.msk [vmem:[#allocation14 + $0x8] sm:$0x1] %vm387, %v385
    %v390 = vld [vmem:[#allocation6 + $0x1] sm:$0x1]
    %v391 = vld [vmem:[#allocation6 + $0x9] sm:$0x1]
    %v392 = vld [vmem:[#allocation2] sm:$0x3]
    %v393 = vld [vmem:[#allocation3] sm:$0x3]
    %v395 = vsel %vm130, %v392, 0
    %397 = vmatpush.msra.mxu0 0.0
    %398 = vmatpush.msra.mxu0 0.0
    %399 = vmatpush.msra.mxu0 0.0
    %400 = vmatpush.msra.mxu0 0.0
    %401 = vmatpush.msra.mxu0 0.0
    %402 = vmatpush.msra.mxu0 0.0
    %403 = vmatpush.msra.mxu0 0.0
    %404 = vmatpush.msra.mxu0 0.0
    %405 = vmatpush.msra.mxu0 0.0
    %406 = vmatpush.msra.mxu0 0.0
    %407 = vmatpush.msra.mxu0 0.0
    %408 = vmatpush.msra.mxu0 0.0
    %409 = vmatpush.msra.mxu0 %v114
    %410 = vmatpush.msra.mxu0 %v113
    %411 = vmatpush.msra.mxu0 %v112
    %412 = vmatpush.msra.mxu0 %v111
    %413 = vmatmul.f32.gmra.mxu0 %v395
    %v414 = vpop.f32.mrf.mxu0
    %v415 = vadd.f32 0.0, %v414
    %416 = vdwg.mxu0
    %v419 = vrot.slane %v391, 7
    %v420 = vsel %vm157, %v419, %v390
    %v421 = vsel %vm159, %v420, 0
    %423 = vmatpush.msra.mxu0 0.0
    %424 = vmatpush.msra.mxu0 0.0
    %425 = vmatpush.msra.mxu0 0.0
    %426 = vmatpush.msra.mxu0 0.0
    %427 = vmatpush.msra.mxu0 0.0
    %428 = vmatpush.msra.mxu0 0.0
    %429 = vmatpush.msra.mxu0 0.0
    %430 = vmatpush.msra.mxu0 0.0
    %431 = vmatpush.msra.mxu0 0.0
    %432 = vmatpush.msra.mxu0 0.0
    %433 = vmatpush.msra.mxu0 0.0
    %434 = vmatpush.msra.mxu0 0.0
    %435 = vmatpush.msra.mxu0 0.0
    %436 = vmatpush.msra.mxu0 0.0
    %437 = vmatpush.msra.mxu0 %v106
    %438 = vmatpush.msra.mxu0 %v105
    %439 = vmatmul.f32.gmra.mxu0 %v421
    %v440 = vpop.f32.mrf.mxu0
    %v441 = vadd.f32 %v415, %v440
    %442 = vdwg.mxu0
    %v443 = vadd.f32 %v441, %v183
    %v444 = vxor.u32 %v443, 2147483648
    %v445 = vmul.f32 %v444, 1.442695
    %v446 = vpow.pop %v445
    %v447 = vadd.f32 %v446, 1.0
    %v448 = vrcp.pop %v447
    %v449 = vmul.f32 %v447, %v448
    %v450 = vsub.f32 1.0, %v449
    %v451 = vmul.f32 %v448, %v450
    %v452 = vadd.f32 %v448, %v451
    %vm453 = vweird.f32 %v447
    %vm454 = vweird.f32 %v448
    %vm455 = vmor %vm453, %vm454
    %v456 = vsel %vm455, %v448, %v452
    %v457 = vand.u32 2147483647, %v447
    %vm458 = vcmp.eq.f32.partialorder %v457, 8.507059e+37
    %v459 = vand.u32 %v447, 2147483648
    %v460 = vor.u32 1.1754944e-38, %v459
    %v461 = vsel %vm458, %v460, %v456
    %v462 = vmul.f32 1.0, %v461
    %v463 = vtanh.pop %v443
    %465 = vrot.lane.b32.xlu0 %v393, 32
    %v466 = vpop.permute.xlu0 %465
    %v468 = vmul.f32 %v462, %v466
    %470 = vrot.lane.b32.xlu0 %v463, 64
    %v471 = vpop.permute.xlu0 %470
    %v473 = vmul.f32 %v462, %v471
    %475 = vrot.lane.b32.xlu0 %v473, 32
    %v476 = vpop.permute.xlu0 %475
    %v478 = vadd.f32 %v468, %v476
    %v479 = vtanh.pop %v478
    %481 = vrot.lane.b32.xlu0 %v479, 64
    %v482 = vpop.permute.xlu0 %481
    %v484 = vmul.f32 %v462, %v482
    %486 = vrot.lane.b32.xlu0 %v484, 32
    %v487 = vpop.permute.xlu0 %486
    %489 = vst.msk [vmem:[#allocation2] sm:$0x3] %vm231, %v487
    %491 = vrot.lane.b32.xlu0 %v478, 96
    %v492 = vpop.permute.xlu0 %491
    %494 = vst.msk [vmem:[#allocation3] sm:$0x3] %vm231, %v492
    %v495 = vld [vmem:[#allocation4] sm:$0x3]
    %v496 = vld [vmem:[#allocation5] sm:$0x3]
    %v498 = vsel %vm130, %v495, 0
    %500 = vmatpush.msra.mxu0 0.0
    %501 = vmatpush.msra.mxu0 0.0
    %502 = vmatpush.msra.mxu0 0.0
    %503 = vmatpush.msra.mxu0 0.0
    %504 = vmatpush.msra.mxu0 0.0
    %505 = vmatpush.msra.mxu0 0.0
    %506 = vmatpush.msra.mxu0 0.0
    %507 = vmatpush.msra.mxu0 0.0
    %508 = vmatpush.msra.mxu0 0.0
    %509 = vmatpush.msra.mxu0 0.0
    %510 = vmatpush.msra.mxu0 0.0
    %511 = vmatpush.msra.mxu0 0.0
    %512 = vmatpush.msra.mxu0 %v118
    %513 = vmatpush.msra.mxu0 %v117
    %514 = vmatpush.msra.mxu0 %v116
    %515 = vmatpush.msra.mxu0 %v115
    %516 = vmatmul.f32.gmra.mxu0 %v498
    %v517 = vpop.f32.mrf.mxu0
    %v518 = vadd.f32 0.0, %v517
    %519 = vdwg.mxu0
    %v520 = vsel %vm130, %v487, 0
    %522 = vmatpush.msra.mxu0 0.0
    %523 = vmatpush.msra.mxu0 0.0
    %524 = vmatpush.msra.mxu0 0.0
    %525 = vmatpush.msra.mxu0 0.0
    %526 = vmatpush.msra.mxu0 0.0
    %527 = vmatpush.msra.mxu0 0.0
    %528 = vmatpush.msra.mxu0 0.0
    %529 = vmatpush.msra.mxu0 0.0
    %530 = vmatpush.msra.mxu0 0.0
    %531 = vmatpush.msra.mxu0 0.0
    %532 = vmatpush.msra.mxu0 0.0
    %533 = vmatpush.msra.mxu0 0.0
    %534 = vmatpush.msra.mxu0 %v110
    %535 = vmatpush.msra.mxu0 %v109
    %536 = vmatpush.msra.mxu0 %v108
    %537 = vmatpush.msra.mxu0 %v107
    %538 = vmatmul.f32.gmra.mxu0 %v520
    %v539 = vpop.f32.mrf.mxu0
    %v540 = vadd.f32 %v518, %v539
    %541 = vdwg.mxu0
    %v542 = vadd.f32 %v540, %v286
    %v543 = vxor.u32 %v542, 2147483648
    %v544 = vmul.f32 %v543, 1.442695
    %v545 = vpow.pop %v544
    %v546 = vadd.f32 %v545, 1.0
    %v547 = vrcp.pop %v546
    %v548 = vmul.f32 %v546, %v547
    %v549 = vsub.f32 1.0, %v548
    %v550 = vmul.f32 %v547, %v549
    %v551 = vadd.f32 %v547, %v550
    %vm552 = vweird.f32 %v546
    %vm553 = vweird.f32 %v547
    %vm554 = vmor %vm552, %vm553
    %v555 = vsel %vm554, %v547, %v551
    %v556 = vand.u32 2147483647, %v546
    %vm557 = vcmp.eq.f32.partialorder %v556, 8.507059e+37
    %v558 = vand.u32 %v546, 2147483648
    %v559 = vor.u32 1.1754944e-38, %v558
    %v560 = vsel %vm557, %v559, %v555
    %v561 = vmul.f32 1.0, %v560
    %v562 = vtanh.pop %v542
    %564 = vrot.lane.b32.xlu0 %v496, 32
    %v565 = vpop.permute.xlu0 %564
    %v567 = vmul.f32 %v561, %v565
    %569 = vrot.lane.b32.xlu0 %v562, 64
    %v570 = vpop.permute.xlu0 %569
    %v572 = vmul.f32 %v561, %v570
    %574 = vrot.lane.b32.xlu0 %v572, 32
    %v575 = vpop.permute.xlu0 %574
    %v577 = vadd.f32 %v567, %v575
    %v578 = vtanh.pop %v577
    %580 = vrot.lane.b32.xlu0 %v578, 64
    %v581 = vpop.permute.xlu0 %580
    %v583 = vmul.f32 %v561, %v581
    %585 = vrot.lane.b32.xlu0 %v583, 32
    %v586 = vpop.permute.xlu0 %585
    %588 = vst.msk [vmem:[#allocation4] sm:$0x3] %vm231, %v586
    %590 = vrot.lane.b32.xlu0 %v577, 96
    %v591 = vpop.permute.xlu0 %590
    %593 = vst.msk [vmem:[#allocation5] sm:$0x3] %vm231, %v591
    %v594 = vsel %vm130, %v586, 0
    %596 = vmatpush.msra.mxu0 0.0
    %597 = vmatpush.msra.mxu0 0.0
    %598 = vmatpush.msra.mxu0 0.0
    %599 = vmatpush.msra.mxu0 0.0
    %600 = vmatpush.msra.mxu0 0.0
    %601 = vmatpush.msra.mxu0 0.0
    %602 = vmatpush.msra.mxu0 0.0
    %603 = vmatpush.msra.mxu0 0.0
    %604 = vmatpush.msra.mxu0 0.0
    %605 = vmatpush.msra.mxu0 0.0
    %606 = vmatpush.msra.mxu0 0.0
    %607 = vmatpush.msra.mxu0 0.0
    %608 = vmatpush.msra.mxu0 %v124
    %609 = vmatpush.msra.mxu0 %v123
    %610 = vmatpush.msra.mxu0 %v122
    %611 = vmatpush.msra.mxu0 %v121
    %612 = vmatmul.f32.gmra.mxu0 %v594
    %v613 = vpop.f32.mrf.mxu0
    %v614 = vadd.f32 %v341, %v613
    %615 = vdwg.mxu0
    %v616 = vxor.u32 %v614, 2147483648
    %v617 = vmul.f32 %v616, 1.442695
    %v618 = vpow.pop %v617
    %v619 = vadd.f32 %v618, 1.0
    %v620 = vrcp.pop %v619
    %v621 = vmul.f32 %v619, %v620
    %v622 = vsub.f32 1.0, %v621
    %v623 = vmul.f32 %v620, %v622
    %v624 = vadd.f32 %v620, %v623
    %vm625 = vweird.f32 %v619
    %vm626 = vweird.f32 %v620
    %vm627 = vmor %vm625, %vm626
    %v628 = vsel %vm627, %v620, %v624
    %v629 = vand.u32 2147483647, %v619
    %vm630 = vcmp.eq.f32.partialorder %v629, 8.507059e+37
    %v631 = vand.u32 %v619, 2147483648
    %v632 = vor.u32 1.1754944e-38, %v631
    %v633 = vsel %vm630, %v632, %v628
    %v634 = vmul.f32 1.0, %v633
    %v636 = vrot.slane %v634, 1
    %638 = vst.msk [vmem:[#allocation14 + $0x1] sm:$0x1] %vm387, %v634
    %639 = vst.msk [vmem:[#allocation14 + $0x9] sm:$0x1] %vm387, %v636
    %v640 = vld [vmem:[#allocation6 + $0x2] sm:$0x1]
    %v641 = vld [vmem:[#allocation6 + $0xa] sm:$0x1]
    %v642 = vld [vmem:[#allocation2] sm:$0x3]
    %v643 = vld [vmem:[#allocation3] sm:$0x3]
    %v645 = vsel %vm130, %v642, 0
    %647 = vmatpush.msra.mxu0 0.0
    %648 = vmatpush.msra.mxu0 0.0
    %649 = vmatpush.msra.mxu0 0.0
    %650 = vmatpush.msra.mxu0 0.0
    %651 = vmatpush.msra.mxu0 0.0
    %652 = vmatpush.msra.mxu0 0.0
    %653 = vmatpush.msra.mxu0 0.0
    %654 = vmatpush.msra.mxu0 0.0
    %655 = vmatpush.msra.mxu0 0.0
    %656 = vmatpush.msra.mxu0 0.0
    %657 = vmatpush.msra.mxu0 0.0
    %658 = vmatpush.msra.mxu0 0.0
    %659 = vmatpush.msra.mxu0 %v114
    %660 = vmatpush.msra.mxu0 %v113
    %661 = vmatpush.msra.mxu0 %v112
    %662 = vmatpush.msra.mxu0 %v111
    %663 = vmatmul.f32.gmra.mxu0 %v645
    %v664 = vpop.f32.mrf.mxu0
    %v665 = vadd.f32 0.0, %v664
    %666 = vdwg.mxu0
    %v669 = vrot.slane %v641, 7
    %v670 = vsel %vm157, %v669, %v640
    %v671 = vsel %vm159, %v670, 0
    %673 = vmatpush.msra.mxu0 0.0
    %674 = vmatpush.msra.mxu0 0.0
    %675 = vmatpush.msra.mxu0 0.0
    %676 = vmatpush.msra.mxu0 0.0
    %677 = vmatpush.msra.mxu0 0.0
    %678 = vmatpush.msra.mxu0 0.0
    %679 = vmatpush.msra.mxu0 0.0
    %680 = vmatpush.msra.mxu0 0.0
    %681 = vmatpush.msra.mxu0 0.0
    %682 = vmatpush.msra.mxu0 0.0
    %683 = vmatpush.msra.mxu0 0.0
    %684 = vmatpush.msra.mxu0 0.0
    %685 = vmatpush.msra.mxu0 0.0
    %686 = vmatpush.msra.mxu0 0.0
    %687 = vmatpush.msra.mxu0 %v106
    %688 = vmatpush.msra.mxu0 %v105
    %689 = vmatmul.f32.gmra.mxu0 %v671
    %v690 = vpop.f32.mrf.mxu0
    %v691 = vadd.f32 %v665, %v690
    %692 = vdwg.mxu0
    %v693 = vadd.f32 %v691, %v183
    %v694 = vxor.u32 %v693, 2147483648
    %v695 = vmul.f32 %v694, 1.442695
    %v696 = vpow.pop %v695
    %v697 = vadd.f32 %v696, 1.0
    %v698 = vrcp.pop %v697
    %v699 = vmul.f32 %v697, %v698
    %v700 = vsub.f32 1.0, %v699
    %v701 = vmul.f32 %v698, %v700
    %v702 = vadd.f32 %v698, %v701
    %vm703 = vweird.f32 %v697
    %vm704 = vweird.f32 %v698
    %vm705 = vmor %vm703, %vm704
    %v706 = vsel %vm705, %v698, %v702
    %v707 = vand.u32 2147483647, %v697
    %vm708 = vcmp.eq.f32.partialorder %v707, 8.507059e+37
    %v709 = vand.u32 %v697, 2147483648
    %v710 = vor.u32 1.1754944e-38, %v709
    %v711 = vsel %vm708, %v710, %v706
    %v712 = vmul.f32 1.0, %v711
    %v713 = vtanh.pop %v693
    %715 = vrot.lane.b32.xlu0 %v643, 32
    %v716 = vpop.permute.xlu0 %715
    %v718 = vmul.f32 %v712, %v716
    %720 = vrot.lane.b32.xlu0 %v713, 64
    %v721 = vpop.permute.xlu0 %720
    %v723 = vmul.f32 %v712, %v721
    %725 = vrot.lane.b32.xlu0 %v723, 32
    %v726 = vpop.permute.xlu0 %725
    %v728 = vadd.f32 %v718, %v726
    %v729 = vtanh.pop %v728
    %731 = vrot.lane.b32.xlu0 %v729, 64
    %v732 = vpop.permute.xlu0 %731
    %v734 = vmul.f32 %v712, %v732
    %736 = vrot.lane.b32.xlu0 %v734, 32
    %v737 = vpop.permute.xlu0 %736
    %739 = vst.msk [vmem:[#allocation2] sm:$0x3] %vm231, %v737
    %741 = vrot.lane.b32.xlu0 %v728, 96
    %v742 = vpop.permute.xlu0 %741
    %744 = vst.msk [vmem:[#allocation3] sm:$0x3] %vm231, %v742
    %v745 = vld [vmem:[#allocation4] sm:$0x3]
    %v746 = vld [vmem:[#allocation5] sm:$0x3]
    %v748 = vsel %vm130, %v745, 0
    %750 = vmatpush.msra.mxu0 0.0
    %751 = vmatpush.msra.mxu0 0.0
    %752 = vmatpush.msra.mxu0 0.0
    %753 = vmatpush.msra.mxu0 0.0
    %754 = vmatpush.msra.mxu0 0.0
    %755 = vmatpush.msra.mxu0 0.0
    %756 = vmatpush.msra.mxu0 0.0
    %757 = vmatpush.msra.mxu0 0.0
    %758 = vmatpush.msra.mxu0 0.0
    %759 = vmatpush.msra.mxu0 0.0
    %760 = vmatpush.msra.mxu0 0.0
    %761 = vmatpush.msra.mxu0 0.0
    %762 = vmatpush.msra.mxu0 %v118
    %763 = vmatpush.msra.mxu0 %v117
    %764 = vmatpush.msra.mxu0 %v116
    %765 = vmatpush.msra.mxu0 %v115
    %766 = vmatmul.f32.gmra.mxu0 %v748
    %v767 = vpop.f32.mrf.mxu0
    %v768 = vadd.f32 0.0, %v767
    %769 = vdwg.mxu0
    %v770 = vsel %vm130, %v737, 0
    %772 = vmatpush.msra.mxu0 0.0
    %773 = vmatpush.msra.mxu0 0.0
    %774 = vmatpush.msra.mxu0 0.0
    %775 = vmatpush.msra.mxu0 0.0
    %776 = vmatpush.msra.mxu0 0.0
    %777 = vmatpush.msra.mxu0 0.0
    %778 = vmatpush.msra.mxu0 0.0
    %779 = vmatpush.msra.mxu0 0.0
    %780 = vmatpush.msra.mxu0 0.0
    %781 = vmatpush.msra.mxu0 0.0
    %782 = vmatpush.msra.mxu0 0.0
    %783 = vmatpush.msra.mxu0 0.0
    %784 = vmatpush.msra.mxu0 %v110
    %785 = vmatpush.msra.mxu0 %v109
    %786 = vmatpush.msra.mxu0 %v108
    %787 = vmatpush.msra.mxu0 %v107
    %788 = vmatmul.f32.gmra.mxu0 %v770
    %v789 = vpop.f32.mrf.mxu0
    %v790 = vadd.f32 %v768, %v789
    %791 = vdwg.mxu0
    %v792 = vadd.f32 %v790, %v286
    %v793 = vxor.u32 %v792, 2147483648
    %v794 = vmul.f32 %v793, 1.442695
    %v795 = vpow.pop %v794
    %v796 = vadd.f32 %v795, 1.0
    %v797 = vrcp.pop %v796
    %v798 = vmul.f32 %v796, %v797
    %v799 = vsub.f32 1.0, %v798
    %v800 = vmul.f32 %v797, %v799
    %v801 = vadd.f32 %v797, %v800
    %vm802 = vweird.f32 %v796
    %vm803 = vweird.f32 %v797
    %vm804 = vmor %vm802, %vm803
    %v805 = vsel %vm804, %v797, %v801
    %v806 = vand.u32 2147483647, %v796
    %vm807 = vcmp.eq.f32.partialorder %v806, 8.507059e+37
    %v808 = vand.u32 %v796, 2147483648
    %v809 = vor.u32 1.1754944e-38, %v808
    %v810 = vsel %vm807, %v809, %v805
    %v811 = vmul.f32 1.0, %v810
    %v812 = vtanh.pop %v792
    %814 = vrot.lane.b32.xlu0 %v746, 32
    %v815 = vpop.permute.xlu0 %814
    %v817 = vmul.f32 %v811, %v815
    %819 = vrot.lane.b32.xlu0 %v812, 64
    %v820 = vpop.permute.xlu0 %819
    %v822 = vmul.f32 %v811, %v820
    %824 = vrot.lane.b32.xlu0 %v822, 32
    %v825 = vpop.permute.xlu0 %824
    %v827 = vadd.f32 %v817, %v825
    %v828 = vtanh.pop %v827
    %830 = vrot.lane.b32.xlu0 %v828, 64
    %v831 = vpop.permute.xlu0 %830
    %v833 = vmul.f32 %v811, %v831
    %835 = vrot.lane.b32.xlu0 %v833, 32
    %v836 = vpop.permute.xlu0 %835
    %838 = vst.msk [vmem:[#allocation4] sm:$0x3] %vm231, %v836
    %840 = vrot.lane.b32.xlu0 %v827, 96
    %v841 = vpop.permute.xlu0 %840
    %843 = vst.msk [vmem:[#allocation5] sm:$0x3] %vm231, %v841
    %v844 = vsel %vm130, %v836, 0
    %846 = vmatpush.msra.mxu0 0.0
    %847 = vmatpush.msra.mxu0 0.0
    %848 = vmatpush.msra.mxu0 0.0
    %849 = vmatpush.msra.mxu0 0.0
    %850 = vmatpush.msra.mxu0 0.0
    %851 = vmatpush.msra.mxu0 0.0
    %852 = vmatpush.msra.mxu0 0.0
    %853 = vmatpush.msra.mxu0 0.0
    %854 = vmatpush.msra.mxu0 0.0
    %855 = vmatpush.msra.mxu0 0.0
    %856 = vmatpush.msra.mxu0 0.0
    %857 = vmatpush.msra.mxu0 0.0
    %858 = vmatpush.msra.mxu0 %v124
    %859 = vmatpush.msra.mxu0 %v123
    %860 = vmatpush.msra.mxu0 %v122
    %861 = vmatpush.msra.mxu0 %v121
    %862 = vmatmul.f32.gmra.mxu0 %v844
    %v863 = vpop.f32.mrf.mxu0
    %v864 = vadd.f32 %v341, %v863
    %865 = vdwg.mxu0
    %v866 = vxor.u32 %v864, 2147483648
    %v867 = vmul.f32 %v866, 1.442695
    %v868 = vpow.pop %v867
    %v869 = vadd.f32 %v868, 1.0
    %v870 = vrcp.pop %v869
    %v871 = vmul.f32 %v869, %v870
    %v872 = vsub.f32 1.0, %v871
    %v873 = vmul.f32 %v870, %v872
    %v874 = vadd.f32 %v870, %v873
    %vm875 = vweird.f32 %v869
    %vm876 = vweird.f32 %v870
    %vm877 = vmor %vm875, %vm876
    %v878 = vsel %vm877, %v870, %v874
    %v879 = vand.u32 2147483647, %v869
    %vm880 = vcmp.eq.f32.partialorder %v879, 8.507059e+37
    %v881 = vand.u32 %v869, 2147483648
    %v882 = vor.u32 1.1754944e-38, %v881
    %v883 = vsel %vm880, %v882, %v878
    %v884 = vmul.f32 1.0, %v883
    %v886 = vrot.slane %v884, 1
    %888 = vst.msk [vmem:[#allocation14 + $0x2] sm:$0x1] %vm387, %v884
    %889 = vst.msk [vmem:[#allocation14 + $0xa] sm:$0x1] %vm387, %v886
    %v890 = vld [vmem:[#allocation6 + $0x3] sm:$0x1]
    %v891 = vld [vmem:[#allocation6 + $0xb] sm:$0x1]
    %v892 = vld [vmem:[#allocation2] sm:$0x3]
    %v893 = vld [vmem:[#allocation3] sm:$0x3]
    %v895 = vsel %vm130, %v892, 0
    %897 = vmatpush.msra.mxu0 0.0
    %898 = vmatpush.msra.mxu0 0.0
    %899 = vmatpush.msra.mxu0 0.0
    %900 = vmatpush.msra.mxu0 0.0
    %901 = vmatpush.msra.mxu0 0.0
    %902 = vmatpush.msra.mxu0 0.0
    %903 = vmatpush.msra.mxu0 0.0
    %904 = vmatpush.msra.mxu0 0.0
    %905 = vmatpush.msra.mxu0 0.0
    %906 = vmatpush.msra.mxu0 0.0
    %907 = vmatpush.msra.mxu0 0.0
    %908 = vmatpush.msra.mxu0 0.0
    %909 = vmatpush.msra.mxu0 %v114
    %910 = vmatpush.msra.mxu0 %v113
    %911 = vmatpush.msra.mxu0 %v112
    %912 = vmatpush.msra.mxu0 %v111
    %913 = vmatmul.f32.gmra.mxu0 %v895
    %v914 = vpop.f32.mrf.mxu0
    %v915 = vadd.f32 0.0, %v914
    %916 = vdwg.mxu0
    %v919 = vrot.slane %v891, 7
    %v920 = vsel %vm157, %v919, %v890
    %v921 = vsel %vm159, %v920, 0
    %923 = vmatpush.msra.mxu0 0.0
    %924 = vmatpush.msra.mxu0 0.0
    %925 = vmatpush.msra.mxu0 0.0
    %926 = vmatpush.msra.mxu0 0.0
    %927 = vmatpush.msra.mxu0 0.0
    %928 = vmatpush.msra.mxu0 0.0
    %929 = vmatpush.msra.mxu0 0.0
    %930 = vmatpush.msra.mxu0 0.0
    %931 = vmatpush.msra.mxu0 0.0
    %932 = vmatpush.msra.mxu0 0.0
    %933 = vmatpush.msra.mxu0 0.0
    %934 = vmatpush.msra.mxu0 0.0
    %935 = vmatpush.msra.mxu0 0.0
    %936 = vmatpush.msra.mxu0 0.0
    %937 = vmatpush.msra.mxu0 %v106
    %938 = vmatpush.msra.mxu0 %v105
    %939 = vmatmul.f32.gmra.mxu0 %v921
    %v940 = vpop.f32.mrf.mxu0
    %v941 = vadd.f32 %v915, %v940
    %942 = vdwg.mxu0
    %v943 = vadd.f32 %v941, %v183
    %v944 = vxor.u32 %v943, 2147483648
    %v945 = vmul.f32 %v944, 1.442695
    %v946 = vpow.pop %v945
    %v947 = vadd.f32 %v946, 1.0
    %v948 = vrcp.pop %v947
    %v949 = vmul.f32 %v947, %v948
    %v950 = vsub.f32 1.0, %v949
    %v951 = vmul.f32 %v948, %v950
    %v952 = vadd.f32 %v948, %v951
    %vm953 = vweird.f32 %v947
    %vm954 = vweird.f32 %v948
    %vm955 = vmor %vm953, %vm954
    %v956 = vsel %vm955, %v948, %v952
    %v957 = vand.u32 2147483647, %v947
    %vm958 = vcmp.eq.f32.partialorder %v957, 8.507059e+37
    %v959 = vand.u32 %v947, 2147483648
    %v960 = vor.u32 1.1754944e-38, %v959
    %v961 = vsel %vm958, %v960, %v956
    %v962 = vmul.f32 1.0, %v961
    %v963 = vtanh.pop %v943
    %965 = vrot.lane.b32.xlu0 %v893, 32
    %v966 = vpop.permute.xlu0 %965
    %v968 = vmul.f32 %v962, %v966
    %970 = vrot.lane.b32.xlu0 %v963, 64
    %v971 = vpop.permute.xlu0 %970
    %v973 = vmul.f32 %v962, %v971
    %975 = vrot.lane.b32.xlu0 %v973, 32
    %v976 = vpop.permute.xlu0 %975
    %v978 = vadd.f32 %v968, %v976
    %v979 = vtanh.pop %v978
    %981 = vrot.lane.b32.xlu0 %v979, 64
    %v982 = vpop.permute.xlu0 %981
    %v984 = vmul.f32 %v962, %v982
    %986 = vrot.lane.b32.xlu0 %v984, 32
    %v987 = vpop.permute.xlu0 %986
    %989 = vst.msk [vmem:[#allocation2] sm:$0x3] %vm231, %v987
    %991 = vrot.lane.b32.xlu0 %v978, 96
    %v992 = vpop.permute.xlu0 %991
    %994 = vst.msk [vmem:[#allocation3] sm:$0x3] %vm231, %v992
    %v995 = vld [vmem:[#allocation4] sm:$0x3]
    %v996 = vld [vmem:[#allocation5] sm:$0x3]
    %v998 = vsel %vm130, %v995, 0
    %1000 = vmatpush.msra.mxu0 0.0
    %1001 = vmatpush.msra.mxu0 0.0
    %1002 = vmatpush.msra.mxu0 0.0
    %1003 = vmatpush.msra.mxu0 0.0
    %1004 = vmatpush.msra.mxu0 0.0
    %1005 = vmatpush.msra.mxu0 0.0
    %1006 = vmatpush.msra.mxu0 0.0
    %1007 = vmatpush.msra.mxu0 0.0
    %1008 = vmatpush.msra.mxu0 0.0
    %1009 = vmatpush.msra.mxu0 0.0
    %1010 = vmatpush.msra.mxu0 0.0
    %1011 = vmatpush.msra.mxu0 0.0
    %1012 = vmatpush.msra.mxu0 %v118
    %1013 = vmatpush.msra.mxu0 %v117
    %1014 = vmatpush.msra.mxu0 %v116
    %1015 = vmatpush.msra.mxu0 %v115
    %1016 = vmatmul.f32.gmra.mxu0 %v998
    %v1017 = vpop.f32.mrf.mxu0
    %v1018 = vadd.f32 0.0, %v1017
    %1019 = vdwg.mxu0
    %v1020 = vsel %vm130, %v987, 0
    %1022 = vmatpush.msra.mxu0 0.0
    %1023 = vmatpush.msra.mxu0 0.0
    %1024 = vmatpush.msra.mxu0 0.0
    %1025 = vmatpush.msra.mxu0 0.0
    %1026 = vmatpush.msra.mxu0 0.0
    %1027 = vmatpush.msra.mxu0 0.0
    %1028 = vmatpush.msra.mxu0 0.0
    %1029 = vmatpush.msra.mxu0 0.0
    %1030 = vmatpush.msra.mxu0 0.0
    %1031 = vmatpush.msra.mxu0 0.0
    %1032 = vmatpush.msra.mxu0 0.0
    %1033 = vmatpush.msra.mxu0 0.0
    %1034 = vmatpush.msra.mxu0 %v110
    %1035 = vmatpush.msra.mxu0 %v109
    %1036 = vmatpush.msra.mxu0 %v108
    %1037 = vmatpush.msra.mxu0 %v107
    %1038 = vmatmul.f32.gmra.mxu0 %v1020
    %v1039 = vpop.f32.mrf.mxu0
    %v1040 = vadd.f32 %v1018, %v1039
    %1041 = vdwg.mxu0
    %v1042 = vadd.f32 %v1040, %v286
    %v1043 = vxor.u32 %v1042, 2147483648
    %v1044 = vmul.f32 %v1043, 1.442695
    %v1045 = vpow.pop %v1044
    %v1046 = vadd.f32 %v1045, 1.0
    %v1047 = vrcp.pop %v1046
    %v1048 = vmul.f32 %v1046, %v1047
    %v1049 = vsub.f32 1.0, %v1048
    %v1050 = vmul.f32 %v1047, %v1049
    %v1051 = vadd.f32 %v1047, %v1050
    %vm1052 = vweird.f32 %v1046
    %vm1053 = vweird.f32 %v1047
    %vm1054 = vmor %vm1052, %vm1053
    %v1055 = vsel %vm1054, %v1047, %v1051
    %v1056 = vand.u32 2147483647, %v1046
    %vm1057 = vcmp.eq.f32.partialorder %v1056, 8.507059e+37
    %v1058 = vand.u32 %v1046, 2147483648
    %v1059 = vor.u32 1.1754944e-38, %v1058
    %v1060 = vsel %vm1057, %v1059, %v1055
    %v1061 = vmul.f32 1.0, %v1060
    %v1062 = vtanh.pop %v1042
    %1064 = vrot.lane.b32.xlu0 %v996, 32
    %v1065 = vpop.permute.xlu0 %1064
    %v1067 = vmul.f32 %v1061, %v1065
    %1069 = vrot.lane.b32.xlu0 %v1062, 64
    %v1070 = vpop.permute.xlu0 %1069
    %v1072 = vmul.f32 %v1061, %v1070
    %1074 = vrot.lane.b32.xlu0 %v1072, 32
    %v1075 = vpop.permute.xlu0 %1074
    %v1077 = vadd.f32 %v1067, %v1075
    %v1078 = vtanh.pop %v1077
    %1080 = vrot.lane.b32.xlu0 %v1078, 64
    %v1081 = vpop.permute.xlu0 %1080
    %v1083 = vmul.f32 %v1061, %v1081
    %1085 = vrot.lane.b32.xlu0 %v1083, 32
    %v1086 = vpop.permute.xlu0 %1085
    %1088 = vst.msk [vmem:[#allocation4] sm:$0x3] %vm231, %v1086
    %1090 = vrot.lane.b32.xlu0 %v1077, 96
    %v1091 = vpop.permute.xlu0 %1090
    %1093 = vst.msk [vmem:[#allocation5] sm:$0x3] %vm231, %v1091
    %v1094 = vsel %vm130, %v1086, 0
    %1096 = vmatpush.msra.mxu0 0.0
    %1097 = vmatpush.msra.mxu0 0.0
    %1098 = vmatpush.msra.mxu0 0.0
    %1099 = vmatpush.msra.mxu0 0.0
    %1100 = vmatpush.msra.mxu0 0.0
    %1101 = vmatpush.msra.mxu0 0.0
    %1102 = vmatpush.msra.mxu0 0.0
    %1103 = vmatpush.msra.mxu0 0.0
    %1104 = vmatpush.msra.mxu0 0.0
    %1105 = vmatpush.msra.mxu0 0.0
    %1106 = vmatpush.msra.mxu0 0.0
    %1107 = vmatpush.msra.mxu0 0.0
    %1108 = vmatpush.msra.mxu0 %v124
    %1109 = vmatpush.msra.mxu0 %v123
    %1110 = vmatpush.msra.mxu0 %v122
    %1111 = vmatpush.msra.mxu0 %v121
    %1112 = vmatmul.f32.gmra.mxu0 %v1094
    %v1113 = vpop.f32.mrf.mxu0
    %v1114 = vadd.f32 %v341, %v1113
    %1115 = vdwg.mxu0
    %v1116 = vxor.u32 %v1114, 2147483648
    %v1117 = vmul.f32 %v1116, 1.442695
    %v1118 = vpow.pop %v1117
    %v1119 = vadd.f32 %v1118, 1.0
    %v1120 = vrcp.pop %v1119
    %v1121 = vmul.f32 %v1119, %v1120
    %v1122 = vsub.f32 1.0, %v1121
    %v1123 = vmul.f32 %v1120, %v1122
    %v1124 = vadd.f32 %v1120, %v1123
    %vm1125 = vweird.f32 %v1119
    %vm1126 = vweird.f32 %v1120
    %vm1127 = vmor %vm1125, %vm1126
    %v1128 = vsel %vm1127, %v1120, %v1124
    %v1129 = vand.u32 2147483647, %v1119
    %vm1130 = vcmp.eq.f32.partialorder %v1129, 8.507059e+37
    %v1131 = vand.u32 %v1119, 2147483648
    %v1132 = vor.u32 1.1754944e-38, %v1131
    %v1133 = vsel %vm1130, %v1132, %v1128
    %v1134 = vmul.f32 1.0, %v1133
    %v1136 = vrot.slane %v1134, 1
    %1138 = vst.msk [vmem:[#allocation14 + $0x3] sm:$0x1] %vm387, %v1134
    %1139 = vst.msk [vmem:[#allocation14 + $0xb] sm:$0x1] %vm387, %v1136
    %v1140 = vld [vmem:[#allocation6 + $0x4] sm:$0x1]
    %v1141 = vld [vmem:[#allocation6 + $0xc] sm:$0x1]
    %v1142 = vld [vmem:[#allocation2] sm:$0x3]
    %v1143 = vld [vmem:[#allocation3] sm:$0x3]
    %v1145 = vsel %vm130, %v1142, 0
    %1147 = vmatpush.msra.mxu0 0.0
    %1148 = vmatpush.msra.mxu0 0.0
    %1149 = vmatpush.msra.mxu0 0.0
    %1150 = vmatpush.msra.mxu0 0.0
    %1151 = vmatpush.msra.mxu0 0.0
    %1152 = vmatpush.msra.mxu0 0.0
    %1153 = vmatpush.msra.mxu0 0.0
    %1154 = vmatpush.msra.mxu0 0.0
    %1155 = vmatpush.msra.mxu0 0.0
    %1156 = vmatpush.msra.mxu0 0.0
    %1157 = vmatpush.msra.mxu0 0.0
    %1158 = vmatpush.msra.mxu0 0.0
    %1159 = vmatpush.msra.mxu0 %v114
    %1160 = vmatpush.msra.mxu0 %v113
    %1161 = vmatpush.msra.mxu0 %v112
    %1162 = vmatpush.msra.mxu0 %v111
    %1163 = vmatmul.f32.gmra.mxu0 %v1145
    %v1164 = vpop.f32.mrf.mxu0
    %v1165 = vadd.f32 0.0, %v1164
    %1166 = vdwg.mxu0
    %v1169 = vrot.slane %v1141, 7
    %v1170 = vsel %vm157, %v1169, %v1140
    %v1171 = vsel %vm159, %v1170, 0
    %1173 = vmatpush.msra.mxu0 0.0
    %1174 = vmatpush.msra.mxu0 0.0
    %1175 = vmatpush.msra.mxu0 0.0
    %1176 = vmatpush.msra.mxu0 0.0
    %1177 = vmatpush.msra.mxu0 0.0
    %1178 = vmatpush.msra.mxu0 0.0
    %1179 = vmatpush.msra.mxu0 0.0
    %1180 = vmatpush.msra.mxu0 0.0
    %1181 = vmatpush.msra.mxu0 0.0
    %1182 = vmatpush.msra.mxu0 0.0
    %1183 = vmatpush.msra.mxu0 0.0
    %1184 = vmatpush.msra.mxu0 0.0
    %1185 = vmatpush.msra.mxu0 0.0
    %1186 = vmatpush.msra.mxu0 0.0
    %1187 = vmatpush.msra.mxu0 %v106
    %1188 = vmatpush.msra.mxu0 %v105
    %1189 = vmatmul.f32.gmra.mxu0 %v1171
    %v1190 = vpop.f32.mrf.mxu0
    %v1191 = vadd.f32 %v1165, %v1190
    %1192 = vdwg.mxu0
    %v1193 = vadd.f32 %v1191, %v183
    %v1194 = vxor.u32 %v1193, 2147483648
    %v1195 = vmul.f32 %v1194, 1.442695
    %v1196 = vpow.pop %v1195
    %v1197 = vadd.f32 %v1196, 1.0
    %v1198 = vrcp.pop %v1197
    %v1199 = vmul.f32 %v1197, %v1198
    %v1200 = vsub.f32 1.0, %v1199
    %v1201 = vmul.f32 %v1198, %v1200
    %v1202 = vadd.f32 %v1198, %v1201
    %vm1203 = vweird.f32 %v1197
    %vm1204 = vweird.f32 %v1198
    %vm1205 = vmor %vm1203, %vm1204
    %v1206 = vsel %vm1205, %v1198, %v1202
    %v1207 = vand.u32 2147483647, %v1197
    %vm1208 = vcmp.eq.f32.partialorder %v1207, 8.507059e+37
    %v1209 = vand.u32 %v1197, 2147483648
    %v1210 = vor.u32 1.1754944e-38, %v1209
    %v1211 = vsel %vm1208, %v1210, %v1206
    %v1212 = vmul.f32 1.0, %v1211
    %v1213 = vtanh.pop %v1193
    %1215 = vrot.lane.b32.xlu0 %v1143, 32
    %v1216 = vpop.permute.xlu0 %1215
    %v1218 = vmul.f32 %v1212, %v1216
    %1220 = vrot.lane.b32.xlu0 %v1213, 64
    %v1221 = vpop.permute.xlu0 %1220
    %v1223 = vmul.f32 %v1212, %v1221
    %1225 = vrot.lane.b32.xlu0 %v1223, 32
    %v1226 = vpop.permute.xlu0 %1225
    %v1228 = vadd.f32 %v1218, %v1226
    %v1229 = vtanh.pop %v1228
    %1231 = vrot.lane.b32.xlu0 %v1229, 64
    %v1232 = vpop.permute.xlu0 %1231
    %v1234 = vmul.f32 %v1212, %v1232
    %1236 = vrot.lane.b32.xlu0 %v1234, 32
    %v1237 = vpop.permute.xlu0 %1236
    %1239 = vst.msk [vmem:[#allocation2] sm:$0x3] %vm231, %v1237
    %1241 = vrot.lane.b32.xlu0 %v1228, 96
    %v1242 = vpop.permute.xlu0 %1241
    %1244 = vst.msk [vmem:[#allocation3] sm:$0x3] %vm231, %v1242
    %v1245 = vld [vmem:[#allocation4] sm:$0x3]
    %v1246 = vld [vmem:[#allocation5] sm:$0x3]
    %v1248 = vsel %vm130, %v1245, 0
    %1250 = vmatpush.msra.mxu0 0.0
    %1251 = vmatpush.msra.mxu0 0.0
    %1252 = vmatpush.msra.mxu0 0.0
    %1253 = vmatpush.msra.mxu0 0.0
    %1254 = vmatpush.msra.mxu0 0.0
    %1255 = vmatpush.msra.mxu0 0.0
    %1256 = vmatpush.msra.mxu0 0.0
    %1257 = vmatpush.msra.mxu0 0.0
    %1258 = vmatpush.msra.mxu0 0.0
    %1259 = vmatpush.msra.mxu0 0.0
    %1260 = vmatpush.msra.mxu0 0.0
    %1261 = vmatpush.msra.mxu0 0.0
    %1262 = vmatpush.msra.mxu0 %v118
    %1263 = vmatpush.msra.mxu0 %v117
    %1264 = vmatpush.msra.mxu0 %v116
    %1265 = vmatpush.msra.mxu0 %v115
    %1266 = vmatmul.f32.gmra.mxu0 %v1248
    %v1267 = vpop.f32.mrf.mxu0
    %v1268 = vadd.f32 0.0, %v1267
    %1269 = vdwg.mxu0
    %v1270 = vsel %vm130, %v1237, 0
    %1272 = vmatpush.msra.mxu0 0.0
    %1273 = vmatpush.msra.mxu0 0.0
    %1274 = vmatpush.msra.mxu0 0.0
    %1275 = vmatpush.msra.mxu0 0.0
    %1276 = vmatpush.msra.mxu0 0.0
    %1277 = vmatpush.msra.mxu0 0.0
    %1278 = vmatpush.msra.mxu0 0.0
    %1279 = vmatpush.msra.mxu0 0.0
    %1280 = vmatpush.msra.mxu0 0.0
    %1281 = vmatpush.msra.mxu0 0.0
    %1282 = vmatpush.msra.mxu0 0.0
    %1283 = vmatpush.msra.mxu0 0.0
    %1284 = vmatpush.msra.mxu0 %v110
    %1285 = vmatpush.msra.mxu0 %v109
    %1286 = vmatpush.msra.mxu0 %v108
    %1287 = vmatpush.msra.mxu0 %v107
    %1288 = vmatmul.f32.gmra.mxu0 %v1270
    %v1289 = vpop.f32.mrf.mxu0
    %v1290 = vadd.f32 %v1268, %v1289
    %1291 = vdwg.mxu0
    %v1292 = vadd.f32 %v1290, %v286
    %v1293 = vxor.u32 %v1292, 2147483648
    %v1294 = vmul.f32 %v1293, 1.442695
    %v1295 = vpow.pop %v1294
    %v1296 = vadd.f32 %v1295, 1.0
    %v1297 = vrcp.pop %v1296
    %v1298 = vmul.f32 %v1296, %v1297
    %v1299 = vsub.f32 1.0, %v1298
    %v1300 = vmul.f32 %v1297, %v1299
    %v1301 = vadd.f32 %v1297, %v1300
    %vm1302 = vweird.f32 %v1296
    %vm1303 = vweird.f32 %v1297
    %vm1304 = vmor %vm1302, %vm1303
    %v1305 = vsel %vm1304, %v1297, %v1301
    %v1306 = vand.u32 2147483647, %v1296
    %vm1307 = vcmp.eq.f32.partialorder %v1306, 8.507059e+37
    %v1308 = vand.u32 %v1296, 2147483648
    %v1309 = vor.u32 1.1754944e-38, %v1308
    %v1310 = vsel %vm1307, %v1309, %v1305
    %v1311 = vmul.f32 1.0, %v1310
    %v1312 = vtanh.pop %v1292
    %1314 = vrot.lane.b32.xlu0 %v1246, 32
    %v1315 = vpop.permute.xlu0 %1314
    %v1317 = vmul.f32 %v1311, %v1315
    %1319 = vrot.lane.b32.xlu0 %v1312, 64
    %v1320 = vpop.permute.xlu0 %1319
    %v1322 = vmul.f32 %v1311, %v1320
    %1324 = vrot.lane.b32.xlu0 %v1322, 32
    %v1325 = vpop.permute.xlu0 %1324
    %v1327 = vadd.f32 %v1317, %v1325
    %v1328 = vtanh.pop %v1327
    %1330 = vrot.lane.b32.xlu0 %v1328, 64
    %v1331 = vpop.permute.xlu0 %1330
    %v1333 = vmul.f32 %v1311, %v1331
    %1335 = vrot.lane.b32.xlu0 %v1333, 32
    %v1336 = vpop.permute.xlu0 %1335
    %1338 = vst.msk [vmem:[#allocation4] sm:$0x3] %vm231, %v1336
    %1340 = vrot.lane.b32.xlu0 %v1327, 96
    %v1341 = vpop.permute.xlu0 %1340
    %1343 = vst.msk [vmem:[#allocation5] sm:$0x3] %vm231, %v1341
    %v1344 = vsel %vm130, %v1336, 0
    %1346 = vmatpush.msra.mxu0 0.0
    %1347 = vmatpush.msra.mxu0 0.0
    %1348 = vmatpush.msra.mxu0 0.0
    %1349 = vmatpush.msra.mxu0 0.0
    %1350 = vmatpush.msra.mxu0 0.0
    %1351 = vmatpush.msra.mxu0 0.0
    %1352 = vmatpush.msra.mxu0 0.0
    %1353 = vmatpush.msra.mxu0 0.0
    %1354 = vmatpush.msra.mxu0 0.0
    %1355 = vmatpush.msra.mxu0 0.0
    %1356 = vmatpush.msra.mxu0 0.0
    %1357 = vmatpush.msra.mxu0 0.0
    %1358 = vmatpush.msra.mxu0 %v124
    %1359 = vmatpush.msra.mxu0 %v123
    %1360 = vmatpush.msra.mxu0 %v122
    %1361 = vmatpush.msra.mxu0 %v121
    %1362 = vmatmul.f32.gmra.mxu0 %v1344
    %v1363 = vpop.f32.mrf.mxu0
    %v1364 = vadd.f32 %v341, %v1363
    %1365 = vdwg.mxu0
    %v1366 = vxor.u32 %v1364, 2147483648
    %v1367 = vmul.f32 %v1366, 1.442695
    %v1368 = vpow.pop %v1367
    %v1369 = vadd.f32 %v1368, 1.0
    %v1370 = vrcp.pop %v1369
    %v1371 = vmul.f32 %v1369, %v1370
    %v1372 = vsub.f32 1.0, %v1371
    %v1373 = vmul.f32 %v1370, %v1372
    %v1374 = vadd.f32 %v1370, %v1373
    %vm1375 = vweird.f32 %v1369
    %vm1376 = vweird.f32 %v1370
    %vm1377 = vmor %vm1375, %vm1376
    %v1378 = vsel %vm1377, %v1370, %v1374
    %v1379 = vand.u32 2147483647, %v1369
    %vm1380 = vcmp.eq.f32.partialorder %v1379, 8.507059e+37
    %v1381 = vand.u32 %v1369, 2147483648
    %v1382 = vor.u32 1.1754944e-38, %v1381
    %v1383 = vsel %vm1380, %v1382, %v1378
    %v1384 = vmul.f32 1.0, %v1383
    %v1386 = vrot.slane %v1384, 1
    %1388 = vst.msk [vmem:[#allocation14 + $0x4] sm:$0x1] %vm387, %v1384
    %1389 = vst.msk [vmem:[#allocation14 + $0xc] sm:$0x1] %vm387, %v1386
    %v1390 = vld [vmem:[#allocation6 + $0x5] sm:$0x1]
    %v1391 = vld [vmem:[#allocation6 + $0xd] sm:$0x1]
    %v1392 = vld [vmem:[#allocation2] sm:$0x3]
    %v1393 = vld [vmem:[#allocation3] sm:$0x3]
    %v1395 = vsel %vm130, %v1392, 0
    %1397 = vmatpush.msra.mxu0 0.0
    %1398 = vmatpush.msra.mxu0 0.0
    %1399 = vmatpush.msra.mxu0 0.0
    %1400 = vmatpush.msra.mxu0 0.0
    %1401 = vmatpush.msra.mxu0 0.0
    %1402 = vmatpush.msra.mxu0 0.0
    %1403 = vmatpush.msra.mxu0 0.0
    %1404 = vmatpush.msra.mxu0 0.0
    %1405 = vmatpush.msra.mxu0 0.0
    %1406 = vmatpush.msra.mxu0 0.0
    %1407 = vmatpush.msra.mxu0 0.0
    %1408 = vmatpush.msra.mxu0 0.0
    %1409 = vmatpush.msra.mxu0 %v114
    %1410 = vmatpush.msra.mxu0 %v113
    %1411 = vmatpush.msra.mxu0 %v112
    %1412 = vmatpush.msra.mxu0 %v111
    %1413 = vmatmul.f32.gmra.mxu0 %v1395
    %v1414 = vpop.f32.mrf.mxu0
    %v1415 = vadd.f32 0.0, %v1414
    %1416 = vdwg.mxu0
    %v1419 = vrot.slane %v1391, 7
    %v1420 = vsel %vm157, %v1419, %v1390
    %v1421 = vsel %vm159, %v1420, 0
    %1423 = vmatpush.msra.mxu0 0.0
    %1424 = vmatpush.msra.mxu0 0.0
    %1425 = vmatpush.msra.mxu0 0.0
    %1426 = vmatpush.msra.mxu0 0.0
    %1427 = vmatpush.msra.mxu0 0.0
    %1428 = vmatpush.msra.mxu0 0.0
    %1429 = vmatpush.msra.mxu0 0.0
    %1430 = vmatpush.msra.mxu0 0.0
    %1431 = vmatpush.msra.mxu0 0.0
    %1432 = vmatpush.msra.mxu0 0.0
    %1433 = vmatpush.msra.mxu0 0.0
    %1434 = vmatpush.msra.mxu0 0.0
    %1435 = vmatpush.msra.mxu0 0.0
    %1436 = vmatpush.msra.mxu0 0.0
    %1437 = vmatpush.msra.mxu0 %v106
    %1438 = vmatpush.msra.mxu0 %v105
    %1439 = vmatmul.f32.gmra.mxu0 %v1421
    %v1440 = vpop.f32.mrf.mxu0
    %v1441 = vadd.f32 %v1415, %v1440
    %1442 = vdwg.mxu0
    %v1443 = vadd.f32 %v1441, %v183
    %v1444 = vxor.u32 %v1443, 2147483648
    %v1445 = vmul.f32 %v1444, 1.442695
    %v1446 = vpow.pop %v1445
    %v1447 = vadd.f32 %v1446, 1.0
    %v1448 = vrcp.pop %v1447
    %v1449 = vmul.f32 %v1447, %v1448
    %v1450 = vsub.f32 1.0, %v1449
    %v1451 = vmul.f32 %v1448, %v1450
    %v1452 = vadd.f32 %v1448, %v1451
    %vm1453 = vweird.f32 %v1447
    %vm1454 = vweird.f32 %v1448
    %vm1455 = vmor %vm1453, %vm1454
    %v1456 = vsel %vm1455, %v1448, %v1452
    %v1457 = vand.u32 2147483647, %v1447
    %vm1458 = vcmp.eq.f32.partialorder %v1457, 8.507059e+37
    %v1459 = vand.u32 %v1447, 2147483648
    %v1460 = vor.u32 1.1754944e-38, %v1459
    %v1461 = vsel %vm1458, %v1460, %v1456
    %v1462 = vmul.f32 1.0, %v1461
    %v1463 = vtanh.pop %v1443
    %1465 = vrot.lane.b32.xlu0 %v1393, 32
    %v1466 = vpop.permute.xlu0 %1465
    %v1468 = vmul.f32 %v1462, %v1466
    %1470 = vrot.lane.b32.xlu0 %v1463, 64
    %v1471 = vpop.permute.xlu0 %1470
    %v1473 = vmul.f32 %v1462, %v1471
    %1475 = vrot.lane.b32.xlu0 %v1473, 32
    %v1476 = vpop.permute.xlu0 %1475
    %v1478 = vadd.f32 %v1468, %v1476
    %v1479 = vtanh.pop %v1478
    %1481 = vrot.lane.b32.xlu0 %v1479, 64
    %v1482 = vpop.permute.xlu0 %1481
    %v1484 = vmul.f32 %v1462, %v1482
    %1486 = vrot.lane.b32.xlu0 %v1484, 32
    %v1487 = vpop.permute.xlu0 %1486
    %1489 = vst.msk [vmem:[#allocation2] sm:$0x3] %vm231, %v1487
    %1491 = vrot.lane.b32.xlu0 %v1478, 96
    %v1492 = vpop.permute.xlu0 %1491
    %1494 = vst.msk [vmem:[#allocation3] sm:$0x3] %vm231, %v1492
    %v1495 = vld [vmem:[#allocation4] sm:$0x3]
    %v1496 = vld [vmem:[#allocation5] sm:$0x3]
    %v1498 = vsel %vm130, %v1495, 0
    %1500 = vmatpush.msra.mxu0 0.0
    %1501 = vmatpush.msra.mxu0 0.0
    %1502 = vmatpush.msra.mxu0 0.0
    %1503 = vmatpush.msra.mxu0 0.0
    %1504 = vmatpush.msra.mxu0 0.0
    %1505 = vmatpush.msra.mxu0 0.0
    %1506 = vmatpush.msra.mxu0 0.0
    %1507 = vmatpush.msra.mxu0 0.0
    %1508 = vmatpush.msra.mxu0 0.0
    %1509 = vmatpush.msra.mxu0 0.0
    %1510 = vmatpush.msra.mxu0 0.0
    %1511 = vmatpush.msra.mxu0 0.0
    %1512 = vmatpush.msra.mxu0 %v118
    %1513 = vmatpush.msra.mxu0 %v117
    %1514 = vmatpush.msra.mxu0 %v116
    %1515 = vmatpush.msra.mxu0 %v115
    %1516 = vmatmul.f32.gmra.mxu0 %v1498
    %v1517 = vpop.f32.mrf.mxu0
    %v1518 = vadd.f32 0.0, %v1517
    %1519 = vdwg.mxu0
    %v1520 = vsel %vm130, %v1487, 0
    %1522 = vmatpush.msra.mxu0 0.0
    %1523 = vmatpush.msra.mxu0 0.0
    %1524 = vmatpush.msra.mxu0 0.0
    %1525 = vmatpush.msra.mxu0 0.0
    %1526 = vmatpush.msra.mxu0 0.0
    %1527 = vmatpush.msra.mxu0 0.0
    %1528 = vmatpush.msra.mxu0 0.0
    %1529 = vmatpush.msra.mxu0 0.0
    %1530 = vmatpush.msra.mxu0 0.0
    %1531 = vmatpush.msra.mxu0 0.0
    %1532 = vmatpush.msra.mxu0 0.0
    %1533 = vmatpush.msra.mxu0 0.0
    %1534 = vmatpush.msra.mxu0 %v110
    %1535 = vmatpush.msra.mxu0 %v109
    %1536 = vmatpush.msra.mxu0 %v108
    %1537 = vmatpush.msra.mxu0 %v107
    %1538 = vmatmul.f32.gmra.mxu0 %v1520
    %v1539 = vpop.f32.mrf.mxu0
    %v1540 = vadd.f32 %v1518, %v1539
    %1541 = vdwg.mxu0
    %v1542 = vadd.f32 %v1540, %v286
    %v1543 = vxor.u32 %v1542, 2147483648
    %v1544 = vmul.f32 %v1543, 1.442695
    %v1545 = vpow.pop %v1544
    %v1546 = vadd.f32 %v1545, 1.0
    %v1547 = vrcp.pop %v1546
    %v1548 = vmul.f32 %v1546, %v1547
    %v1549 = vsub.f32 1.0, %v1548
    %v1550 = vmul.f32 %v1547, %v1549
    %v1551 = vadd.f32 %v1547, %v1550
    %vm1552 = vweird.f32 %v1546
    %vm1553 = vweird.f32 %v1547
    %vm1554 = vmor %vm1552, %vm1553
    %v1555 = vsel %vm1554, %v1547, %v1551
    %v1556 = vand.u32 2147483647, %v1546
    %vm1557 = vcmp.eq.f32.partialorder %v1556, 8.507059e+37
    %v1558 = vand.u32 %v1546, 2147483648
    %v1559 = vor.u32 1.1754944e-38, %v1558
    %v1560 = vsel %vm1557, %v1559, %v1555
    %v1561 = vmul.f32 1.0, %v1560
    %v1562 = vtanh.pop %v1542
    %1564 = vrot.lane.b32.xlu0 %v1496, 32
    %v1565 = vpop.permute.xlu0 %1564
    %v1567 = vmul.f32 %v1561, %v1565
    %1569 = vrot.lane.b32.xlu0 %v1562, 64
    %v1570 = vpop.permute.xlu0 %1569
    %v1572 = vmul.f32 %v1561, %v1570
    %1574 = vrot.lane.b32.xlu0 %v1572, 32
    %v1575 = vpop.permute.xlu0 %1574
    %v1577 = vadd.f32 %v1567, %v1575
    %v1578 = vtanh.pop %v1577
    %1580 = vrot.lane.b32.xlu0 %v1578, 64
    %v1581 = vpop.permute.xlu0 %1580
    %v1583 = vmul.f32 %v1561, %v1581
    %1585 = vrot.lane.b32.xlu0 %v1583, 32
    %v1586 = vpop.permute.xlu0 %1585
    %1588 = vst.msk [vmem:[#allocation4] sm:$0x3] %vm231, %v1586
    %1590 = vrot.lane.b32.xlu0 %v1577, 96
    %v1591 = vpop.permute.xlu0 %1590
    %1593 = vst.msk [vmem:[#allocation5] sm:$0x3] %vm231, %v1591
    %v1594 = vsel %vm130, %v1586, 0
    %1596 = vmatpush.msra.mxu0 0.0
    %1597 = vmatpush.msra.mxu0 0.0
    %1598 = vmatpush.msra.mxu0 0.0
    %1599 = vmatpush.msra.mxu0 0.0
    %1600 = vmatpush.msra.mxu0 0.0
    %1601 = vmatpush.msra.mxu0 0.0
    %1602 = vmatpush.msra.mxu0 0.0
    %1603 = vmatpush.msra.mxu0 0.0
    %1604 = vmatpush.msra.mxu0 0.0
    %1605 = vmatpush.msra.mxu0 0.0
    %1606 = vmatpush.msra.mxu0 0.0
    %1607 = vmatpush.msra.mxu0 0.0
    %1608 = vmatpush.msra.mxu0 %v124
    %1609 = vmatpush.msra.mxu0 %v123
    %1610 = vmatpush.msra.mxu0 %v122
    %1611 = vmatpush.msra.mxu0 %v121
    %1612 = vmatmul.f32.gmra.mxu0 %v1594
    %v1613 = vpop.f32.mrf.mxu0
    %v1614 = vadd.f32 %v341, %v1613
    %1615 = vdwg.mxu0
    %v1616 = vxor.u32 %v1614, 2147483648
    %v1617 = vmul.f32 %v1616, 1.442695
    %v1618 = vpow.pop %v1617
    %v1619 = vadd.f32 %v1618, 1.0
    %v1620 = vrcp.pop %v1619
    %v1621 = vmul.f32 %v1619, %v1620
    %v1622 = vsub.f32 1.0, %v1621
    %v1623 = vmul.f32 %v1620, %v1622
    %v1624 = vadd.f32 %v1620, %v1623
    %vm1625 = vweird.f32 %v1619
    %vm1626 = vweird.f32 %v1620
    %vm1627 = vmor %vm1625, %vm1626
    %v1628 = vsel %vm1627, %v1620, %v1624
    %v1629 = vand.u32 2147483647, %v1619
    %vm1630 = vcmp.eq.f32.partialorder %v1629, 8.507059e+37
    %v1631 = vand.u32 %v1619, 2147483648
    %v1632 = vor.u32 1.1754944e-38, %v1631
    %v1633 = vsel %vm1630, %v1632, %v1628
    %v1634 = vmul.f32 1.0, %v1633
    %v1636 = vrot.slane %v1634, 1
    %1638 = vst.msk [vmem:[#allocation14 + $0x5] sm:$0x1] %vm387, %v1634
    %1639 = vst.msk [vmem:[#allocation14 + $0xd] sm:$0x1] %vm387, %v1636
    %v1640 = vld [vmem:[#allocation6 + $0x6] sm:$0x1]
    %v1641 = vld [vmem:[#allocation6 + $0xe] sm:$0x1]
    %v1642 = vld [vmem:[#allocation2] sm:$0x3]
    %v1643 = vld [vmem:[#allocation3] sm:$0x3]
    %v1645 = vsel %vm130, %v1642, 0
    %1647 = vmatpush.msra.mxu0 0.0
    %1648 = vmatpush.msra.mxu0 0.0
    %1649 = vmatpush.msra.mxu0 0.0
    %1650 = vmatpush.msra.mxu0 0.0
    %1651 = vmatpush.msra.mxu0 0.0
    %1652 = vmatpush.msra.mxu0 0.0
    %1653 = vmatpush.msra.mxu0 0.0
    %1654 = vmatpush.msra.mxu0 0.0
    %1655 = vmatpush.msra.mxu0 0.0
    %1656 = vmatpush.msra.mxu0 0.0
    %1657 = vmatpush.msra.mxu0 0.0
    %1658 = vmatpush.msra.mxu0 0.0
    %1659 = vmatpush.msra.mxu0 %v114
    %1660 = vmatpush.msra.mxu0 %v113
    %1661 = vmatpush.msra.mxu0 %v112
    %1662 = vmatpush.msra.mxu0 %v111
    %1663 = vmatmul.f32.gmra.mxu0 %v1645
    %v1664 = vpop.f32.mrf.mxu0
    %v1665 = vadd.f32 0.0, %v1664
    %1666 = vdwg.mxu0
    %v1669 = vrot.slane %v1641, 7
    %v1670 = vsel %vm157, %v1669, %v1640
    %v1671 = vsel %vm159, %v1670, 0
    %1673 = vmatpush.msra.mxu0 0.0
    %1674 = vmatpush.msra.mxu0 0.0
    %1675 = vmatpush.msra.mxu0 0.0
    %1676 = vmatpush.msra.mxu0 0.0
    %1677 = vmatpush.msra.mxu0 0.0
    %1678 = vmatpush.msra.mxu0 0.0
    %1679 = vmatpush.msra.mxu0 0.0
    %1680 = vmatpush.msra.mxu0 0.0
    %1681 = vmatpush.msra.mxu0 0.0
    %1682 = vmatpush.msra.mxu0 0.0
    %1683 = vmatpush.msra.mxu0 0.0
    %1684 = vmatpush.msra.mxu0 0.0
    %1685 = vmatpush.msra.mxu0 0.0
    %1686 = vmatpush.msra.mxu0 0.0
    %1687 = vmatpush.msra.mxu0 %v106
    %1688 = vmatpush.msra.mxu0 %v105
    %1689 = vmatmul.f32.gmra.mxu0 %v1671
    %v1690 = vpop.f32.mrf.mxu0
    %v1691 = vadd.f32 %v1665, %v1690
    %1692 = vdwg.mxu0
    %v1693 = vadd.f32 %v1691, %v183
    %v1694 = vxor.u32 %v1693, 2147483648
    %v1695 = vmul.f32 %v1694, 1.442695
    %v1696 = vpow.pop %v1695
    %v1697 = vadd.f32 %v1696, 1.0
    %v1698 = vrcp.pop %v1697
    %v1699 = vmul.f32 %v1697, %v1698
    %v1700 = vsub.f32 1.0, %v1699
    %v1701 = vmul.f32 %v1698, %v1700
    %v1702 = vadd.f32 %v1698, %v1701
    %vm1703 = vweird.f32 %v1697
    %vm1704 = vweird.f32 %v1698
    %vm1705 = vmor %vm1703, %vm1704
    %v1706 = vsel %vm1705, %v1698, %v1702
    %v1707 = vand.u32 2147483647, %v1697
    %vm1708 = vcmp.eq.f32.partialorder %v1707, 8.507059e+37
    %v1709 = vand.u32 %v1697, 2147483648
    %v1710 = vor.u32 1.1754944e-38, %v1709
    %v1711 = vsel %vm1708, %v1710, %v1706
    %v1712 = vmul.f32 1.0, %v1711
    %v1713 = vtanh.pop %v1693
    %1715 = vrot.lane.b32.xlu0 %v1643, 32
    %v1716 = vpop.permute.xlu0 %1715
    %v1718 = vmul.f32 %v1712, %v1716
    %1720 = vrot.lane.b32.xlu0 %v1713, 64
    %v1721 = vpop.permute.xlu0 %1720
    %v1723 = vmul.f32 %v1712, %v1721
    %1725 = vrot.lane.b32.xlu0 %v1723, 32
    %v1726 = vpop.permute.xlu0 %1725
    %v1728 = vadd.f32 %v1718, %v1726
    %v1729 = vtanh.pop %v1728
    %1731 = vrot.lane.b32.xlu0 %v1729, 64
    %v1732 = vpop.permute.xlu0 %1731
    %v1734 = vmul.f32 %v1712, %v1732
    %1736 = vrot.lane.b32.xlu0 %v1734, 32
    %v1737 = vpop.permute.xlu0 %1736
    %1739 = vst.msk [vmem:[#allocation2] sm:$0x3] %vm231, %v1737
    %1741 = vrot.lane.b32.xlu0 %v1728, 96
    %v1742 = vpop.permute.xlu0 %1741
    %1744 = vst.msk [vmem:[#allocation3] sm:$0x3] %vm231, %v1742
    %v1745 = vld [vmem:[#allocation4] sm:$0x3]
    %v1746 = vld [vmem:[#allocation5] sm:$0x3]
    %v1748 = vsel %vm130, %v1745, 0
    %1750 = vmatpush.msra.mxu0 0.0
    %1751 = vmatpush.msra.mxu0 0.0
    %1752 = vmatpush.msra.mxu0 0.0
    %1753 = vmatpush.msra.mxu0 0.0
    %1754 = vmatpush.msra.mxu0 0.0
    %1755 = vmatpush.msra.mxu0 0.0
    %1756 = vmatpush.msra.mxu0 0.0
    %1757 = vmatpush.msra.mxu0 0.0
    %1758 = vmatpush.msra.mxu0 0.0
    %1759 = vmatpush.msra.mxu0 0.0
    %1760 = vmatpush.msra.mxu0 0.0
    %1761 = vmatpush.msra.mxu0 0.0
    %1762 = vmatpush.msra.mxu0 %v118
    %1763 = vmatpush.msra.mxu0 %v117
    %1764 = vmatpush.msra.mxu0 %v116
    %1765 = vmatpush.msra.mxu0 %v115
    %1766 = vmatmul.f32.gmra.mxu0 %v1748
    %v1767 = vpop.f32.mrf.mxu0
    %v1768 = vadd.f32 0.0, %v1767
    %1769 = vdwg.mxu0
    %v1770 = vsel %vm130, %v1737, 0
    %1772 = vmatpush.msra.mxu0 0.0
    %1773 = vmatpush.msra.mxu0 0.0
    %1774 = vmatpush.msra.mxu0 0.0
    %1775 = vmatpush.msra.mxu0 0.0
    %1776 = vmatpush.msra.mxu0 0.0
    %1777 = vmatpush.msra.mxu0 0.0
    %1778 = vmatpush.msra.mxu0 0.0
    %1779 = vmatpush.msra.mxu0 0.0
    %1780 = vmatpush.msra.mxu0 0.0
    %1781 = vmatpush.msra.mxu0 0.0
    %1782 = vmatpush.msra.mxu0 0.0
    %1783 = vmatpush.msra.mxu0 0.0
    %1784 = vmatpush.msra.mxu0 %v110
    %1785 = vmatpush.msra.mxu0 %v109
    %1786 = vmatpush.msra.mxu0 %v108
    %1787 = vmatpush.msra.mxu0 %v107
    %1788 = vmatmul.f32.gmra.mxu0 %v1770
    %v1789 = vpop.f32.mrf.mxu0
    %v1790 = vadd.f32 %v1768, %v1789
    %1791 = vdwg.mxu0
    %v1792 = vadd.f32 %v1790, %v286
    %v1793 = vxor.u32 %v1792, 2147483648
    %v1794 = vmul.f32 %v1793, 1.442695
    %v1795 = vpow.pop %v1794
    %v1796 = vadd.f32 %v1795, 1.0
    %v1797 = vrcp.pop %v1796
    %v1798 = vmul.f32 %v1796, %v1797
    %v1799 = vsub.f32 1.0, %v1798
    %v1800 = vmul.f32 %v1797, %v1799
    %v1801 = vadd.f32 %v1797, %v1800
    %vm1802 = vweird.f32 %v1796
    %vm1803 = vweird.f32 %v1797
    %vm1804 = vmor %vm1802, %vm1803
    %v1805 = vsel %vm1804, %v1797, %v1801
    %v1806 = vand.u32 2147483647, %v1796
    %vm1807 = vcmp.eq.f32.partialorder %v1806, 8.507059e+37
    %v1808 = vand.u32 %v1796, 2147483648
    %v1809 = vor.u32 1.1754944e-38, %v1808
    %v1810 = vsel %vm1807, %v1809, %v1805
    %v1811 = vmul.f32 1.0, %v1810
    %v1812 = vtanh.pop %v1792
    %1814 = vrot.lane.b32.xlu0 %v1746, 32
    %v1815 = vpop.permute.xlu0 %1814
    %v1817 = vmul.f32 %v1811, %v1815
    %1819 = vrot.lane.b32.xlu0 %v1812, 64
    %v1820 = vpop.permute.xlu0 %1819
    %v1822 = vmul.f32 %v1811, %v1820
    %1824 = vrot.lane.b32.xlu0 %v1822, 32
    %v1825 = vpop.permute.xlu0 %1824
    %v1827 = vadd.f32 %v1817, %v1825
    %v1828 = vtanh.pop %v1827
    %1830 = vrot.lane.b32.xlu0 %v1828, 64
    %v1831 = vpop.permute.xlu0 %1830
    %v1833 = vmul.f32 %v1811, %v1831
    %1835 = vrot.lane.b32.xlu0 %v1833, 32
    %v1836 = vpop.permute.xlu0 %1835
    %1838 = vst.msk [vmem:[#allocation4] sm:$0x3] %vm231, %v1836
    %1840 = vrot.lane.b32.xlu0 %v1827, 96
    %v1841 = vpop.permute.xlu0 %1840
    %1843 = vst.msk [vmem:[#allocation5] sm:$0x3] %vm231, %v1841
    %v1844 = vsel %vm130, %v1836, 0
    %1846 = vmatpush.msra.mxu0 0.0
    %1847 = vmatpush.msra.mxu0 0.0
    %1848 = vmatpush.msra.mxu0 0.0
    %1849 = vmatpush.msra.mxu0 0.0
    %1850 = vmatpush.msra.mxu0 0.0
    %1851 = vmatpush.msra.mxu0 0.0
    %1852 = vmatpush.msra.mxu0 0.0
    %1853 = vmatpush.msra.mxu0 0.0
    %1854 = vmatpush.msra.mxu0 0.0
    %1855 = vmatpush.msra.mxu0 0.0
    %1856 = vmatpush.msra.mxu0 0.0
    %1857 = vmatpush.msra.mxu0 0.0
    %1858 = vmatpush.msra.mxu0 %v124
    %1859 = vmatpush.msra.mxu0 %v123
    %1860 = vmatpush.msra.mxu0 %v122
    %1861 = vmatpush.msra.mxu0 %v121
    %1862 = vmatmul.f32.gmra.mxu0 %v1844
    %v1863 = vpop.f32.mrf.mxu0
    %v1864 = vadd.f32 %v341, %v1863
    %1865 = vdwg.mxu0
    %v1866 = vxor.u32 %v1864, 2147483648
    %v1867 = vmul.f32 %v1866, 1.442695
    %v1868 = vpow.pop %v1867
    %v1869 = vadd.f32 %v1868, 1.0
    %v1870 = vrcp.pop %v1869
    %v1871 = vmul.f32 %v1869, %v1870
    %v1872 = vsub.f32 1.0, %v1871
    %v1873 = vmul.f32 %v1870, %v1872
    %v1874 = vadd.f32 %v1870, %v1873
    %vm1875 = vweird.f32 %v1869
    %vm1876 = vweird.f32 %v1870
    %vm1877 = vmor %vm1875, %vm1876
    %v1878 = vsel %vm1877, %v1870, %v1874
    %v1879 = vand.u32 2147483647, %v1869
    %vm1880 = vcmp.eq.f32.partialorder %v1879, 8.507059e+37
    %v1881 = vand.u32 %v1869, 2147483648
    %v1882 = vor.u32 1.1754944e-38, %v1881
    %v1883 = vsel %vm1880, %v1882, %v1878
    %v1884 = vmul.f32 1.0, %v1883
    %v1886 = vrot.slane %v1884, 1
    %1888 = vst.msk [vmem:[#allocation14 + $0x6] sm:$0x1] %vm387, %v1884
    %1889 = vst.msk [vmem:[#allocation14 + $0xe] sm:$0x1] %vm387, %v1886
    %v1890 = vld [vmem:[#allocation6 + $0x7] sm:$0x1]
    %v1891 = vld [vmem:[#allocation6 + $0xf] sm:$0x1]
    %v1892 = vld [vmem:[#allocation2] sm:$0x3]
    %v1893 = vld [vmem:[#allocation3] sm:$0x3]
    %v1895 = vsel %vm130, %v1892, 0
    %1897 = vmatpush.msra.mxu0 0.0
    %1898 = vmatpush.msra.mxu0 0.0
    %1899 = vmatpush.msra.mxu0 0.0
    %1900 = vmatpush.msra.mxu0 0.0
    %1901 = vmatpush.msra.mxu0 0.0
    %1902 = vmatpush.msra.mxu0 0.0
    %1903 = vmatpush.msra.mxu0 0.0
    %1904 = vmatpush.msra.mxu0 0.0
    %1905 = vmatpush.msra.mxu0 0.0
    %1906 = vmatpush.msra.mxu0 0.0
    %1907 = vmatpush.msra.mxu0 0.0
    %1908 = vmatpush.msra.mxu0 0.0
    %1909 = vmatpush.msra.mxu0 %v114
    %1910 = vmatpush.msra.mxu0 %v113
    %1911 = vmatpush.msra.mxu0 %v112
    %1912 = vmatpush.msra.mxu0 %v111
    %1913 = vmatmul.f32.gmra.mxu0 %v1895
    %v1914 = vpop.f32.mrf.mxu0
    %v1915 = vadd.f32 0.0, %v1914
    %1916 = vdwg.mxu0
    %v1919 = vrot.slane %v1891, 7
    %v1920 = vsel %vm157, %v1919, %v1890
    %v1921 = vsel %vm159, %v1920, 0
    %1923 = vmatpush.msra.mxu0 0.0
    %1924 = vmatpush.msra.mxu0 0.0
    %1925 = vmatpush.msra.mxu0 0.0
    %1926 = vmatpush.msra.mxu0 0.0
    %1927 = vmatpush.msra.mxu0 0.0
    %1928 = vmatpush.msra.mxu0 0.0
    %1929 = vmatpush.msra.mxu0 0.0
    %1930 = vmatpush.msra.mxu0 0.0
    %1931 = vmatpush.msra.mxu0 0.0
    %1932 = vmatpush.msra.mxu0 0.0
    %1933 = vmatpush.msra.mxu0 0.0
    %1934 = vmatpush.msra.mxu0 0.0
    %1935 = vmatpush.msra.mxu0 0.0
    %1936 = vmatpush.msra.mxu0 0.0
    %1937 = vmatpush.msra.mxu0 %v106
    %1938 = vmatpush.msra.mxu0 %v105
    %1939 = vmatmul.f32.gmra.mxu0 %v1921
    %v1940 = vpop.f32.mrf.mxu0
    %v1941 = vadd.f32 %v1915, %v1940
    %1942 = vdwg.mxu0
    %v1943 = vadd.f32 %v1941, %v183
    %v1944 = vxor.u32 %v1943, 2147483648
    %v1945 = vmul.f32 %v1944, 1.442695
    %v1946 = vpow.pop %v1945
    %v1947 = vadd.f32 %v1946, 1.0
    %v1948 = vrcp.pop %v1947
    %v1949 = vmul.f32 %v1947, %v1948
    %v1950 = vsub.f32 1.0, %v1949
    %v1951 = vmul.f32 %v1948, %v1950
    %v1952 = vadd.f32 %v1948, %v1951
    %vm1953 = vweird.f32 %v1947
    %vm1954 = vweird.f32 %v1948
    %vm1955 = vmor %vm1953, %vm1954
    %v1956 = vsel %vm1955, %v1948, %v1952
    %v1957 = vand.u32 2147483647, %v1947
    %vm1958 = vcmp.eq.f32.partialorder %v1957, 8.507059e+37
    %v1959 = vand.u32 %v1947, 2147483648
    %v1960 = vor.u32 1.1754944e-38, %v1959
    %v1961 = vsel %vm1958, %v1960, %v1956
    %v1962 = vmul.f32 1.0, %v1961
    %v1963 = vtanh.pop %v1943
    %1965 = vrot.lane.b32.xlu0 %v1893, 32
    %v1966 = vpop.permute.xlu0 %1965
    %v1968 = vmul.f32 %v1962, %v1966
    %1970 = vrot.lane.b32.xlu0 %v1963, 64
    %v1971 = vpop.permute.xlu0 %1970
    %v1973 = vmul.f32 %v1962, %v1971
    %1975 = vrot.lane.b32.xlu0 %v1973, 32
    %v1976 = vpop.permute.xlu0 %1975
    %v1978 = vadd.f32 %v1968, %v1976
    %v1979 = vtanh.pop %v1978
    %1981 = vrot.lane.b32.xlu0 %v1979, 64
    %v1982 = vpop.permute.xlu0 %1981
    %v1984 = vmul.f32 %v1962, %v1982
    %1986 = vrot.lane.b32.xlu0 %v1984, 32
    %v1987 = vpop.permute.xlu0 %1986
    %1989 = vst.msk [vmem:[#allocation2] sm:$0x3] %vm231, %v1987
    %1991 = vrot.lane.b32.xlu0 %v1978, 96
    %v1992 = vpop.permute.xlu0 %1991
    %1994 = vst.msk [vmem:[#allocation3] sm:$0x3] %vm231, %v1992
    %v1995 = vld [vmem:[#allocation4] sm:$0x3]
    %v1996 = vld [vmem:[#allocation5] sm:$0x3]
    %v1998 = vsel %vm130, %v1995, 0
    %2000 = vmatpush.msra.mxu0 0.0
    %2001 = vmatpush.msra.mxu0 0.0
    %2002 = vmatpush.msra.mxu0 0.0
    %2003 = vmatpush.msra.mxu0 0.0
    %2004 = vmatpush.msra.mxu0 0.0
    %2005 = vmatpush.msra.mxu0 0.0
    %2006 = vmatpush.msra.mxu0 0.0
    %2007 = vmatpush.msra.mxu0 0.0
    %2008 = vmatpush.msra.mxu0 0.0
    %2009 = vmatpush.msra.mxu0 0.0
    %2010 = vmatpush.msra.mxu0 0.0
    %2011 = vmatpush.msra.mxu0 0.0
    %2012 = vmatpush.msra.mxu0 %v118
    %2013 = vmatpush.msra.mxu0 %v117
    %2014 = vmatpush.msra.mxu0 %v116
    %2015 = vmatpush.msra.mxu0 %v115
    %2016 = vmatmul.f32.gmra.mxu0 %v1998
    %v2017 = vpop.f32.mrf.mxu0
    %v2018 = vadd.f32 0.0, %v2017
    %2019 = vdwg.mxu0
    %v2020 = vsel %vm130, %v1987, 0
    %2022 = vmatpush.msra.mxu0 0.0
    %2023 = vmatpush.msra.mxu0 0.0
    %2024 = vmatpush.msra.mxu0 0.0
    %2025 = vmatpush.msra.mxu0 0.0
    %2026 = vmatpush.msra.mxu0 0.0
    %2027 = vmatpush.msra.mxu0 0.0
    %2028 = vmatpush.msra.mxu0 0.0
    %2029 = vmatpush.msra.mxu0 0.0
    %2030 = vmatpush.msra.mxu0 0.0
    %2031 = vmatpush.msra.mxu0 0.0
    %2032 = vmatpush.msra.mxu0 0.0
    %2033 = vmatpush.msra.mxu0 0.0
    %2034 = vmatpush.msra.mxu0 %v110
    %2035 = vmatpush.msra.mxu0 %v109
    %2036 = vmatpush.msra.mxu0 %v108
    %2037 = vmatpush.msra.mxu0 %v107
    %2038 = vmatmul.f32.gmra.mxu0 %v2020
    %v2039 = vpop.f32.mrf.mxu0
    %v2040 = vadd.f32 %v2018, %v2039
    %2041 = vdwg.mxu0
    %v2042 = vadd.f32 %v2040, %v286
    %v2043 = vxor.u32 %v2042, 2147483648
    %v2044 = vmul.f32 %v2043, 1.442695
    %v2045 = vpow.pop %v2044
    %v2046 = vadd.f32 %v2045, 1.0
    %v2047 = vrcp.pop %v2046
    %v2048 = vmul.f32 %v2046, %v2047
    %v2049 = vsub.f32 1.0, %v2048
    %v2050 = vmul.f32 %v2047, %v2049
    %v2051 = vadd.f32 %v2047, %v2050
    %vm2052 = vweird.f32 %v2046
    %vm2053 = vweird.f32 %v2047
    %vm2054 = vmor %vm2052, %vm2053
    %v2055 = vsel %vm2054, %v2047, %v2051
    %v2056 = vand.u32 2147483647, %v2046
    %vm2057 = vcmp.eq.f32.partialorder %v2056, 8.507059e+37
    %v2058 = vand.u32 %v2046, 2147483648
    %v2059 = vor.u32 1.1754944e-38, %v2058
    %v2060 = vsel %vm2057, %v2059, %v2055
    %v2061 = vmul.f32 1.0, %v2060
    %v2062 = vtanh.pop %v2042
    %2064 = vrot.lane.b32.xlu0 %v1996, 32
    %v2065 = vpop.permute.xlu0 %2064
    %v2067 = vmul.f32 %v2061, %v2065
    %2069 = vrot.lane.b32.xlu0 %v2062, 64
    %v2070 = vpop.permute.xlu0 %2069
    %v2072 = vmul.f32 %v2061, %v2070
    %2074 = vrot.lane.b32.xlu0 %v2072, 32
    %v2075 = vpop.permute.xlu0 %2074
    %v2077 = vadd.f32 %v2067, %v2075
    %v2078 = vtanh.pop %v2077
    %2080 = vrot.lane.b32.xlu0 %v2078, 64
    %v2081 = vpop.permute.xlu0 %2080
    %v2083 = vmul.f32 %v2061, %v2081
    %2085 = vrot.lane.b32.xlu0 %v2083, 32
    %v2086 = vpop.permute.xlu0 %2085
    %2088 = vst.msk [vmem:[#allocation4] sm:$0x3] %vm231, %v2086
    %2090 = vrot.lane.b32.xlu0 %v2077, 96
    %v2091 = vpop.permute.xlu0 %2090
    %2093 = vst.msk [vmem:[#allocation5] sm:$0x3] %vm231, %v2091
    %v2094 = vsel %vm130, %v2086, 0
    %2096 = vmatpush.msra.mxu0 0.0
    %2097 = vmatpush.msra.mxu0 0.0
    %2098 = vmatpush.msra.mxu0 0.0
    %2099 = vmatpush.msra.mxu0 0.0
    %2100 = vmatpush.msra.mxu0 0.0
    %2101 = vmatpush.msra.mxu0 0.0
    %2102 = vmatpush.msra.mxu0 0.0
    %2103 = vmatpush.msra.mxu0 0.0
    %2104 = vmatpush.msra.mxu0 0.0
    %2105 = vmatpush.msra.mxu0 0.0
    %2106 = vmatpush.msra.mxu0 0.0
    %2107 = vmatpush.msra.mxu0 0.0
    %2108 = vmatpush.msra.mxu0 %v124
    %2109 = vmatpush.msra.mxu0 %v123
    %2110 = vmatpush.msra.mxu0 %v122
    %2111 = vmatpush.msra.mxu0 %v121
    %2112 = vmatmul.f32.gmra.mxu0 %v2094
    %v2113 = vpop.f32.mrf.mxu0
    %v2114 = vadd.f32 %v341, %v2113
    %2115 = vdwg.mxu0
    %v2116 = vxor.u32 %v2114, 2147483648
    %v2117 = vmul.f32 %v2116, 1.442695
    %v2118 = vpow.pop %v2117
    %v2119 = vadd.f32 %v2118, 1.0
    %v2120 = vrcp.pop %v2119
    %v2121 = vmul.f32 %v2119, %v2120
    %v2122 = vsub.f32 1.0, %v2121
    %v2123 = vmul.f32 %v2120, %v2122
    %v2124 = vadd.f32 %v2120, %v2123
    %vm2125 = vweird.f32 %v2119
    %vm2126 = vweird.f32 %v2120
    %vm2127 = vmor %vm2125, %vm2126
    %v2128 = vsel %vm2127, %v2120, %v2124
    %v2129 = vand.u32 2147483647, %v2119
    %vm2130 = vcmp.eq.f32.partialorder %v2129, 8.507059e+37
    %v2131 = vand.u32 %v2119, 2147483648
    %v2132 = vor.u32 1.1754944e-38, %v2131
    %v2133 = vsel %vm2130, %v2132, %v2128
    %v2134 = vmul.f32 1.0, %v2133
    %v2136 = vrot.slane %v2134, 1
    %2138 = vst.msk [vmem:[#allocation14 + $0x7] sm:$0x1] %vm387, %v2134
    %2139 = vst.msk [vmem:[#allocation14 + $0xf] sm:$0x1] %vm387, %v2136
    // Predicated region
    $region58: #{tpu_custom_call.1} parent=1 // pred_check
      _
    $region59: #{tpu_custom_call.1} parent=1 // pred_check_branch
      %2141 = sbr.rel (0) target = $region61
    $region60: #{tpu_custom_call.1} parent=1 // pred_region
      %2143 = vsyncadd [#allocation8], 0
      %s2144 = sshll.u32 [#allocation14], 4
      %s2145 = int_to_ptr.vmem [resolvable:$true] %s2144
      %s2146 = sshll.u32 %s9, 4
      %s2147 = int_to_ptr.hbm [resolvable:$true] %s2146
      %2152 = dma.vmem_to_hbm [thread:$0]  %s2145, 256, %s2147, [#allocation8], 128, 128, 8
    $region61: #{tpu_custom_call.1} parent=1 // pred_fallthru
      _
    // Predicated region
    $region62: #{tpu_custom_call.1} parent=1 // pred_check
      _
    $region63: #{tpu_custom_call.1} parent=1 // pred_check_branch
      %2154 = sbr.rel (0) target = $region65
    $region64: #{tpu_custom_call.1} parent=1 // pred_region
      %2156 = dma.done [#allocation8], 256
    $region65: #{tpu_custom_call.1} parent=1 // pred_fallthru
      _
    %2157 = vsyncpa [#allocation7], 1
    %2158 = vsyncpa [#allocation10], 1
    %2159 = vsyncpa [#allocation13], 1
    %2160 = vsyncpa [#allocation8], 1

</llo_original>
